<compile_context>
chip_gen: v5e
topology: v5e:2x2
jax: 0.10.0
libtpu: 0.0.40
codegen_flags: <defaults>
</compile_context>

<pallas_src>
import functools
import math

import jax
import jax.numpy as jnp
import numpy as np
from jax import lax
from jax.experimental import pallas as pl
from jax.experimental.pallas import tpu as pltpu


# ----------------------------------------------------------------------------
# Fused encoder kernel
# ----------------------------------------------------------------------------
def encoder_kernel(x_ref,
                   wihf0_ref, wihb0_ref, whh0_ref, bf0_ref, bb0_ref,
                   wihf1_ref, wihb1_ref, whh1_ref, bf1_ref, bb1_ref,
                   fc1w_ref, fc1b_ref, fc2w_ref, fc2b_ref,
                   enc_ref, hn_ref, cn_ref,
                   yf0_sc, yb0_sc, yf1_sc, yb1_sc, hfin_sc, cfin_sc,
                   *, T, Bp, H, mm_dtype):
    G2 = 8 * H   # fused gate width (both directions)

    def mm(a, b):
        return jnp.dot(a.astype(mm_dtype), b.astype(mm_dtype),
                       preferred_element_type=jnp.float32)

    def run_layer(x_flat, wihf_ref, wihb_ref, whh_ref, bf_ref, bb_ref,
                  yf_sc, yb_sc, layer):
        """One bidirectional LSTM layer over the VMEM-resident sequence.

        x_flat : (T*Bp, D_in) time-major flattened input.
        wihf/wihb : (D_in, 8H) input projections, other direction's cols zero,
                    gate layout [i_f,i_b,f_f,f_b,o_f,o_b,g_f,g_b].
        whh    : (2H, 8H) block-diagonal recurrent weights (same layout).
        yf/yb  : (T, Bp, H) per-direction output scratch (bwd stored at its
                 sequence position, i.e. already un-reversed).
        Writes the final (h, c) for this layer into hfin_sc/cfin_sc rows.
        """
        whh = whh_ref[...].astype(mm_dtype)   # hoisted out of the step loop

        def scoped(gxf_sc, gxb_sc):
            # Hoisted input projection: one matmul per direction covering all
            # timesteps, written straight into scratch (no 8H temp + copy).
            gxf_sc[...] = (mm(x_flat, wihf_ref[...])
                           + bf_ref[...]).reshape(T, Bp, G2)
            gxb_sc[...] = (mm(x_flat, wihb_ref[...])
                           + bb_ref[...]).reshape(T, Bp, G2)

            def step(t, carry):
                h, c = carry                       # (Bp, 2H) = [fwd | bwd]
                tb = T - 1 - t
                # Single recurrent matmul for both directions (block-diag Whh);
                # gx loads are leading-axis indexed -> aligned tile offsets.
                g = (jnp.dot(h.astype(mm_dtype), whh,
                             preferred_element_type=jnp.float32)
                     + gxf_sc[t] + gxb_sc[tb])     # (Bp, 8H)
                # Gate layout [i_f,i_b,f_f,f_b,o_f,o_b,g_f,g_b]:
                # one sigmoid dispatch + one tanh dispatch for both directions.
                sg = jax.nn.sigmoid(g[:, :6 * H])
                tg = jnp.tanh(g[:, 6 * H:])
                i_g = sg[:, 0 * H:2 * H]           # (Bp, 2H) [fwd | bwd]
                f_g = sg[:, 2 * H:4 * H]
                o_g = sg[:, 4 * H:6 * H]
                c_new = f_g * c + i_g * tg
                h_new = o_g * jnp.tanh(c_new)
                yf_sc[t] = h_new[:, :H]            # fwd output at time t
                yb_sc[tb] = h_new[:, H:]           # bwd output at position tb
                return h_new, c_new

            zeros = jnp.zeros((Bp, 2 * H), jnp.float32)
            h_fin, c_fin = lax.fori_loop(0, T, step, (zeros, zeros),
                                         unroll=min(T, 8))
            # Final states are already [fwd | bwd] along lanes -> free "concat".
            hfin_sc[layer * Bp:(layer + 1) * Bp, :] = h_fin
            cfin_sc[layer * Bp:(layer + 1) * Bp, :] = c_fin

        # Sequential run_scoped regions reuse the same VMEM offsets, so the
        # gates_x scratch of layer 0 is released before layer 1 allocates its.
        pl.run_scoped(scoped,
                      pltpu.VMEM((T, Bp, G2), jnp.float32),
                      pltpu.VMEM((T, Bp, G2), jnp.float32))

    # ---- layer 0 --------------------------------------------------------
    run_layer(x_ref[...], wihf0_ref, wihb0_ref, whh0_ref, bf0_ref, bb0_ref,
              yf0_sc, yb0_sc, layer=0)

    # TODO(synk): inter-layer dropout (p=0.3, train-only) omitted -> eval mode.

    # ---- layer 1 (input = [fwd | bwd] of layer 0) ------------------------
    x1 = jnp.concatenate([yf0_sc[...], yb0_sc[...]],
                         axis=-1).reshape(T * Bp, 2 * H)
    run_layer(x1, wihf1_ref, wihb1_ref, whh1_ref, bf1_ref, bb1_ref,
              yf1_sc, yb1_sc, layer=1)

    # ---- fused epilogue --------------------------------------------------
    # enc_outs[:, :, :H] + enc_outs[:, :, H:]  ==  y_fwd + y_bwd
    enc_ref[...] = yf1_sc[...] + yb1_sc[...]
    # torch: h_n = fc1(stack([cat(l0_f,l0_b), cat(l1_f,l1_b)]))  (same for c/fc2)
    hn_ref[...] = mm(hfin_sc[...], fc1w_ref[...]) + fc1b_ref[...]
    cn_ref[...] = mm(cfin_sc[...], fc2w_ref[...]) + fc2b_ref[...]


# ----------------------------------------------------------------------------
# Wrapper: embedding gather (XLA), batch padding, one pallas_call
# ----------------------------------------------------------------------------
def encoder_forward(packed_params, token_ids, *, matmul_dtype=jnp.float32):
    """token_ids: (T, B) int32 -> (enc_outs (T,B,H), (h_n (2,B,H), c_n (2,B,H)))."""
    H = packed_params["hidden_dim"]
    T, B = token_ids.shape
    Bp = ((B + 7) // 8) * 8                      # pad batch to full sublane tile

    # Embedding gather: data-dependent gather stays in XLA.
    embs = jnp.take(packed_params["embed"], token_ids, axis=0)   # (T, B, E)
    E = embs.shape[-1]
    x0 = jnp.pad(embs, ((0, 0), (0, Bp - B), (0, 0))).reshape(T * Bp, E)

    l0, l1 = packed_params["lstm"]
    kernel = functools.partial(encoder_kernel, T=T, Bp=Bp, H=H,
                               mm_dtype=matmul_dtype)
    enc, hn, cn = pl.pallas_call(
        kernel,
        out_shape=(
            jax.ShapeDtypeStruct((T, Bp, H), jnp.float32),     # enc_outs (padded B)
            jax.ShapeDtypeStruct((2 * Bp, H), jnp.float32),    # h_n (layer0; layer1)
            jax.ShapeDtypeStruct((2 * Bp, H), jnp.float32),    # c_n
        ),
        scratch_shapes=[
            pltpu.VMEM((T, Bp, H), jnp.float32),       # layer0 y fwd
            pltpu.VMEM((T, Bp, H), jnp.float32),       # layer0 y bwd
            pltpu.VMEM((T, Bp, H), jnp.float32),       # layer1 y fwd
            pltpu.VMEM((T, Bp, H), jnp.float32),       # layer1 y bwd
            pltpu.VMEM((2 * Bp, 2 * H), jnp.float32),  # stacked final h
            pltpu.VMEM((2 * Bp, 2 * H), jnp.float32),  # stacked final c
        ],
        # Explicit scoped-VMEM budget (raise when scaling T/B/H; re-budget for
        # v7x's 64 MiB physical VMEM).
        compiler_params=pltpu.CompilerParams(vmem_limit_bytes=32 * 1024 * 1024),
    )(x0,
      l0["wih_f"], l0["wih_b"], l0["whh"], l0["b_f"], l0["b_b"],
      l1["wih_f"], l1["wih_b"], l1["whh"], l1["b_f"], l1["b_b"],
      packed_params["fc1"]["w"], packed_params["fc1"]["b"],
      packed_params["fc2"]["w"], packed_params["fc2"]["b"])

    enc_outs = enc[:, :B, :]                       # drop padded batch rows
    h_n = hn.reshape(2, Bp, H)[:, :B, :]
    c_n = cn.reshape(2, Bp, H)[:, :B, :]
    return enc_outs, (h_n, c_n)


# ----------------------------------------------------------------------------
# Weight packing: canonical (torch-style, per-direction, gate order i,f,g,o)
# -> kernel layout (direction-interleaved, gate order i,f,o,g, block-diag Whh)
# ----------------------------------------------------------------------------
_GATE_PERM = (0, 1, 3, 2)   # torch [i,f,g,o] -> kernel block order [i,f,o,g]


def _interleave_cols(w, H, direction):
    """(R, 4H) torch-order -> (R, 8H) [i_f,i_b,f_f,f_b,o_f,o_b,g_f,g_b];
    the other direction's columns are zero."""
    R = w.shape[0]
    z = jnp.zeros((R, H), w.dtype)
    blocks = []
    for g in _GATE_PERM:
        col = w[:, g * H:(g + 1) * H]
        blocks.extend([col, z] if direction == 0 else [z, col])
    return jnp.concatenate(blocks, axis=1)


def pack_params(params):
    """One-time packing of canonical params into the kernel layout."""
    H = params["hidden_dim"]
    packed = {"hidden_dim": H, "embed": params["embed"],
              "fc1": params["fc1"], "fc2": params["fc2"], "lstm": []}
    for lp in params["lstm"]:
        packed["lstm"].append({
            "wih_f": _interleave_cols(lp["wih_f"], H, 0),   # (d_in, 8H)
            "wih_b": _interleave_cols(lp["wih_b"], H, 1),
            "b_f": _interleave_cols(lp["b_f"], H, 0),       # (1, 8H)
            "b_b": _interleave_cols(lp["b_b"], H, 1),
            # block-diagonal recurrent weights: rows 0:H feed fwd cols,
            # rows H:2H feed bwd cols.
            "whh": jnp.concatenate([_interleave_cols(lp["whh_f"], H, 0),
                                    _interleave_cols(lp["whh_b"], H, 1)],
                                   axis=0),                 # (2H, 8H)
        })
    return packed


# ----------------------------------------------------------------------------
# Pure-JAX reference (lax.scan LSTM) for a correctness check
# ----------------------------------------------------------------------------
def _ref_lstm_dir(x, w_ih, w_hh, b, reverse):
    T, B, _ = x.shape
    H = w_hh.shape[0]
    xs = x[::-1] if reverse else x

    def cell(carry, x_t):
        h, c = carry
        gates = x_t @ w_ih + h @ w_hh + b[0]        # gate order i, f, g, o
        i = jax.nn.sigmoid(gates[:, 0 * H:1 * H])
        f = jax.nn.sigmoid(gates[:, 1 * H:2 * H])
        g = jnp.tanh(gates[:, 2 * H:3 * H])
        o = jax.nn.sigmoid(gates[:, 3 * H:4 * H])
        c = f * c + i * g
        h = o * jnp.tanh(c)
        return (h, c), h

    init = (jnp.zeros((B, H), jnp.float32), jnp.zeros((B, H), jnp.float32))
    (h_n, c_n), ys = lax.scan(cell, init, xs)
    if reverse:
        ys = ys[::-1]
    return ys, h_n, c_n


def encoder_reference(params, token_ids):
    H = params["hidden_dim"]
    embs = jnp.take(params["embed"], token_ids, axis=0)
    outs = embs
    hs, cs = [], []
    for lp in params["lstm"]:
        yf, hf, cf = _ref_lstm_dir(outs, lp["wih_f"], lp["whh_f"], lp["b_f"], False)
        yb, hb, cb = _ref_lstm_dir(outs, lp["wih_b"], lp["whh_b"], lp["b_b"], True)
        outs = jnp.concatenate([yf, yb], axis=-1)
        hs.append(jnp.concatenate([hf, hb], axis=1))
        cs.append(jnp.concatenate([cf, cb], axis=1))
    enc_outs = outs[:, :, :H] + outs[:, :, H:]
    h_n = jnp.stack(hs, 0) @ params["fc1"]["w"] + params["fc1"]["b"][0]
    c_n = jnp.stack(cs, 0) @ params["fc2"]["w"] + params["fc2"]["b"][0]
    return enc_outs, (h_n, c_n)


# ----------------------------------------------------------------------------
# Deterministic parameter init (PyTorch-style uniform(-1/sqrt(H), 1/sqrt(H)))
# ----------------------------------------------------------------------------
def init_params(key, vocab_size, embed_dim, hidden_dim):
    H = hidden_dim
    keys = iter(jax.random.split(key, 64))

    def unif(shape, k):
        return jax.random.uniform(next(keys), shape, jnp.float32, -k, k)

    params = {
        "hidden_dim": H,
        "embed": jax.random.normal(next(keys), (vocab_size, embed_dim),
                                   jnp.float32),
        "lstm": [],
    }
    k_lstm = 1.0 / math.sqrt(H)
    for d_in in [embed_dim, 2 * H]:       # layer0 input, layer1 input (bidir)
        params["lstm"].append({
            "wih_f": unif((d_in, 4 * H), k_lstm),
            "wih_b": unif((d_in, 4 * H), k_lstm),
            "whh_f": unif((H, 4 * H), k_lstm),
            "whh_b": unif((H, 4 * H), k_lstm),
            # b_ih + b_hh folded into one bias per direction
            "b_f": unif((1, 4 * H), k_lstm) + unif((1, 4 * H), k_lstm),
            "b_b": unif((1, 4 * H), k_lstm) + unif((1, 4 * H), k_lstm),
        })
    k_fc = 1.0 / math.sqrt(2 * H)
    params["fc1"] = {"w": unif((2 * H, H), k_fc), "b": unif((1, H), k_fc)}
    params["fc2"] = {"w": unif((2 * H, H), k_fc), "b": unif((1, H), k_fc)}
    return params


# ----------------------------------------------------------------------------
if __name__ == "__main__":
    VOCAB = 20
    EMBED = 16
    HIDDEN = 32
    T, B = 8, 2

    key = jax.random.PRNGKey(0)
    k_param, k_tok = jax.random.split(key)
    params = init_params(k_param, VOCAB, EMBED, HIDDEN)
    packed = pack_params(params)       # one-time kernel-layout packing
    token_ids = jax.random.randint(k_tok, (T, B), 0, VOCAB, dtype=jnp.int32)

    enc_outs, (h_n, c_n) = jax.block_until_ready(
        encoder_forward(packed, token_ids))

    # sanity check against pure-JAX reference
    ref_enc, (ref_h, ref_c) = encoder_reference(params, token_ids)
    np.testing.assert_allclose(np.asarray(enc_outs), np.asarray(ref_enc),
                               rtol=1e-4, atol=1e-4)
    np.testing.assert_allclose(np.asarray(h_n), np.asarray(ref_h),
                               rtol=1e-4, atol=1e-4)
    np.testing.assert_allclose(np.asarray(c_n), np.asarray(ref_c),
                               rtol=1e-4, atol=1e-4)

    assert enc_outs.shape == (T, B, HIDDEN)
    assert h_n.shape == (2, B, HIDDEN) and c_n.shape == (2, B, HIDDEN)
    print("KERNEL_OK")
</pallas_src>

<mosaic_0001>
module attributes {stable_mosaic.version = 11 : i64} {
  func.func @encoder_kernel(%arg0: memref<64x16xf32, #tpu.memory_space<vmem>>, %arg1: memref<16x256xf32, #tpu.memory_space<vmem>>, %arg2: memref<16x256xf32, #tpu.memory_space<vmem>>, %arg3: memref<64x256xf32, #tpu.memory_space<vmem>>, %arg4: memref<1x256xf32, #tpu.memory_space<vmem>>, %arg5: memref<1x256xf32, #tpu.memory_space<vmem>>, %arg6: memref<64x256xf32, #tpu.memory_space<vmem>>, %arg7: memref<64x256xf32, #tpu.memory_space<vmem>>, %arg8: memref<64x256xf32, #tpu.memory_space<vmem>>, %arg9: memref<1x256xf32, #tpu.memory_space<vmem>>, %arg10: memref<1x256xf32, #tpu.memory_space<vmem>>, %arg11: memref<64x32xf32, #tpu.memory_space<vmem>>, %arg12: memref<1x32xf32, #tpu.memory_space<vmem>>, %arg13: memref<64x32xf32, #tpu.memory_space<vmem>>, %arg14: memref<1x32xf32, #tpu.memory_space<vmem>>, %arg15: memref<8x8x32xf32, #tpu.memory_space<vmem>>, %arg16: memref<16x32xf32, #tpu.memory_space<vmem>>, %arg17: memref<16x32xf32, #tpu.memory_space<vmem>>, %arg18: memref<8x8x32xf32, #tpu.memory_space<vmem>>, %arg19: memref<8x8x32xf32, #tpu.memory_space<vmem>>, %arg20: memref<8x8x32xf32, #tpu.memory_space<vmem>>, %arg21: memref<8x8x32xf32, #tpu.memory_space<vmem>>, %arg22: memref<16x64xf32, #tpu.memory_space<vmem>>, %arg23: memref<16x64xf32, #tpu.memory_space<vmem>>) attributes {dimension_semantics = [], scalar_prefetch = 0 : i64, scratch_operands = 6 : i64, tpu.core_type = #tpu.core_type<tc>} {
    %c0 = arith.constant 0 : index
    %c0_0 = arith.constant 0 : index
    %0 = vector.load %arg0[%c0, %c0_0] : memref<64x16xf32, #tpu.memory_space<vmem>>, vector<64x16xf32>
    %c0_1 = arith.constant 0 : index
    %c0_2 = arith.constant 0 : index
    %1 = vector.load %arg3[%c0_1, %c0_2] : memref<64x256xf32, #tpu.memory_space<vmem>>, vector<64x256xf32>
    "tpu.region"() ({
      %alloca = memref.alloca() : memref<8x8x256xf32, #tpu.memory_space<vmem>>
      %alloca_37 = memref.alloca() : memref<8x8x256xf32, #tpu.memory_space<vmem>>
      %c0_38 = arith.constant 0 : index
      %c0_39 = arith.constant 0 : index
      %25 = vector.load %arg1[%c0_38, %c0_39] : memref<16x256xf32, #tpu.memory_space<vmem>>, vector<16x256xf32>
      %cst_40 = arith.constant dense<0.000000e+00> : vector<64x256xf32>
      %26 = tpu.matmul %0, %25, %cst_40 {dimension_numbers = #tpu.dot_dimension_numbers<[1], [0], [0], [1], [0, 0, 1, 1], [], []>} : vector<64x16xf32>, vector<16x256xf32>, vector<64x256xf32> -> vector<64x256xf32>
      %c0_41 = arith.constant 0 : index
      %c0_42 = arith.constant 0 : index
      %27 = vector.load %arg4[%c0_41, %c0_42] : memref<1x256xf32, #tpu.memory_space<vmem>>, vector<1x256xf32>
      %28 = vector.broadcast %27 : vector<1x256xf32> to vector<64x256xf32>
      %29 = arith.addf %26, %28 : vector<64x256xf32>
      %30 = vector.shape_cast %29 : vector<64x256xf32> to vector<8x8x256xf32>
      %c0_43 = arith.constant 0 : index
      %c0_44 = arith.constant 0 : index
      %c0_45 = arith.constant 0 : index
      %31 = vector.load %alloca[%c0_43, %c0_44, %c0_45] : memref<8x8x256xf32, #tpu.memory_space<vmem>>, vector<8x8x256xf32>
      tpu.vector_store %alloca[%c0_43, %c0_44, %c0_45], %30 {strides = array<i32>} : memref<8x8x256xf32, #tpu.memory_space<vmem>>, vector<8x8x256xf32>,
      %c0_46 = arith.constant 0 : index
      %c0_47 = arith.constant 0 : index
      %32 = vector.load %arg2[%c0_46, %c0_47] : memref<16x256xf32, #tpu.memory_space<vmem>>, vector<16x256xf32>
      %cst_48 = arith.constant dense<0.000000e+00> : vector<64x256xf32>
      %33 = tpu.matmul %0, %32, %cst_48 {dimension_numbers = #tpu.dot_dimension_numbers<[1], [0], [0], [1], [0, 0, 1, 1], [], []>} : vector<64x16xf32>, vector<16x256xf32>, vector<64x256xf32> -> vector<64x256xf32>
      %c0_49 = arith.constant 0 : index
      %c0_50 = arith.constant 0 : index
      %34 = vector.load %arg5[%c0_49, %c0_50] : memref<1x256xf32, #tpu.memory_space<vmem>>, vector<1x256xf32>
      %35 = vector.broadcast %34 : vector<1x256xf32> to vector<64x256xf32>
      %36 = arith.addf %33, %35 : vector<64x256xf32>
      %37 = vector.shape_cast %36 : vector<64x256xf32> to vector<8x8x256xf32>
      %c0_51 = arith.constant 0 : index
      %c0_52 = arith.constant 0 : index
      %c0_53 = arith.constant 0 : index
      %38 = vector.load %alloca_37[%c0_51, %c0_52, %c0_53] : memref<8x8x256xf32, #tpu.memory_space<vmem>>, vector<8x8x256xf32>
      tpu.vector_store %alloca_37[%c0_51, %c0_52, %c0_53], %37 {strides = array<i32>} : memref<8x8x256xf32, #tpu.memory_space<vmem>>, vector<8x8x256xf32>,
      %cst_54 = arith.constant 0.000000e+00 : f32
      %39 = vector.broadcast %cst_54 : f32 to vector<8x64xf32>
      %c0_i32 = arith.constant 0 : i32
      %c7_i32 = arith.constant 7 : i32
      %40 = arith.subi %c7_i32, %c0_i32 : i32
      %cst_55 = arith.constant dense<0.000000e+00> : vector<8x256xf32>
      %41 = tpu.matmul %39, %1, %cst_55 {dimension_numbers = #tpu.dot_dimension_numbers<[1], [0], [0], [1], [0, 0, 1, 1], [], []>} : vector<8x64xf32>, vector<64x256xf32>, vector<8x256xf32> -> vector<8x256xf32>
      %42 = arith.index_cast %c0_i32 : i32 to index
      %c0_56 = arith.constant 0 : index
      %c0_57 = arith.constant 0 : index
      %43 = vector.load %alloca[%42, %c0_56, %c0_57] : memref<8x8x256xf32, #tpu.memory_space<vmem>>, vector<1x8x256xf32>
      %44 = vector.shape_cast %43 : vector<1x8x256xf32> to vector<8x256xf32>
      %45 = arith.addf %41, %44 : vector<8x256xf32>
      %46 = arith.index_cast %40 : i32 to index
      %c0_58 = arith.constant 0 : index
      %c0_59 = arith.constant 0 : index
      %47 = vector.load %alloca_37[%46, %c0_58, %c0_59] : memref<8x8x256xf32, #tpu.memory_space<vmem>>, vector<1x8x256xf32>
      %48 = vector.shape_cast %47 : vector<1x8x256xf32> to vector<8x256xf32>
      %49 = arith.addf %45, %48 : vector<8x256xf32>
      %50 = vector.extract_strided_slice %49 {offsets = [0, 0], sizes = [8, 192], strides = [1, 1]} : vector<8x256xf32> to vector<8x192xf32>
      %51 = arith.negf %50 : vector<8x192xf32>
      %52 = math.exp %51 : vector<8x192xf32>
      %cst_60 = arith.constant 1.000000e+00 : f32
      %53 = vector.broadcast %cst_60 : f32 to vector<8x192xf32>
      %54 = arith.addf %53, %52 : vector<8x192xf32>
      %55 = arith.divf %53, %54 : vector<8x192xf32>
      %56 = vector.extract_strided_slice %49 {offsets = [0, 192], sizes = [8, 64], strides = [1, 1]} : vector<8x256xf32> to vector<8x64xf32>
      %57 = math.tanh %56 : vector<8x64xf32>
      %58 = vector.extract_strided_slice %55 {offsets = [0, 0], sizes = [8, 64], strides = [1, 1]} : vector<8x192xf32> to vector<8x64xf32>
      %59 = vector.extract_strided_slice %55 {offsets = [0, 64], sizes = [8, 64], strides = [1, 1]} : vector<8x192xf32> to vector<8x64xf32>
      %60 = vector.extract_strided_slice %55 {offsets = [0, 128], sizes = [8, 64], strides = [1, 1]} : vector<8x192xf32> to vector<8x64xf32>
      %61 = arith.mulf %59, %39 : vector<8x64xf32>
      %62 = arith.mulf %58, %57 : vector<8x64xf32>
      %63 = arith.addf %61, %62 : vector<8x64xf32>
      %64 = math.tanh %63 : vector<8x64xf32>
      %65 = arith.mulf %60, %64 : vector<8x64xf32>
      %66 = vector.extract_strided_slice %65 {offsets = [0, 0], sizes = [8, 32], strides = [1, 1]} : vector<8x64xf32> to vector<8x32xf32>
      %67 = arith.index_cast %c0_i32 : i32 to index
      %c0_61 = arith.constant 0 : index
      %c0_62 = arith.constant 0 : index
      %68 = vector.load %arg18[%67, %c0_61, %c0_62] : memref<8x8x32xf32, #tpu.memory_space<vmem>>, vector<1x8x32xf32>
      %69 = vector.shape_cast %68 : vector<1x8x32xf32> to vector<8x32xf32>
      %70 = vector.shape_cast %66 : vector<8x32xf32> to vector<1x8x32xf32>
      tpu.vector_store %arg18[%67, %c0_61, %c0_62], %70 {strides = array<i32>} : memref<8x8x32xf32, #tpu.memory_space<vmem>>, vector<1x8x32xf32>,
      %71 = vector.extract_strided_slice %65 {offsets = [0, 32], sizes = [8, 32], strides = [1, 1]} : vector<8x64xf32> to vector<8x32xf32>
      %72 = arith.index_cast %40 : i32 to index
      %c0_63 = arith.constant 0 : index
      %c0_64 = arith.constant 0 : index
      %73 = vector.load %arg19[%72, %c0_63, %c0_64] : memref<8x8x32xf32, #tpu.memory_space<vmem>>, vector<1x8x32xf32>
      %74 = vector.shape_cast %73 : vector<1x8x32xf32> to vector<8x32xf32>
      %75 = vector.shape_cast %71 : vector<8x32xf32> to vector<1x8x32xf32>
      tpu.vector_store %arg19[%72, %c0_63, %c0_64], %75 {strides = array<i32>} : memref<8x8x32xf32, #tpu.memory_space<vmem>>, vector<1x8x32xf32>,
      %c1_i32 = arith.constant 1 : i32
      %c7_i32_65 = arith.constant 7 : i32
      %76 = arith.subi %c7_i32_65, %c1_i32 : i32
      %cst_66 = arith.constant dense<0.000000e+00> : vector<8x256xf32>
      %77 = tpu.matmul %65, %1, %cst_66 {dimension_numbers = #tpu.dot_dimension_numbers<[1], [0], [0], [1], [0, 0, 1, 1], [], []>} : vector<8x64xf32>, vector<64x256xf32>, vector<8x256xf32> -> vector<8x256xf32>
      %78 = arith.index_cast %c1_i32 : i32 to index
      %c0_67 = arith.constant 0 : index
      %c0_68 = arith.constant 0 : index
      %79 = vector.load %alloca[%78, %c0_67, %c0_68] : memref<8x8x256xf32, #tpu.memory_space<vmem>>, vector<1x8x256xf32>
      %80 = vector.shape_cast %79 : vector<1x8x256xf32> to vector<8x256xf32>
      %81 = arith.addf %77, %80 : vector<8x256xf32>
      %82 = arith.index_cast %76 : i32 to index
      %c0_69 = arith.constant 0 : index
      %c0_70 = arith.constant 0 : index
      %83 = vector.load %alloca_37[%82, %c0_69, %c0_70] : memref<8x8x256xf32, #tpu.memory_space<vmem>>, vector<1x8x256xf32>
      %84 = vector.shape_cast %83 : vector<1x8x256xf32> to vector<8x256xf32>
      %85 = arith.addf %81, %84 : vector<8x256xf32>
      %86 = vector.extract_strided_slice %85 {offsets = [0, 0], sizes = [8, 192], strides = [1, 1]} : vector<8x256xf32> to vector<8x192xf32>
      %87 = arith.negf %86 : vector<8x192xf32>
      %88 = math.exp %87 : vector<8x192xf32>
      %cst_71 = arith.constant 1.000000e+00 : f32
      %89 = vector.broadcast %cst_71 : f32 to vector<8x192xf32>
      %90 = arith.addf %89, %88 : vector<8x192xf32>
      %91 = arith.divf %89, %90 : vector<8x192xf32>
      %92 = vector.extract_strided_slice %85 {offsets = [0, 192], sizes = [8, 64], strides = [1, 1]} : vector<8x256xf32> to vector<8x64xf32>
      %93 = math.tanh %92 : vector<8x64xf32>
      %94 = vector.extract_strided_slice %91 {offsets = [0, 0], sizes = [8, 64], strides = [1, 1]} : vector<8x192xf32> to vector<8x64xf32>
      %95 = vector.extract_strided_slice %91 {offsets = [0, 64], sizes = [8, 64], strides = [1, 1]} : vector<8x192xf32> to vector<8x64xf32>
      %96 = vector.extract_strided_slice %91 {offsets = [0, 128], sizes = [8, 64], strides = [1, 1]} : vector<8x192xf32> to vector<8x64xf32>
      %97 = arith.mulf %95, %63 : vector<8x64xf32>
      %98 = arith.mulf %94, %93 : vector<8x64xf32>
      %99 = arith.addf %97, %98 : vector<8x64xf32>
      %100 = math.tanh %99 : vector<8x64xf32>
      %101 = arith.mulf %96, %100 : vector<8x64xf32>
      %102 = vector.extract_strided_slice %101 {offsets = [0, 0], sizes = [8, 32], strides = [1, 1]} : vector<8x64xf32> to vector<8x32xf32>
      %103 = arith.index_cast %c1_i32 : i32 to index
      %c0_72 = arith.constant 0 : index
      %c0_73 = arith.constant 0 : index
      %104 = vector.load %arg18[%103, %c0_72, %c0_73] : memref<8x8x32xf32, #tpu.memory_space<vmem>>, vector<1x8x32xf32>
      %105 = vector.shape_cast %104 : vector<1x8x32xf32> to vector<8x32xf32>
      %106 = vector.shape_cast %102 : vector<8x32xf32> to vector<1x8x32xf32>
      tpu.vector_store %arg18[%103, %c0_72, %c0_73], %106 {strides = array<i32>} : memref<8x8x32xf32, #tpu.memory_space<vmem>>, vector<1x8x32xf32>,
      %107 = vector.extract_strided_slice %101 {offsets = [0, 32], sizes = [8, 32], strides = [1, 1]} : vector<8x64xf32> to vector<8x32xf32>
      %108 = arith.index_cast %76 : i32 to index
      %c0_74 = arith.constant 0 : index
      %c0_75 = arith.constant 0 : index
      %109 = vector.load %arg19[%108, %c0_74, %c0_75] : memref<8x8x32xf32, #tpu.memory_space<vmem>>, vector<1x8x32xf32>
      %110 = vector.shape_cast %109 : vector<1x8x32xf32> to vector<8x32xf32>
      %111 = vector.shape_cast %107 : vector<8x32xf32> to vector<1x8x32xf32>
      tpu.vector_store %arg19[%108, %c0_74, %c0_75], %111 {strides = array<i32>} : memref<8x8x32xf32, #tpu.memory_space<vmem>>, vector<1x8x32xf32>,
      %c2_i32 = arith.constant 2 : i32
      %c7_i32_76 = arith.constant 7 : i32
      %112 = arith.subi %c7_i32_76, %c2_i32 : i32
      %cst_77 = arith.constant dense<0.000000e+00> : vector<8x256xf32>
      %113 = tpu.matmul %101, %1, %cst_77 {dimension_numbers = #tpu.dot_dimension_numbers<[1], [0], [0], [1], [0, 0, 1, 1], [], []>} : vector<8x64xf32>, vector<64x256xf32>, vector<8x256xf32> -> vector<8x256xf32>
      %114 = arith.index_cast %c2_i32 : i32 to index
      %c0_78 = arith.constant 0 : index
      %c0_79 = arith.constant 0 : index
      %115 = vector.load %alloca[%114, %c0_78, %c0_79] : memref<8x8x256xf32, #tpu.memory_space<vmem>>, vector<1x8x256xf32>
      %116 = vector.shape_cast %115 : vector<1x8x256xf32> to vector<8x256xf32>
      %117 = arith.addf %113, %116 : vector<8x256xf32>
      %118 = arith.index_cast %112 : i32 to index
      %c0_80 = arith.constant 0 : index
      %c0_81 = arith.constant 0 : index
      %119 = vector.load %alloca_37[%118, %c0_80, %c0_81] : memref<8x8x256xf32, #tpu.memory_space<vmem>>, vector<1x8x256xf32>
      %120 = vector.shape_cast %119 : vector<1x8x256xf32> to vector<8x256xf32>
      %121 = arith.addf %117, %120 : vector<8x256xf32>
      %122 = vector.extract_strided_slice %121 {offsets = [0, 0], sizes = [8, 192], strides = [1, 1]} : vector<8x256xf32> to vector<8x192xf32>
      %123 = arith.negf %122 : vector<8x192xf32>
      %124 = math.exp %123 : vector<8x192xf32>
      %cst_82 = arith.constant 1.000000e+00 : f32
      %125 = vector.broadcast %cst_82 : f32 to vector<8x192xf32>
      %126 = arith.addf %125, %124 : vector<8x192xf32>
      %127 = arith.divf %125, %126 : vector<8x192xf32>
      %128 = vector.extract_strided_slice %121 {offsets = [0, 192], sizes = [8, 64], strides = [1, 1]} : vector<8x256xf32> to vector<8x64xf32>
      %129 = math.tanh %128 : vector<8x64xf32>
      %130 = vector.extract_strided_slice %127 {offsets = [0, 0], sizes = [8, 64], strides = [1, 1]} : vector<8x192xf32> to vector<8x64xf32>
      %131 = vector.extract_strided_slice %127 {offsets = [0, 64], sizes = [8, 64], strides = [1, 1]} : vector<8x192xf32> to vector<8x64xf32>
      %132 = vector.extract_strided_slice %127 {offsets = [0, 128], sizes = [8, 64], strides = [1, 1]} : vector<8x192xf32> to vector<8x64xf32>
      %133 = arith.mulf %131, %99 : vector<8x64xf32>
      %134 = arith.mulf %130, %129 : vector<8x64xf32>
      %135 = arith.addf %133, %134 : vector<8x64xf32>
      %136 = math.tanh %135 : vector<8x64xf32>
      %137 = arith.mulf %132, %136 : vector<8x64xf32>
      %138 = vector.extract_strided_slice %137 {offsets = [0, 0], sizes = [8, 32], strides = [1, 1]} : vector<8x64xf32> to vector<8x32xf32>
      %139 = arith.index_cast %c2_i32 : i32 to index
      %c0_83 = arith.constant 0 : index
      %c0_84 = arith.constant 0 : index
      %140 = vector.load %arg18[%139, %c0_83, %c0_84] : memref<8x8x32xf32, #tpu.memory_space<vmem>>, vector<1x8x32xf32>
      %141 = vector.shape_cast %140 : vector<1x8x32xf32> to vector<8x32xf32>
      %142 = vector.shape_cast %138 : vector<8x32xf32> to vector<1x8x32xf32>
      tpu.vector_store %arg18[%139, %c0_83, %c0_84], %142 {strides = array<i32>} : memref<8x8x32xf32, #tpu.memory_space<vmem>>, vector<1x8x32xf32>,
      %143 = vector.extract_strided_slice %137 {offsets = [0, 32], sizes = [8, 32], strides = [1, 1]} : vector<8x64xf32> to vector<8x32xf32>
      %144 = arith.index_cast %112 : i32 to index
      %c0_85 = arith.constant 0 : index
      %c0_86 = arith.constant 0 : index
      %145 = vector.load %arg19[%144, %c0_85, %c0_86] : memref<8x8x32xf32, #tpu.memory_space<vmem>>, vector<1x8x32xf32>
      %146 = vector.shape_cast %145 : vector<1x8x32xf32> to vector<8x32xf32>
      %147 = vector.shape_cast %143 : vector<8x32xf32> to vector<1x8x32xf32>
      tpu.vector_store %arg19[%144, %c0_85, %c0_86], %147 {strides = array<i32>} : memref<8x8x32xf32, #tpu.memory_space<vmem>>, vector<1x8x32xf32>,
      %c3_i32 = arith.constant 3 : i32
      %c7_i32_87 = arith.constant 7 : i32
      %148 = arith.subi %c7_i32_87, %c3_i32 : i32
      %cst_88 = arith.constant dense<0.000000e+00> : vector<8x256xf32>
      %149 = tpu.matmul %137, %1, %cst_88 {dimension_numbers = #tpu.dot_dimension_numbers<[1], [0], [0], [1], [0, 0, 1, 1], [], []>} : vector<8x64xf32>, vector<64x256xf32>, vector<8x256xf32> -> vector<8x256xf32>
      %150 = arith.index_cast %c3_i32 : i32 to index
      %c0_89 = arith.constant 0 : index
      %c0_90 = arith.constant 0 : index
      %151 = vector.load %alloca[%150, %c0_89, %c0_90] : memref<8x8x256xf32, #tpu.memory_space<vmem>>, vector<1x8x256xf32>
      %152 = vector.shape_cast %151 : vector<1x8x256xf32> to vector<8x256xf32>
      %153 = arith.addf %149, %152 : vector<8x256xf32>
      %154 = arith.index_cast %148 : i32 to index
      %c0_91 = arith.constant 0 : index
      %c0_92 = arith.constant 0 : index
      %155 = vector.load %alloca_37[%154, %c0_91, %c0_92] : memref<8x8x256xf32, #tpu.memory_space<vmem>>, vector<1x8x256xf32>
      %156 = vector.shape_cast %155 : vector<1x8x256xf32> to vector<8x256xf32>
      %157 = arith.addf %153, %156 : vector<8x256xf32>
      %158 = vector.extract_strided_slice %157 {offsets = [0, 0], sizes = [8, 192], strides = [1, 1]} : vector<8x256xf32> to vector<8x192xf32>
      %159 = arith.negf %158 : vector<8x192xf32>
      %160 = math.exp %159 : vector<8x192xf32>
      %cst_93 = arith.constant 1.000000e+00 : f32
      %161 = vector.broadcast %cst_93 : f32 to vector<8x192xf32>
      %162 = arith.addf %161, %160 : vector<8x192xf32>
      %163 = arith.divf %161, %162 : vector<8x192xf32>
      %164 = vector.extract_strided_slice %157 {offsets = [0, 192], sizes = [8, 64], strides = [1, 1]} : vector<8x256xf32> to vector<8x64xf32>
      %165 = math.tanh %164 : vector<8x64xf32>
      %166 = vector.extract_strided_slice %163 {offsets = [0, 0], sizes = [8, 64], strides = [1, 1]} : vector<8x192xf32> to vector<8x64xf32>
      %167 = vector.extract_strided_slice %163 {offsets = [0, 64], sizes = [8, 64], strides = [1, 1]} : vector<8x192xf32> to vector<8x64xf32>
      %168 = vector.extract_strided_slice %163 {offsets = [0, 128], sizes = [8, 64], strides = [1, 1]} : vector<8x192xf32> to vector<8x64xf32>
      %169 = arith.mulf %167, %135 : vector<8x64xf32>
      %170 = arith.mulf %166, %165 : vector<8x64xf32>
      %171 = arith.addf %169, %170 : vector<8x64xf32>
      %172 = math.tanh %171 : vector<8x64xf32>
      %173 = arith.mulf %168, %172 : vector<8x64xf32>
      %174 = vector.extract_strided_slice %173 {offsets = [0, 0], sizes = [8, 32], strides = [1, 1]} : vector<8x64xf32> to vector<8x32xf32>
      %175 = arith.index_cast %c3_i32 : i32 to index
      %c0_94 = arith.constant 0 : index
      %c0_95 = arith.constant 0 : index
      %176 = vector.load %arg18[%175, %c0_94, %c0_95] : memref<8x8x32xf32, #tpu.memory_space<vmem>>, vector<1x8x32xf32>
      %177 = vector.shape_cast %176 : vector<1x8x32xf32> to vector<8x32xf32>
      %178 = vector.shape_cast %174 : vector<8x32xf32> to vector<1x8x32xf32>
      tpu.vector_store %arg18[%175, %c0_94, %c0_95], %178 {strides = array<i32>} : memref<8x8x32xf32, #tpu.memory_space<vmem>>, vector<1x8x32xf32>,
      %179 = vector.extract_strided_slice %173 {offsets = [0, 32], sizes = [8, 32], strides = [1, 1]} : vector<8x64xf32> to vector<8x32xf32>
      %180 = arith.index_cast %148 : i32 to index
      %c0_96 = arith.constant 0 : index
      %c0_97 = arith.constant 0 : index
      %181 = vector.load %arg19[%180, %c0_96, %c0_97] : memref<8x8x32xf32, #tpu.memory_space<vmem>>, vector<1x8x32xf32>
      %182 = vector.shape_cast %181 : vector<1x8x32xf32> to vector<8x32xf32>
      %183 = vector.shape_cast %179 : vector<8x32xf32> to vector<1x8x32xf32>
      tpu.vector_store %arg19[%180, %c0_96, %c0_97], %183 {strides = array<i32>} : memref<8x8x32xf32, #tpu.memory_space<vmem>>, vector<1x8x32xf32>,
      %c4_i32 = arith.constant 4 : i32
      %c7_i32_98 = arith.constant 7 : i32
      %184 = arith.subi %c7_i32_98, %c4_i32 : i32
      %cst_99 = arith.constant dense<0.000000e+00> : vector<8x256xf32>
      %185 = tpu.matmul %173, %1, %cst_99 {dimension_numbers = #tpu.dot_dimension_numbers<[1], [0], [0], [1], [0, 0, 1, 1], [], []>} : vector<8x64xf32>, vector<64x256xf32>, vector<8x256xf32> -> vector<8x256xf32>
      %186 = arith.index_cast %c4_i32 : i32 to index
      %c0_100 = arith.constant 0 : index
      %c0_101 = arith.constant 0 : index
      %187 = vector.load %alloca[%186, %c0_100, %c0_101] : memref<8x8x256xf32, #tpu.memory_space<vmem>>, vector<1x8x256xf32>
      %188 = vector.shape_cast %187 : vector<1x8x256xf32> to vector<8x256xf32>
      %189 = arith.addf %185, %188 : vector<8x256xf32>
      %190 = arith.index_cast %184 : i32 to index
      %c0_102 = arith.constant 0 : index
      %c0_103 = arith.constant 0 : index
      %191 = vector.load %alloca_37[%190, %c0_102, %c0_103] : memref<8x8x256xf32, #tpu.memory_space<vmem>>, vector<1x8x256xf32>
      %192 = vector.shape_cast %191 : vector<1x8x256xf32> to vector<8x256xf32>
      %193 = arith.addf %189, %192 : vector<8x256xf32>
      %194 = vector.extract_strided_slice %193 {offsets = [0, 0], sizes = [8, 192], strides = [1, 1]} : vector<8x256xf32> to vector<8x192xf32>
      %195 = arith.negf %194 : vector<8x192xf32>
      %196 = math.exp %195 : vector<8x192xf32>
      %cst_104 = arith.constant 1.000000e+00 : f32
      %197 = vector.broadcast %cst_104 : f32 to vector<8x192xf32>
      %198 = arith.addf %197, %196 : vector<8x192xf32>
      %199 = arith.divf %197, %198 : vector<8x192xf32>
      %200 = vector.extract_strided_slice %193 {offsets = [0, 192], sizes = [8, 64], strides = [1, 1]} : vector<8x256xf32> to vector<8x64xf32>
      %201 = math.tanh %200 : vector<8x64xf32>
      %202 = vector.extract_strided_slice %199 {offsets = [0, 0], sizes = [8, 64], strides = [1, 1]} : vector<8x192xf32> to vector<8x64xf32>
      %203 = vector.extract_strided_slice %199 {offsets = [0, 64], sizes = [8, 64], strides = [1, 1]} : vector<8x192xf32> to vector<8x64xf32>
      %204 = vector.extract_strided_slice %199 {offsets = [0, 128], sizes = [8, 64], strides = [1, 1]} : vector<8x192xf32> to vector<8x64xf32>
      %205 = arith.mulf %203, %171 : vector<8x64xf32>
      %206 = arith.mulf %202, %201 : vector<8x64xf32>
      %207 = arith.addf %205, %206 : vector<8x64xf32>
      %208 = math.tanh %207 : vector<8x64xf32>
      %209 = arith.mulf %204, %208 : vector<8x64xf32>
      %210 = vector.extract_strided_slice %209 {offsets = [0, 0], sizes = [8, 32], strides = [1, 1]} : vector<8x64xf32> to vector<8x32xf32>
      %211 = arith.index_cast %c4_i32 : i32 to index
      %c0_105 = arith.constant 0 : index
      %c0_106 = arith.constant 0 : index
      %212 = vector.load %arg18[%211, %c0_105, %c0_106] : memref<8x8x32xf32, #tpu.memory_space<vmem>>, vector<1x8x32xf32>
      %213 = vector.shape_cast %212 : vector<1x8x32xf32> to vector<8x32xf32>
      %214 = vector.shape_cast %210 : vector<8x32xf32> to vector<1x8x32xf32>
      tpu.vector_store %arg18[%211, %c0_105, %c0_106], %214 {strides = array<i32>} : memref<8x8x32xf32, #tpu.memory_space<vmem>>, vector<1x8x32xf32>,
      %215 = vector.extract_strided_slice %209 {offsets = [0, 32], sizes = [8, 32], strides = [1, 1]} : vector<8x64xf32> to vector<8x32xf32>
      %216 = arith.index_cast %184 : i32 to index
      %c0_107 = arith.constant 0 : index
      %c0_108 = arith.constant 0 : index
      %217 = vector.load %arg19[%216, %c0_107, %c0_108] : memref<8x8x32xf32, #tpu.memory_space<vmem>>, vector<1x8x32xf32>
      %218 = vector.shape_cast %217 : vector<1x8x32xf32> to vector<8x32xf32>
      %219 = vector.shape_cast %215 : vector<8x32xf32> to vector<1x8x32xf32>
      tpu.vector_store %arg19[%216, %c0_107, %c0_108], %219 {strides = array<i32>} : memref<8x8x32xf32, #tpu.memory_space<vmem>>, vector<1x8x32xf32>,
      %c5_i32 = arith.constant 5 : i32
      %c7_i32_109 = arith.constant 7 : i32
      %220 = arith.subi %c7_i32_109, %c5_i32 : i32
      %cst_110 = arith.constant dense<0.000000e+00> : vector<8x256xf32>
      %221 = tpu.matmul %209, %1, %cst_110 {dimension_numbers = #tpu.dot_dimension_numbers<[1], [0], [0], [1], [0, 0, 1, 1], [], []>} : vector<8x64xf32>, vector<64x256xf32>, vector<8x256xf32> -> vector<8x256xf32>
      %222 = arith.index_cast %c5_i32 : i32 to index
      %c0_111 = arith.constant 0 : index
      %c0_112 = arith.constant 0 : index
      %223 = vector.load %alloca[%222, %c0_111, %c0_112] : memref<8x8x256xf32, #tpu.memory_space<vmem>>, vector<1x8x256xf32>
      %224 = vector.shape_cast %223 : vector<1x8x256xf32> to vector<8x256xf32>
      %225 = arith.addf %221, %224 : vector<8x256xf32>
      %226 = arith.index_cast %220 : i32 to index
      %c0_113 = arith.constant 0 : index
      %c0_114 = arith.constant 0 : index
      %227 = vector.load %alloca_37[%226, %c0_113, %c0_114] : memref<8x8x256xf32, #tpu.memory_space<vmem>>, vector<1x8x256xf32>
      %228 = vector.shape_cast %227 : vector<1x8x256xf32> to vector<8x256xf32>
      %229 = arith.addf %225, %228 : vector<8x256xf32>
      %230 = vector.extract_strided_slice %229 {offsets = [0, 0], sizes = [8, 192], strides = [1, 1]} : vector<8x256xf32> to vector<8x192xf32>
      %231 = arith.negf %230 : vector<8x192xf32>
      %232 = math.exp %231 : vector<8x192xf32>
      %cst_115 = arith.constant 1.000000e+00 : f32
      %233 = vector.broadcast %cst_115 : f32 to vector<8x192xf32>
      %234 = arith.addf %233, %232 : vector<8x192xf32>
      %235 = arith.divf %233, %234 : vector<8x192xf32>
      %236 = vector.extract_strided_slice %229 {offsets = [0, 192], sizes = [8, 64], strides = [1, 1]} : vector<8x256xf32> to vector<8x64xf32>
      %237 = math.tanh %236 : vector<8x64xf32>
      %238 = vector.extract_strided_slice %235 {offsets = [0, 0], sizes = [8, 64], strides = [1, 1]} : vector<8x192xf32> to vector<8x64xf32>
      %239 = vector.extract_strided_slice %235 {offsets = [0, 64], sizes = [8, 64], strides = [1, 1]} : vector<8x192xf32> to vector<8x64xf32>
      %240 = vector.extract_strided_slice %235 {offsets = [0, 128], sizes = [8, 64], strides = [1, 1]} : vector<8x192xf32> to vector<8x64xf32>
      %241 = arith.mulf %239, %207 : vector<8x64xf32>
      %242 = arith.mulf %238, %237 : vector<8x64xf32>
      %243 = arith.addf %241, %242 : vector<8x64xf32>
      %244 = math.tanh %243 : vector<8x64xf32>
      %245 = arith.mulf %240, %244 : vector<8x64xf32>
      %246 = vector.extract_strided_slice %245 {offsets = [0, 0], sizes = [8, 32], strides = [1, 1]} : vector<8x64xf32> to vector<8x32xf32>
      %247 = arith.index_cast %c5_i32 : i32 to index
      %c0_116 = arith.constant 0 : index
      %c0_117 = arith.constant 0 : index
      %248 = vector.load %arg18[%247, %c0_116, %c0_117] : memref<8x8x32xf32, #tpu.memory_space<vmem>>, vector<1x8x32xf32>
      %249 = vector.shape_cast %248 : vector<1x8x32xf32> to vector<8x32xf32>
      %250 = vector.shape_cast %246 : vector<8x32xf32> to vector<1x8x32xf32>
      tpu.vector_store %arg18[%247, %c0_116, %c0_117], %250 {strides = array<i32>} : memref<8x8x32xf32, #tpu.memory_space<vmem>>, vector<1x8x32xf32>,
      %251 = vector.extract_strided_slice %245 {offsets = [0, 32], sizes = [8, 32], strides = [1, 1]} : vector<8x64xf32> to vector<8x32xf32>
      %252 = arith.index_cast %220 : i32 to index
      %c0_118 = arith.constant 0 : index
      %c0_119 = arith.constant 0 : index
      %253 = vector.load %arg19[%252, %c0_118, %c0_119] : memref<8x8x32xf32, #tpu.memory_space<vmem>>, vector<1x8x32xf32>
      %254 = vector.shape_cast %253 : vector<1x8x32xf32> to vector<8x32xf32>
      %255 = vector.shape_cast %251 : vector<8x32xf32> to vector<1x8x32xf32>
      tpu.vector_store %arg19[%252, %c0_118, %c0_119], %255 {strides = array<i32>} : memref<8x8x32xf32, #tpu.memory_space<vmem>>, vector<1x8x32xf32>,
      %c6_i32 = arith.constant 6 : i32
      %c7_i32_120 = arith.constant 7 : i32
      %256 = arith.subi %c7_i32_120, %c6_i32 : i32
      %cst_121 = arith.constant dense<0.000000e+00> : vector<8x256xf32>
      %257 = tpu.matmul %245, %1, %cst_121 {dimension_numbers = #tpu.dot_dimension_numbers<[1], [0], [0], [1], [0, 0, 1, 1], [], []>} : vector<8x64xf32>, vector<64x256xf32>, vector<8x256xf32> -> vector<8x256xf32>
      %258 = arith.index_cast %c6_i32 : i32 to index
      %c0_122 = arith.constant 0 : index
      %c0_123 = arith.constant 0 : index
      %259 = vector.load %alloca[%258, %c0_122, %c0_123] : memref<8x8x256xf32, #tpu.memory_space<vmem>>, vector<1x8x256xf32>
      %260 = vector.shape_cast %259 : vector<1x8x256xf32> to vector<8x256xf32>
      %261 = arith.addf %257, %260 : vector<8x256xf32>
      %262 = arith.index_cast %256 : i32 to index
      %c0_124 = arith.constant 0 : index
      %c0_125 = arith.constant 0 : index
      %263 = vector.load %alloca_37[%262, %c0_124, %c0_125] : memref<8x8x256xf32, #tpu.memory_space<vmem>>, vector<1x8x256xf32>
      %264 = vector.shape_cast %263 : vector<1x8x256xf32> to vector<8x256xf32>
      %265 = arith.addf %261, %264 : vector<8x256xf32>
      %266 = vector.extract_strided_slice %265 {offsets = [0, 0], sizes = [8, 192], strides = [1, 1]} : vector<8x256xf32> to vector<8x192xf32>
      %267 = arith.negf %266 : vector<8x192xf32>
      %268 = math.exp %267 : vector<8x192xf32>
      %cst_126 = arith.constant 1.000000e+00 : f32
      %269 = vector.broadcast %cst_126 : f32 to vector<8x192xf32>
      %270 = arith.addf %269, %268 : vector<8x192xf32>
      %271 = arith.divf %269, %270 : vector<8x192xf32>
      %272 = vector.extract_strided_slice %265 {offsets = [0, 192], sizes = [8, 64], strides = [1, 1]} : vector<8x256xf32> to vector<8x64xf32>
      %273 = math.tanh %272 : vector<8x64xf32>
      %274 = vector.extract_strided_slice %271 {offsets = [0, 0], sizes = [8, 64], strides = [1, 1]} : vector<8x192xf32> to vector<8x64xf32>
      %275 = vector.extract_strided_slice %271 {offsets = [0, 64], sizes = [8, 64], strides = [1, 1]} : vector<8x192xf32> to vector<8x64xf32>
      %276 = vector.extract_strided_slice %271 {offsets = [0, 128], sizes = [8, 64], strides = [1, 1]} : vector<8x192xf32> to vector<8x64xf32>
      %277 = arith.mulf %275, %243 : vector<8x64xf32>
      %278 = arith.mulf %274, %273 : vector<8x64xf32>
      %279 = arith.addf %277, %278 : vector<8x64xf32>
      %280 = math.tanh %279 : vector<8x64xf32>
      %281 = arith.mulf %276, %280 : vector<8x64xf32>
      %282 = vector.extract_strided_slice %281 {offsets = [0, 0], sizes = [8, 32], strides = [1, 1]} : vector<8x64xf32> to vector<8x32xf32>
      %283 = arith.index_cast %c6_i32 : i32 to index
      %c0_127 = arith.constant 0 : index
      %c0_128 = arith.constant 0 : index
      %284 = vector.load %arg18[%283, %c0_127, %c0_128] : memref<8x8x32xf32, #tpu.memory_space<vmem>>, vector<1x8x32xf32>
      %285 = vector.shape_cast %284 : vector<1x8x32xf32> to vector<8x32xf32>
      %286 = vector.shape_cast %282 : vector<8x32xf32> to vector<1x8x32xf32>
      tpu.vector_store %arg18[%283, %c0_127, %c0_128], %286 {strides = array<i32>} : memref<8x8x32xf32, #tpu.memory_space<vmem>>, vector<1x8x32xf32>,
      %287 = vector.extract_strided_slice %281 {offsets = [0, 32], sizes = [8, 32], strides = [1, 1]} : vector<8x64xf32> to vector<8x32xf32>
      %288 = arith.index_cast %256 : i32 to index
      %c0_129 = arith.constant 0 : index
      %c0_130 = arith.constant 0 : index
      %289 = vector.load %arg19[%288, %c0_129, %c0_130] : memref<8x8x32xf32, #tpu.memory_space<vmem>>, vector<1x8x32xf32>
      %290 = vector.shape_cast %289 : vector<1x8x32xf32> to vector<8x32xf32>
      %291 = vector.shape_cast %287 : vector<8x32xf32> to vector<1x8x32xf32>
      tpu.vector_store %arg19[%288, %c0_129, %c0_130], %291 {strides = array<i32>} : memref<8x8x32xf32, #tpu.memory_space<vmem>>, vector<1x8x32xf32>,
      %c7_i32_131 = arith.constant 7 : i32
      %c7_i32_132 = arith.constant 7 : i32
      %292 = arith.subi %c7_i32_132, %c7_i32_131 : i32
      %cst_133 = arith.constant dense<0.000000e+00> : vector<8x256xf32>
      %293 = tpu.matmul %281, %1, %cst_133 {dimension_numbers = #tpu.dot_dimension_numbers<[1], [0], [0], [1], [0, 0, 1, 1], [], []>} : vector<8x64xf32>, vector<64x256xf32>, vector<8x256xf32> -> vector<8x256xf32>
      %294 = arith.index_cast %c7_i32_131 : i32 to index
      %c0_134 = arith.constant 0 : index
      %c0_135 = arith.constant 0 : index
      %295 = vector.load %alloca[%294, %c0_134, %c0_135] : memref<8x8x256xf32, #tpu.memory_space<vmem>>, vector<1x8x256xf32>
      %296 = vector.shape_cast %295 : vector<1x8x256xf32> to vector<8x256xf32>
      %297 = arith.addf %293, %296 : vector<8x256xf32>
      %298 = arith.index_cast %292 : i32 to index
      %c0_136 = arith.constant 0 : index
      %c0_137 = arith.constant 0 : index
      %299 = vector.load %alloca_37[%298, %c0_136, %c0_137] : memref<8x8x256xf32, #tpu.memory_space<vmem>>, vector<1x8x256xf32>
      %300 = vector.shape_cast %299 : vector<1x8x256xf32> to vector<8x256xf32>
      %301 = arith.addf %297, %300 : vector<8x256xf32>
      %302 = vector.extract_strided_slice %301 {offsets = [0, 0], sizes = [8, 192], strides = [1, 1]} : vector<8x256xf32> to vector<8x192xf32>
      %303 = arith.negf %302 : vector<8x192xf32>
      %304 = math.exp %303 : vector<8x192xf32>
      %cst_138 = arith.constant 1.000000e+00 : f32
      %305 = vector.broadcast %cst_138 : f32 to vector<8x192xf32>
      %306 = arith.addf %305, %304 : vector<8x192xf32>
      %307 = arith.divf %305, %306 : vector<8x192xf32>
      %308 = vector.extract_strided_slice %301 {offsets = [0, 192], sizes = [8, 64], strides = [1, 1]} : vector<8x256xf32> to vector<8x64xf32>
      %309 = math.tanh %308 : vector<8x64xf32>
      %310 = vector.extract_strided_slice %307 {offsets = [0, 0], sizes = [8, 64], strides = [1, 1]} : vector<8x192xf32> to vector<8x64xf32>
      %311 = vector.extract_strided_slice %307 {offsets = [0, 64], sizes = [8, 64], strides = [1, 1]} : vector<8x192xf32> to vector<8x64xf32>
      %312 = vector.extract_strided_slice %307 {offsets = [0, 128], sizes = [8, 64], strides = [1, 1]} : vector<8x192xf32> to vector<8x64xf32>
      %313 = arith.mulf %311, %279 : vector<8x64xf32>
      %314 = arith.mulf %310, %309 : vector<8x64xf32>
      %315 = arith.addf %313, %314 : vector<8x64xf32>
      %316 = math.tanh %315 : vector<8x64xf32>
      %317 = arith.mulf %312, %316 : vector<8x64xf32>
      %318 = vector.extract_strided_slice %317 {offsets = [0, 0], sizes = [8, 32], strides = [1, 1]} : vector<8x64xf32> to vector<8x32xf32>
      %319 = arith.index_cast %c7_i32_131 : i32 to index
      %c0_139 = arith.constant 0 : index
      %c0_140 = arith.constant 0 : index
      %320 = vector.load %arg18[%319, %c0_139, %c0_140] : memref<8x8x32xf32, #tpu.memory_space<vmem>>, vector<1x8x32xf32>
      %321 = vector.shape_cast %320 : vector<1x8x32xf32> to vector<8x32xf32>
      %322 = vector.shape_cast %318 : vector<8x32xf32> to vector<1x8x32xf32>
      tpu.vector_store %arg18[%319, %c0_139, %c0_140], %322 {strides = array<i32>} : memref<8x8x32xf32, #tpu.memory_space<vmem>>, vector<1x8x32xf32>,
      %323 = vector.extract_strided_slice %317 {offsets = [0, 32], sizes = [8, 32], strides = [1, 1]} : vector<8x64xf32> to vector<8x32xf32>
      %324 = arith.index_cast %292 : i32 to index
      %c0_141 = arith.constant 0 : index
      %c0_142 = arith.constant 0 : index
      %325 = vector.load %arg19[%324, %c0_141, %c0_142] : memref<8x8x32xf32, #tpu.memory_space<vmem>>, vector<1x8x32xf32>
      %326 = vector.shape_cast %325 : vector<1x8x32xf32> to vector<8x32xf32>
      %327 = vector.shape_cast %323 : vector<8x32xf32> to vector<1x8x32xf32>
      tpu.vector_store %arg19[%324, %c0_141, %c0_142], %327 {strides = array<i32>} : memref<8x8x32xf32, #tpu.memory_space<vmem>>, vector<1x8x32xf32>,
      %c8_i32 = arith.constant 8 : i32
      %c0_143 = arith.constant 0 : index
      %c0_144 = arith.constant 0 : index
      %328 = vector.load %arg22[%c0_143, %c0_144] : memref<16x64xf32, #tpu.memory_space<vmem>>, vector<8x64xf32>
      tpu.vector_store %arg22[%c0_143, %c0_144], %317 {strides = array<i32>} : memref<16x64xf32, #tpu.memory_space<vmem>>, vector<8x64xf32>,
      %c0_145 = arith.constant 0 : index
      %c0_146 = arith.constant 0 : index
      %329 = vector.load %arg23[%c0_145, %c0_146] : memref<16x64xf32, #tpu.memory_space<vmem>>, vector<8x64xf32>
      tpu.vector_store %arg23[%c0_145, %c0_146], %315 {strides = array<i32>} : memref<16x64xf32, #tpu.memory_space<vmem>>, vector<8x64xf32>,
      tpu.yield
    }) : () -> ()
    %c0_3 = arith.constant 0 : index
    %c0_4 = arith.constant 0 : index
    %c0_5 = arith.constant 0 : index
    %2 = vector.load %arg18[%c0_3, %c0_4, %c0_5] : memref<8x8x32xf32, #tpu.memory_space<vmem>>, vector<8x8x32xf32>
    %c0_6 = arith.constant 0 : index
    %c0_7 = arith.constant 0 : index
    %c0_8 = arith.constant 0 : index
    %3 = vector.load %arg19[%c0_6, %c0_7, %c0_8] : memref<8x8x32xf32, #tpu.memory_space<vmem>>, vector<8x8x32xf32>
    %4 = tpu.concatenate %2, %3 in 2 : vector<8x8x32xf32>, vector<8x8x32xf32> -> vector<8x8x64xf32>
    %5 = vector.shape_cast %4 : vector<8x8x64xf32> to vector<64x64xf32>
    %c0_9 = arith.constant 0 : index
    %c0_10 = arith.constant 0 : index
    %6 = vector.load %arg8[%c0_9, %c0_10] : memref<64x256xf32, #tpu.memory_space<vmem>>, vector<64x256xf32>
    "tpu.region"() ({
      %alloca = memref.alloca() : memref<8x8x256xf32, #tpu.memory_space<vmem>>
      %alloca_37 = memref.alloca() : memref<8x8x256xf32, #tpu.memory_space<vmem>>
      %c0_38 = arith.constant 0 : index
      %c0_39 = arith.constant 0 : index
      %25 = vector.load %arg6[%c0_38, %c0_39] : memref<64x256xf32, #tpu.memory_space<vmem>>, vector<64x256xf32>
      %cst_40 = arith.constant dense<0.000000e+00> : vector<64x256xf32>
      %26 = tpu.matmul %5, %25, %cst_40 {dimension_numbers = #tpu.dot_dimension_numbers<[1], [0], [0], [1], [0, 0, 1, 1], [], []>} : vector<64x64xf32>, vector<64x256xf32>, vector<64x256xf32> -> vector<64x256xf32>
      %c0_41 = arith.constant 0 : index
      %c0_42 = arith.constant 0 : index
      %27 = vector.load %arg9[%c0_41, %c0_42] : memref<1x256xf32, #tpu.memory_space<vmem>>, vector<1x256xf32>
      %28 = vector.broadcast %27 : vector<1x256xf32> to vector<64x256xf32>
      %29 = arith.addf %26, %28 : vector<64x256xf32>
      %30 = vector.shape_cast %29 : vector<64x256xf32> to vector<8x8x256xf32>
      %c0_43 = arith.constant 0 : index
      %c0_44 = arith.constant 0 : index
      %c0_45 = arith.constant 0 : index
      %31 = vector.load %alloca[%c0_43, %c0_44, %c0_45] : memref<8x8x256xf32, #tpu.memory_space<vmem>>, vector<8x8x256xf32>
      tpu.vector_store %alloca[%c0_43, %c0_44, %c0_45], %30 {strides = array<i32>} : memref<8x8x256xf32, #tpu.memory_space<vmem>>, vector<8x8x256xf32>,
      %c0_46 = arith.constant 0 : index
      %c0_47 = arith.constant 0 : index
      %32 = vector.load %arg7[%c0_46, %c0_47] : memref<64x256xf32, #tpu.memory_space<vmem>>, vector<64x256xf32>
      %cst_48 = arith.constant dense<0.000000e+00> : vector<64x256xf32>
      %33 = tpu.matmul %5, %32, %cst_48 {dimension_numbers = #tpu.dot_dimension_numbers<[1], [0], [0], [1], [0, 0, 1, 1], [], []>} : vector<64x64xf32>, vector<64x256xf32>, vector<64x256xf32> -> vector<64x256xf32>
      %c0_49 = arith.constant 0 : index
      %c0_50 = arith.constant 0 : index
      %34 = vector.load %arg10[%c0_49, %c0_50] : memref<1x256xf32, #tpu.memory_space<vmem>>, vector<1x256xf32>
      %35 = vector.broadcast %34 : vector<1x256xf32> to vector<64x256xf32>
      %36 = arith.addf %33, %35 : vector<64x256xf32>
      %37 = vector.shape_cast %36 : vector<64x256xf32> to vector<8x8x256xf32>
      %c0_51 = arith.constant 0 : index
      %c0_52 = arith.constant 0 : index
      %c0_53 = arith.constant 0 : index
      %38 = vector.load %alloca_37[%c0_51, %c0_52, %c0_53] : memref<8x8x256xf32, #tpu.memory_space<vmem>>, vector<8x8x256xf32>
      tpu.vector_store %alloca_37[%c0_51, %c0_52, %c0_53], %37 {strides = array<i32>} : memref<8x8x256xf32, #tpu.memory_space<vmem>>, vector<8x8x256xf32>,
      %cst_54 = arith.constant 0.000000e+00 : f32
      %39 = vector.broadcast %cst_54 : f32 to vector<8x64xf32>
      %c0_i32 = arith.constant 0 : i32
      %c7_i32 = arith.constant 7 : i32
      %40 = arith.subi %c7_i32, %c0_i32 : i32
      %cst_55 = arith.constant dense<0.000000e+00> : vector<8x256xf32>
      %41 = tpu.matmul %39, %6, %cst_55 {dimension_numbers = #tpu.dot_dimension_numbers<[1], [0], [0], [1], [0, 0, 1, 1], [], []>} : vector<8x64xf32>, vector<64x256xf32>, vector<8x256xf32> -> vector<8x256xf32>
      %42 = arith.index_cast %c0_i32 : i32 to index
      %c0_56 = arith.constant 0 : index
      %c0_57 = arith.constant 0 : index
      %43 = vector.load %alloca[%42, %c0_56, %c0_57] : memref<8x8x256xf32, #tpu.memory_space<vmem>>, vector<1x8x256xf32>
      %44 = vector.shape_cast %43 : vector<1x8x256xf32> to vector<8x256xf32>
      %45 = arith.addf %41, %44 : vector<8x256xf32>
      %46 = arith.index_cast %40 : i32 to index
      %c0_58 = arith.constant 0 : index
      %c0_59 = arith.constant 0 : index
      %47 = vector.load %alloca_37[%46, %c0_58, %c0_59] : memref<8x8x256xf32, #tpu.memory_space<vmem>>, vector<1x8x256xf32>
      %48 = vector.shape_cast %47 : vector<1x8x256xf32> to vector<8x256xf32>
      %49 = arith.addf %45, %48 : vector<8x256xf32>
      %50 = vector.extract_strided_slice %49 {offsets = [0, 0], sizes = [8, 192], strides = [1, 1]} : vector<8x256xf32> to vector<8x192xf32>
      %51 = arith.negf %50 : vector<8x192xf32>
      %52 = math.exp %51 : vector<8x192xf32>
      %cst_60 = arith.constant 1.000000e+00 : f32
      %53 = vector.broadcast %cst_60 : f32 to vector<8x192xf32>
      %54 = arith.addf %53, %52 : vector<8x192xf32>
      %55 = arith.divf %53, %54 : vector<8x192xf32>
      %56 = vector.extract_strided_slice %49 {offsets = [0, 192], sizes = [8, 64], strides = [1, 1]} : vector<8x256xf32> to vector<8x64xf32>
      %57 = math.tanh %56 : vector<8x64xf32>
      %58 = vector.extract_strided_slice %55 {offsets = [0, 0], sizes = [8, 64], strides = [1, 1]} : vector<8x192xf32> to vector<8x64xf32>
      %59 = vector.extract_strided_slice %55 {offsets = [0, 64], sizes = [8, 64], strides = [1, 1]} : vector<8x192xf32> to vector<8x64xf32>
      %60 = vector.extract_strided_slice %55 {offsets = [0, 128], sizes = [8, 64], strides = [1, 1]} : vector<8x192xf32> to vector<8x64xf32>
      %61 = arith.mulf %59, %39 : vector<8x64xf32>
      %62 = arith.mulf %58, %57 : vector<8x64xf32>
      %63 = arith.addf %61, %62 : vector<8x64xf32>
      %64 = math.tanh %63 : vector<8x64xf32>
      %65 = arith.mulf %60, %64 : vector<8x64xf32>
      %66 = vector.extract_strided_slice %65 {offsets = [0, 0], sizes = [8, 32], strides = [1, 1]} : vector<8x64xf32> to vector<8x32xf32>
      %67 = arith.index_cast %c0_i32 : i32 to index
      %c0_61 = arith.constant 0 : index
      %c0_62 = arith.constant 0 : index
      %68 = vector.load %arg20[%67, %c0_61, %c0_62] : memref<8x8x32xf32, #tpu.memory_space<vmem>>, vector<1x8x32xf32>
      %69 = vector.shape_cast %68 : vector<1x8x32xf32> to vector<8x32xf32>
      %70 = vector.shape_cast %66 : vector<8x32xf32> to vector<1x8x32xf32>
      tpu.vector_store %arg20[%67, %c0_61, %c0_62], %70 {strides = array<i32>} : memref<8x8x32xf32, #tpu.memory_space<vmem>>, vector<1x8x32xf32>,
      %71 = vector.extract_strided_slice %65 {offsets = [0, 32], sizes = [8, 32], strides = [1, 1]} : vector<8x64xf32> to vector<8x32xf32>
      %72 = arith.index_cast %40 : i32 to index
      %c0_63 = arith.constant 0 : index
      %c0_64 = arith.constant 0 : index
      %73 = vector.load %arg21[%72, %c0_63, %c0_64] : memref<8x8x32xf32, #tpu.memory_space<vmem>>, vector<1x8x32xf32>
      %74 = vector.shape_cast %73 : vector<1x8x32xf32> to vector<8x32xf32>
      %75 = vector.shape_cast %71 : vector<8x32xf32> to vector<1x8x32xf32>
      tpu.vector_store %arg21[%72, %c0_63, %c0_64], %75 {strides = array<i32>} : memref<8x8x32xf32, #tpu.memory_space<vmem>>, vector<1x8x32xf32>,
      %c1_i32 = arith.constant 1 : i32
      %c7_i32_65 = arith.constant 7 : i32
      %76 = arith.subi %c7_i32_65, %c1_i32 : i32
      %cst_66 = arith.constant dense<0.000000e+00> : vector<8x256xf32>
      %77 = tpu.matmul %65, %6, %cst_66 {dimension_numbers = #tpu.dot_dimension_numbers<[1], [0], [0], [1], [0, 0, 1, 1], [], []>} : vector<8x64xf32>, vector<64x256xf32>, vector<8x256xf32> -> vector<8x256xf32>
      %78 = arith.index_cast %c1_i32 : i32 to index
      %c0_67 = arith.constant 0 : index
      %c0_68 = arith.constant 0 : index
      %79 = vector.load %alloca[%78, %c0_67, %c0_68] : memref<8x8x256xf32, #tpu.memory_space<vmem>>, vector<1x8x256xf32>
      %80 = vector.shape_cast %79 : vector<1x8x256xf32> to vector<8x256xf32>
      %81 = arith.addf %77, %80 : vector<8x256xf32>
      %82 = arith.index_cast %76 : i32 to index
      %c0_69 = arith.constant 0 : index
      %c0_70 = arith.constant 0 : index
      %83 = vector.load %alloca_37[%82, %c0_69, %c0_70] : memref<8x8x256xf32, #tpu.memory_space<vmem>>, vector<1x8x256xf32>
      %84 = vector.shape_cast %83 : vector<1x8x256xf32> to vector<8x256xf32>
      %85 = arith.addf %81, %84 : vector<8x256xf32>
      %86 = vector.extract_strided_slice %85 {offsets = [0, 0], sizes = [8, 192], strides = [1, 1]} : vector<8x256xf32> to vector<8x192xf32>
      %87 = arith.negf %86 : vector<8x192xf32>
      %88 = math.exp %87 : vector<8x192xf32>
      %cst_71 = arith.constant 1.000000e+00 : f32
      %89 = vector.broadcast %cst_71 : f32 to vector<8x192xf32>
      %90 = arith.addf %89, %88 : vector<8x192xf32>
      %91 = arith.divf %89, %90 : vector<8x192xf32>
      %92 = vector.extract_strided_slice %85 {offsets = [0, 192], sizes = [8, 64], strides = [1, 1]} : vector<8x256xf32> to vector<8x64xf32>
      %93 = math.tanh %92 : vector<8x64xf32>
      %94 = vector.extract_strided_slice %91 {offsets = [0, 0], sizes = [8, 64], strides = [1, 1]} : vector<8x192xf32> to vector<8x64xf32>
      %95 = vector.extract_strided_slice %91 {offsets = [0, 64], sizes = [8, 64], strides = [1, 1]} : vector<8x192xf32> to vector<8x64xf32>
      %96 = vector.extract_strided_slice %91 {offsets = [0, 128], sizes = [8, 64], strides = [1, 1]} : vector<8x192xf32> to vector<8x64xf32>
      %97 = arith.mulf %95, %63 : vector<8x64xf32>
      %98 = arith.mulf %94, %93 : vector<8x64xf32>
      %99 = arith.addf %97, %98 : vector<8x64xf32>
      %100 = math.tanh %99 : vector<8x64xf32>
      %101 = arith.mulf %96, %100 : vector<8x64xf32>
      %102 = vector.extract_strided_slice %101 {offsets = [0, 0], sizes = [8, 32], strides = [1, 1]} : vector<8x64xf32> to vector<8x32xf32>
      %103 = arith.index_cast %c1_i32 : i32 to index
      %c0_72 = arith.constant 0 : index
      %c0_73 = arith.constant 0 : index
      %104 = vector.load %arg20[%103, %c0_72, %c0_73] : memref<8x8x32xf32, #tpu.memory_space<vmem>>, vector<1x8x32xf32>
      %105 = vector.shape_cast %104 : vector<1x8x32xf32> to vector<8x32xf32>
      %106 = vector.shape_cast %102 : vector<8x32xf32> to vector<1x8x32xf32>
      tpu.vector_store %arg20[%103, %c0_72, %c0_73], %106 {strides = array<i32>} : memref<8x8x32xf32, #tpu.memory_space<vmem>>, vector<1x8x32xf32>,
      %107 = vector.extract_strided_slice %101 {offsets = [0, 32], sizes = [8, 32], strides = [1, 1]} : vector<8x64xf32> to vector<8x32xf32>
      %108 = arith.index_cast %76 : i32 to index
      %c0_74 = arith.constant 0 : index
      %c0_75 = arith.constant 0 : index
      %109 = vector.load %arg21[%108, %c0_74, %c0_75] : memref<8x8x32xf32, #tpu.memory_space<vmem>>, vector<1x8x32xf32>
      %110 = vector.shape_cast %109 : vector<1x8x32xf32> to vector<8x32xf32>
      %111 = vector.shape_cast %107 : vector<8x32xf32> to vector<1x8x32xf32>
      tpu.vector_store %arg21[%108, %c0_74, %c0_75], %111 {strides = array<i32>} : memref<8x8x32xf32, #tpu.memory_space<vmem>>, vector<1x8x32xf32>,
      %c2_i32 = arith.constant 2 : i32
      %c7_i32_76 = arith.constant 7 : i32
      %112 = arith.subi %c7_i32_76, %c2_i32 : i32
      %cst_77 = arith.constant dense<0.000000e+00> : vector<8x256xf32>
      %113 = tpu.matmul %101, %6, %cst_77 {dimension_numbers = #tpu.dot_dimension_numbers<[1], [0], [0], [1], [0, 0, 1, 1], [], []>} : vector<8x64xf32>, vector<64x256xf32>, vector<8x256xf32> -> vector<8x256xf32>
      %114 = arith.index_cast %c2_i32 : i32 to index
      %c0_78 = arith.constant 0 : index
      %c0_79 = arith.constant 0 : index
      %115 = vector.load %alloca[%114, %c0_78, %c0_79] : memref<8x8x256xf32, #tpu.memory_space<vmem>>, vector<1x8x256xf32>
      %116 = vector.shape_cast %115 : vector<1x8x256xf32> to vector<8x256xf32>
      %117 = arith.addf %113, %116 : vector<8x256xf32>
      %118 = arith.index_cast %112 : i32 to index
      %c0_80 = arith.constant 0 : index
      %c0_81 = arith.constant 0 : index
      %119 = vector.load %alloca_37[%118, %c0_80, %c0_81] : memref<8x8x256xf32, #tpu.memory_space<vmem>>, vector<1x8x256xf32>
      %120 = vector.shape_cast %119 : vector<1x8x256xf32> to vector<8x256xf32>
      %121 = arith.addf %117, %120 : vector<8x256xf32>
      %122 = vector.extract_strided_slice %121 {offsets = [0, 0], sizes = [8, 192], strides = [1, 1]} : vector<8x256xf32> to vector<8x192xf32>
      %123 = arith.negf %122 : vector<8x192xf32>
      %124 = math.exp %123 : vector<8x192xf32>
      %cst_82 = arith.constant 1.000000e+00 : f32
      %125 = vector.broadcast %cst_82 : f32 to vector<8x192xf32>
      %126 = arith.addf %125, %124 : vector<8x192xf32>
      %127 = arith.divf %125, %126 : vector<8x192xf32>
      %128 = vector.extract_strided_slice %121 {offsets = [0, 192], sizes = [8, 64], strides = [1, 1]} : vector<8x256xf32> to vector<8x64xf32>
      %129 = math.tanh %128 : vector<8x64xf32>
      %130 = vector.extract_strided_slice %127 {offsets = [0, 0], sizes = [8, 64], strides = [1, 1]} : vector<8x192xf32> to vector<8x64xf32>
      %131 = vector.extract_strided_slice %127 {offsets = [0, 64], sizes = [8, 64], strides = [1, 1]} : vector<8x192xf32> to vector<8x64xf32>
      %132 = vector.extract_strided_slice %127 {offsets = [0, 128], sizes = [8, 64], strides = [1, 1]} : vector<8x192xf32> to vector<8x64xf32>
      %133 = arith.mulf %131, %99 : vector<8x64xf32>
      %134 = arith.mulf %130, %129 : vector<8x64xf32>
      %135 = arith.addf %133, %134 : vector<8x64xf32>
      %136 = math.tanh %135 : vector<8x64xf32>
      %137 = arith.mulf %132, %136 : vector<8x64xf32>
      %138 = vector.extract_strided_slice %137 {offsets = [0, 0], sizes = [8, 32], strides = [1, 1]} : vector<8x64xf32> to vector<8x32xf32>
      %139 = arith.index_cast %c2_i32 : i32 to index
      %c0_83 = arith.constant 0 : index
      %c0_84 = arith.constant 0 : index
      %140 = vector.load %arg20[%139, %c0_83, %c0_84] : memref<8x8x32xf32, #tpu.memory_space<vmem>>, vector<1x8x32xf32>
      %141 = vector.shape_cast %140 : vector<1x8x32xf32> to vector<8x32xf32>
      %142 = vector.shape_cast %138 : vector<8x32xf32> to vector<1x8x32xf32>
      tpu.vector_store %arg20[%139, %c0_83, %c0_84], %142 {strides = array<i32>} : memref<8x8x32xf32, #tpu.memory_space<vmem>>, vector<1x8x32xf32>,
      %143 = vector.extract_strided_slice %137 {offsets = [0, 32], sizes = [8, 32], strides = [1, 1]} : vector<8x64xf32> to vector<8x32xf32>
      %144 = arith.index_cast %112 : i32 to index
      %c0_85 = arith.constant 0 : index
      %c0_86 = arith.constant 0 : index
      %145 = vector.load %arg21[%144, %c0_85, %c0_86] : memref<8x8x32xf32, #tpu.memory_space<vmem>>, vector<1x8x32xf32>
      %146 = vector.shape_cast %145 : vector<1x8x32xf32> to vector<8x32xf32>
      %147 = vector.shape_cast %143 : vector<8x32xf32> to vector<1x8x32xf32>
      tpu.vector_store %arg21[%144, %c0_85, %c0_86], %147 {strides = array<i32>} : memref<8x8x32xf32, #tpu.memory_space<vmem>>, vector<1x8x32xf32>,
      %c3_i32 = arith.constant 3 : i32
      %c7_i32_87 = arith.constant 7 : i32
      %148 = arith.subi %c7_i32_87, %c3_i32 : i32
      %cst_88 = arith.constant dense<0.000000e+00> : vector<8x256xf32>
      %149 = tpu.matmul %137, %6, %cst_88 {dimension_numbers = #tpu.dot_dimension_numbers<[1], [0], [0], [1], [0, 0, 1, 1], [], []>} : vector<8x64xf32>, vector<64x256xf32>, vector<8x256xf32> -> vector<8x256xf32>
      %150 = arith.index_cast %c3_i32 : i32 to index
      %c0_89 = arith.constant 0 : index
      %c0_90 = arith.constant 0 : index
      %151 = vector.load %alloca[%150, %c0_89, %c0_90] : memref<8x8x256xf32, #tpu.memory_space<vmem>>, vector<1x8x256xf32>
      %152 = vector.shape_cast %151 : vector<1x8x256xf32> to vector<8x256xf32>
      %153 = arith.addf %149, %152 : vector<8x256xf32>
      %154 = arith.index_cast %148 : i32 to index
      %c0_91 = arith.constant 0 : index
      %c0_92 = arith.constant 0 : index
      %155 = vector.load %alloca_37[%154, %c0_91, %c0_92] : memref<8x8x256xf32, #tpu.memory_space<vmem>>, vector<1x8x256xf32>
      %156 = vector.shape_cast %155 : vector<1x8x256xf32> to vector<8x256xf32>
      %157 = arith.addf %153, %156 : vector<8x256xf32>
      %158 = vector.extract_strided_slice %157 {offsets = [0, 0], sizes = [8, 192], strides = [1, 1]} : vector<8x256xf32> to vector<8x192xf32>
      %159 = arith.negf %158 : vector<8x192xf32>
      %160 = math.exp %159 : vector<8x192xf32>
      %cst_93 = arith.constant 1.000000e+00 : f32
      %161 = vector.broadcast %cst_93 : f32 to vector<8x192xf32>
      %162 = arith.addf %161, %160 : vector<8x192xf32>
      %163 = arith.divf %161, %162 : vector<8x192xf32>
      %164 = vector.extract_strided_slice %157 {offsets = [0, 192], sizes = [8, 64], strides = [1, 1]} : vector<8x256xf32> to vector<8x64xf32>
      %165 = math.tanh %164 : vector<8x64xf32>
      %166 = vector.extract_strided_slice %163 {offsets = [0, 0], sizes = [8, 64], strides = [1, 1]} : vector<8x192xf32> to vector<8x64xf32>
      %167 = vector.extract_strided_slice %163 {offsets = [0, 64], sizes = [8, 64], strides = [1, 1]} : vector<8x192xf32> to vector<8x64xf32>
      %168 = vector.extract_strided_slice %163 {offsets = [0, 128], sizes = [8, 64], strides = [1, 1]} : vector<8x192xf32> to vector<8x64xf32>
      %169 = arith.mulf %167, %135 : vector<8x64xf32>
      %170 = arith.mulf %166, %165 : vector<8x64xf32>
      %171 = arith.addf %169, %170 : vector<8x64xf32>
      %172 = math.tanh %171 : vector<8x64xf32>
      %173 = arith.mulf %168, %172 : vector<8x64xf32>
      %174 = vector.extract_strided_slice %173 {offsets = [0, 0], sizes = [8, 32], strides = [1, 1]} : vector<8x64xf32> to vector<8x32xf32>
      %175 = arith.index_cast %c3_i32 : i32 to index
      %c0_94 = arith.constant 0 : index
      %c0_95 = arith.constant 0 : index
      %176 = vector.load %arg20[%175, %c0_94, %c0_95] : memref<8x8x32xf32, #tpu.memory_space<vmem>>, vector<1x8x32xf32>
      %177 = vector.shape_cast %176 : vector<1x8x32xf32> to vector<8x32xf32>
      %178 = vector.shape_cast %174 : vector<8x32xf32> to vector<1x8x32xf32>
      tpu.vector_store %arg20[%175, %c0_94, %c0_95], %178 {strides = array<i32>} : memref<8x8x32xf32, #tpu.memory_space<vmem>>, vector<1x8x32xf32>,
      %179 = vector.extract_strided_slice %173 {offsets = [0, 32], sizes = [8, 32], strides = [1, 1]} : vector<8x64xf32> to vector<8x32xf32>
      %180 = arith.index_cast %148 : i32 to index
      %c0_96 = arith.constant 0 : index
      %c0_97 = arith.constant 0 : index
      %181 = vector.load %arg21[%180, %c0_96, %c0_97] : memref<8x8x32xf32, #tpu.memory_space<vmem>>, vector<1x8x32xf32>
      %182 = vector.shape_cast %181 : vector<1x8x32xf32> to vector<8x32xf32>
      %183 = vector.shape_cast %179 : vector<8x32xf32> to vector<1x8x32xf32>
      tpu.vector_store %arg21[%180, %c0_96, %c0_97], %183 {strides = array<i32>} : memref<8x8x32xf32, #tpu.memory_space<vmem>>, vector<1x8x32xf32>,
      %c4_i32 = arith.constant 4 : i32
      %c7_i32_98 = arith.constant 7 : i32
      %184 = arith.subi %c7_i32_98, %c4_i32 : i32
      %cst_99 = arith.constant dense<0.000000e+00> : vector<8x256xf32>
      %185 = tpu.matmul %173, %6, %cst_99 {dimension_numbers = #tpu.dot_dimension_numbers<[1], [0], [0], [1], [0, 0, 1, 1], [], []>} : vector<8x64xf32>, vector<64x256xf32>, vector<8x256xf32> -> vector<8x256xf32>
      %186 = arith.index_cast %c4_i32 : i32 to index
      %c0_100 = arith.constant 0 : index
      %c0_101 = arith.constant 0 : index
      %187 = vector.load %alloca[%186, %c0_100, %c0_101] : memref<8x8x256xf32, #tpu.memory_space<vmem>>, vector<1x8x256xf32>
      %188 = vector.shape_cast %187 : vector<1x8x256xf32> to vector<8x256xf32>
      %189 = arith.addf %185, %188 : vector<8x256xf32>
      %190 = arith.index_cast %184 : i32 to index
      %c0_102 = arith.constant 0 : index
      %c0_103 = arith.constant 0 : index
      %191 = vector.load %alloca_37[%190, %c0_102, %c0_103] : memref<8x8x256xf32, #tpu.memory_space<vmem>>, vector<1x8x256xf32>
      %192 = vector.shape_cast %191 : vector<1x8x256xf32> to vector<8x256xf32>
      %193 = arith.addf %189, %192 : vector<8x256xf32>
      %194 = vector.extract_strided_slice %193 {offsets = [0, 0], sizes = [8, 192], strides = [1, 1]} : vector<8x256xf32> to vector<8x192xf32>
      %195 = arith.negf %194 : vector<8x192xf32>
      %196 = math.exp %195 : vector<8x192xf32>
      %cst_104 = arith.constant 1.000000e+00 : f32
      %197 = vector.broadcast %cst_104 : f32 to vector<8x192xf32>
      %198 = arith.addf %197, %196 : vector<8x192xf32>
      %199 = arith.divf %197, %198 : vector<8x192xf32>
      %200 = vector.extract_strided_slice %193 {offsets = [0, 192], sizes = [8, 64], strides = [1, 1]} : vector<8x256xf32> to vector<8x64xf32>
      %201 = math.tanh %200 : vector<8x64xf32>
      %202 = vector.extract_strided_slice %199 {offsets = [0, 0], sizes = [8, 64], strides = [1, 1]} : vector<8x192xf32> to vector<8x64xf32>
      %203 = vector.extract_strided_slice %199 {offsets = [0, 64], sizes = [8, 64], strides = [1, 1]} : vector<8x192xf32> to vector<8x64xf32>
      %204 = vector.extract_strided_slice %199 {offsets = [0, 128], sizes = [8, 64], strides = [1, 1]} : vector<8x192xf32> to vector<8x64xf32>
      %205 = arith.mulf %203, %171 : vector<8x64xf32>
      %206 = arith.mulf %202, %201 : vector<8x64xf32>
      %207 = arith.addf %205, %206 : vector<8x64xf32>
      %208 = math.tanh %207 : vector<8x64xf32>
      %209 = arith.mulf %204, %208 : vector<8x64xf32>
      %210 = vector.extract_strided_slice %209 {offsets = [0, 0], sizes = [8, 32], strides = [1, 1]} : vector<8x64xf32> to vector<8x32xf32>
      %211 = arith.index_cast %c4_i32 : i32 to index
      %c0_105 = arith.constant 0 : index
      %c0_106 = arith.constant 0 : index
      %212 = vector.load %arg20[%211, %c0_105, %c0_106] : memref<8x8x32xf32, #tpu.memory_space<vmem>>, vector<1x8x32xf32>
      %213 = vector.shape_cast %212 : vector<1x8x32xf32> to vector<8x32xf32>
      %214 = vector.shape_cast %210 : vector<8x32xf32> to vector<1x8x32xf32>
      tpu.vector_store %arg20[%211, %c0_105, %c0_106], %214 {strides = array<i32>} : memref<8x8x32xf32, #tpu.memory_space<vmem>>, vector<1x8x32xf32>,
      %215 = vector.extract_strided_slice %209 {offsets = [0, 32], sizes = [8, 32], strides = [1, 1]} : vector<8x64xf32> to vector<8x32xf32>
      %216 = arith.index_cast %184 : i32 to index
      %c0_107 = arith.constant 0 : index
      %c0_108 = arith.constant 0 : index
      %217 = vector.load %arg21[%216, %c0_107, %c0_108] : memref<8x8x32xf32, #tpu.memory_space<vmem>>, vector<1x8x32xf32>
      %218 = vector.shape_cast %217 : vector<1x8x32xf32> to vector<8x32xf32>
      %219 = vector.shape_cast %215 : vector<8x32xf32> to vector<1x8x32xf32>
      tpu.vector_store %arg21[%216, %c0_107, %c0_108], %219 {strides = array<i32>} : memref<8x8x32xf32, #tpu.memory_space<vmem>>, vector<1x8x32xf32>,
      %c5_i32 = arith.constant 5 : i32
      %c7_i32_109 = arith.constant 7 : i32
      %220 = arith.subi %c7_i32_109, %c5_i32 : i32
      %cst_110 = arith.constant dense<0.000000e+00> : vector<8x256xf32>
      %221 = tpu.matmul %209, %6, %cst_110 {dimension_numbers = #tpu.dot_dimension_numbers<[1], [0], [0], [1], [0, 0, 1, 1], [], []>} : vector<8x64xf32>, vector<64x256xf32>, vector<8x256xf32> -> vector<8x256xf32>
      %222 = arith.index_cast %c5_i32 : i32 to index
      %c0_111 = arith.constant 0 : index
      %c0_112 = arith.constant 0 : index
      %223 = vector.load %alloca[%222, %c0_111, %c0_112] : memref<8x8x256xf32, #tpu.memory_space<vmem>>, vector<1x8x256xf32>
      %224 = vector.shape_cast %223 : vector<1x8x256xf32> to vector<8x256xf32>
      %225 = arith.addf %221, %224 : vector<8x256xf32>
      %226 = arith.index_cast %220 : i32 to index
      %c0_113 = arith.constant 0 : index
      %c0_114 = arith.constant 0 : index
      %227 = vector.load %alloca_37[%226, %c0_113, %c0_114] : memref<8x8x256xf32, #tpu.memory_space<vmem>>, vector<1x8x256xf32>
      %228 = vector.shape_cast %227 : vector<1x8x256xf32> to vector<8x256xf32>
      %229 = arith.addf %225, %228 : vector<8x256xf32>
      %230 = vector.extract_strided_slice %229 {offsets = [0, 0], sizes = [8, 192], strides = [1, 1]} : vector<8x256xf32> to vector<8x192xf32>
      %231 = arith.negf %230 : vector<8x192xf32>
      %232 = math.exp %231 : vector<8x192xf32>
      %cst_115 = arith.constant 1.000000e+00 : f32
      %233 = vector.broadcast %cst_115 : f32 to vector<8x192xf32>
      %234 = arith.addf %233, %232 : vector<8x192xf32>
      %235 = arith.divf %233, %234 : vector<8x192xf32>
      %236 = vector.extract_strided_slice %229 {offsets = [0, 192], sizes = [8, 64], strides = [1, 1]} : vector<8x256xf32> to vector<8x64xf32>
      %237 = math.tanh %236 : vector<8x64xf32>
      %238 = vector.extract_strided_slice %235 {offsets = [0, 0], sizes = [8, 64], strides = [1, 1]} : vector<8x192xf32> to vector<8x64xf32>
      %239 = vector.extract_strided_slice %235 {offsets = [0, 64], sizes = [8, 64], strides = [1, 1]} : vector<8x192xf32> to vector<8x64xf32>
      %240 = vector.extract_strided_slice %235 {offsets = [0, 128], sizes = [8, 64], strides = [1, 1]} : vector<8x192xf32> to vector<8x64xf32>
      %241 = arith.mulf %239, %207 : vector<8x64xf32>
      %242 = arith.mulf %238, %237 : vector<8x64xf32>
      %243 = arith.addf %241, %242 : vector<8x64xf32>
      %244 = math.tanh %243 : vector<8x64xf32>
      %245 = arith.mulf %240, %244 : vector<8x64xf32>
      %246 = vector.extract_strided_slice %245 {offsets = [0, 0], sizes = [8, 32], strides = [1, 1]} : vector<8x64xf32> to vector<8x32xf32>
      %247 = arith.index_cast %c5_i32 : i32 to index
      %c0_116 = arith.constant 0 : index
      %c0_117 = arith.constant 0 : index
      %248 = vector.load %arg20[%247, %c0_116, %c0_117] : memref<8x8x32xf32, #tpu.memory_space<vmem>>, vector<1x8x32xf32>
      %249 = vector.shape_cast %248 : vector<1x8x32xf32> to vector<8x32xf32>
      %250 = vector.shape_cast %246 : vector<8x32xf32> to vector<1x8x32xf32>
      tpu.vector_store %arg20[%247, %c0_116, %c0_117], %250 {strides = array<i32>} : memref<8x8x32xf32, #tpu.memory_space<vmem>>, vector<1x8x32xf32>,
      %251 = vector.extract_strided_slice %245 {offsets = [0, 32], sizes = [8, 32], strides = [1, 1]} : vector<8x64xf32> to vector<8x32xf32>
      %252 = arith.index_cast %220 : i32 to index
      %c0_118 = arith.constant 0 : index
      %c0_119 = arith.constant 0 : index
      %253 = vector.load %arg21[%252, %c0_118, %c0_119] : memref<8x8x32xf32, #tpu.memory_space<vmem>>, vector<1x8x32xf32>
      %254 = vector.shape_cast %253 : vector<1x8x32xf32> to vector<8x32xf32>
      %255 = vector.shape_cast %251 : vector<8x32xf32> to vector<1x8x32xf32>
      tpu.vector_store %arg21[%252, %c0_118, %c0_119], %255 {strides = array<i32>} : memref<8x8x32xf32, #tpu.memory_space<vmem>>, vector<1x8x32xf32>,
      %c6_i32 = arith.constant 6 : i32
      %c7_i32_120 = arith.constant 7 : i32
      %256 = arith.subi %c7_i32_120, %c6_i32 : i32
      %cst_121 = arith.constant dense<0.000000e+00> : vector<8x256xf32>
      %257 = tpu.matmul %245, %6, %cst_121 {dimension_numbers = #tpu.dot_dimension_numbers<[1], [0], [0], [1], [0, 0, 1, 1], [], []>} : vector<8x64xf32>, vector<64x256xf32>, vector<8x256xf32> -> vector<8x256xf32>
      %258 = arith.index_cast %c6_i32 : i32 to index
      %c0_122 = arith.constant 0 : index
      %c0_123 = arith.constant 0 : index
      %259 = vector.load %alloca[%258, %c0_122, %c0_123] : memref<8x8x256xf32, #tpu.memory_space<vmem>>, vector<1x8x256xf32>
      %260 = vector.shape_cast %259 : vector<1x8x256xf32> to vector<8x256xf32>
      %261 = arith.addf %257, %260 : vector<8x256xf32>
      %262 = arith.index_cast %256 : i32 to index
      %c0_124 = arith.constant 0 : index
      %c0_125 = arith.constant 0 : index
      %263 = vector.load %alloca_37[%262, %c0_124, %c0_125] : memref<8x8x256xf32, #tpu.memory_space<vmem>>, vector<1x8x256xf32>
      %264 = vector.shape_cast %263 : vector<1x8x256xf32> to vector<8x256xf32>
      %265 = arith.addf %261, %264 : vector<8x256xf32>
      %266 = vector.extract_strided_slice %265 {offsets = [0, 0], sizes = [8, 192], strides = [1, 1]} : vector<8x256xf32> to vector<8x192xf32>
      %267 = arith.negf %266 : vector<8x192xf32>
      %268 = math.exp %267 : vector<8x192xf32>
      %cst_126 = arith.constant 1.000000e+00 : f32
      %269 = vector.broadcast %cst_126 : f32 to vector<8x192xf32>
      %270 = arith.addf %269, %268 : vector<8x192xf32>
      %271 = arith.divf %269, %270 : vector<8x192xf32>
      %272 = vector.extract_strided_slice %265 {offsets = [0, 192], sizes = [8, 64], strides = [1, 1]} : vector<8x256xf32> to vector<8x64xf32>
      %273 = math.tanh %272 : vector<8x64xf32>
      %274 = vector.extract_strided_slice %271 {offsets = [0, 0], sizes = [8, 64], strides = [1, 1]} : vector<8x192xf32> to vector<8x64xf32>
      %275 = vector.extract_strided_slice %271 {offsets = [0, 64], sizes = [8, 64], strides = [1, 1]} : vector<8x192xf32> to vector<8x64xf32>
      %276 = vector.extract_strided_slice %271 {offsets = [0, 128], sizes = [8, 64], strides = [1, 1]} : vector<8x192xf32> to vector<8x64xf32>
      %277 = arith.mulf %275, %243 : vector<8x64xf32>
      %278 = arith.mulf %274, %273 : vector<8x64xf32>
      %279 = arith.addf %277, %278 : vector<8x64xf32>
      %280 = math.tanh %279 : vector<8x64xf32>
      %281 = arith.mulf %276, %280 : vector<8x64xf32>
      %282 = vector.extract_strided_slice %281 {offsets = [0, 0], sizes = [8, 32], strides = [1, 1]} : vector<8x64xf32> to vector<8x32xf32>
      %283 = arith.index_cast %c6_i32 : i32 to index
      %c0_127 = arith.constant 0 : index
      %c0_128 = arith.constant 0 : index
      %284 = vector.load %arg20[%283, %c0_127, %c0_128] : memref<8x8x32xf32, #tpu.memory_space<vmem>>, vector<1x8x32xf32>
      %285 = vector.shape_cast %284 : vector<1x8x32xf32> to vector<8x32xf32>
      %286 = vector.shape_cast %282 : vector<8x32xf32> to vector<1x8x32xf32>
      tpu.vector_store %arg20[%283, %c0_127, %c0_128], %286 {strides = array<i32>} : memref<8x8x32xf32, #tpu.memory_space<vmem>>, vector<1x8x32xf32>,
      %287 = vector.extract_strided_slice %281 {offsets = [0, 32], sizes = [8, 32], strides = [1, 1]} : vector<8x64xf32> to vector<8x32xf32>
      %288 = arith.index_cast %256 : i32 to index
      %c0_129 = arith.constant 0 : index
      %c0_130 = arith.constant 0 : index
      %289 = vector.load %arg21[%288, %c0_129, %c0_130] : memref<8x8x32xf32, #tpu.memory_space<vmem>>, vector<1x8x32xf32>
      %290 = vector.shape_cast %289 : vector<1x8x32xf32> to vector<8x32xf32>
      %291 = vector.shape_cast %287 : vector<8x32xf32> to vector<1x8x32xf32>
      tpu.vector_store %arg21[%288, %c0_129, %c0_130], %291 {strides = array<i32>} : memref<8x8x32xf32, #tpu.memory_space<vmem>>, vector<1x8x32xf32>,
      %c7_i32_131 = arith.constant 7 : i32
      %c7_i32_132 = arith.constant 7 : i32
      %292 = arith.subi %c7_i32_132, %c7_i32_131 : i32
      %cst_133 = arith.constant dense<0.000000e+00> : vector<8x256xf32>
      %293 = tpu.matmul %281, %6, %cst_133 {dimension_numbers = #tpu.dot_dimension_numbers<[1], [0], [0], [1], [0, 0, 1, 1], [], []>} : vector<8x64xf32>, vector<64x256xf32>, vector<8x256xf32> -> vector<8x256xf32>
      %294 = arith.index_cast %c7_i32_131 : i32 to index
      %c0_134 = arith.constant 0 : index
      %c0_135 = arith.constant 0 : index
      %295 = vector.load %alloca[%294, %c0_134, %c0_135] : memref<8x8x256xf32, #tpu.memory_space<vmem>>, vector<1x8x256xf32>
      %296 = vector.shape_cast %295 : vector<1x8x256xf32> to vector<8x256xf32>
      %297 = arith.addf %293, %296 : vector<8x256xf32>
      %298 = arith.index_cast %292 : i32 to index
      %c0_136 = arith.constant 0 : index
      %c0_137 = arith.constant 0 : index
      %299 = vector.load %alloca_37[%298, %c0_136, %c0_137] : memref<8x8x256xf32, #tpu.memory_space<vmem>>, vector<1x8x256xf32>
      %300 = vector.shape_cast %299 : vector<1x8x256xf32> to vector<8x256xf32>
      %301 = arith.addf %297, %300 : vector<8x256xf32>
      %302 = vector.extract_strided_slice %301 {offsets = [0, 0], sizes = [8, 192], strides = [1, 1]} : vector<8x256xf32> to vector<8x192xf32>
      %303 = arith.negf %302 : vector<8x192xf32>
      %304 = math.exp %303 : vector<8x192xf32>
      %cst_138 = arith.constant 1.000000e+00 : f32
      %305 = vector.broadcast %cst_138 : f32 to vector<8x192xf32>
      %306 = arith.addf %305, %304 : vector<8x192xf32>
      %307 = arith.divf %305, %306 : vector<8x192xf32>
      %308 = vector.extract_strided_slice %301 {offsets = [0, 192], sizes = [8, 64], strides = [1, 1]} : vector<8x256xf32> to vector<8x64xf32>
      %309 = math.tanh %308 : vector<8x64xf32>
      %310 = vector.extract_strided_slice %307 {offsets = [0, 0], sizes = [8, 64], strides = [1, 1]} : vector<8x192xf32> to vector<8x64xf32>
      %311 = vector.extract_strided_slice %307 {offsets = [0, 64], sizes = [8, 64], strides = [1, 1]} : vector<8x192xf32> to vector<8x64xf32>
      %312 = vector.extract_strided_slice %307 {offsets = [0, 128], sizes = [8, 64], strides = [1, 1]} : vector<8x192xf32> to vector<8x64xf32>
      %313 = arith.mulf %311, %279 : vector<8x64xf32>
      %314 = arith.mulf %310, %309 : vector<8x64xf32>
      %315 = arith.addf %313, %314 : vector<8x64xf32>
      %316 = math.tanh %315 : vector<8x64xf32>
      %317 = arith.mulf %312, %316 : vector<8x64xf32>
      %318 = vector.extract_strided_slice %317 {offsets = [0, 0], sizes = [8, 32], strides = [1, 1]} : vector<8x64xf32> to vector<8x32xf32>
      %319 = arith.index_cast %c7_i32_131 : i32 to index
      %c0_139 = arith.constant 0 : index
      %c0_140 = arith.constant 0 : index
      %320 = vector.load %arg20[%319, %c0_139, %c0_140] : memref<8x8x32xf32, #tpu.memory_space<vmem>>, vector<1x8x32xf32>
      %321 = vector.shape_cast %320 : vector<1x8x32xf32> to vector<8x32xf32>
      %322 = vector.shape_cast %318 : vector<8x32xf32> to vector<1x8x32xf32>
      tpu.vector_store %arg20[%319, %c0_139, %c0_140], %322 {strides = array<i32>} : memref<8x8x32xf32, #tpu.memory_space<vmem>>, vector<1x8x32xf32>,
      %323 = vector.extract_strided_slice %317 {offsets = [0, 32], sizes = [8, 32], strides = [1, 1]} : vector<8x64xf32> to vector<8x32xf32>
      %324 = arith.index_cast %292 : i32 to index
      %c0_141 = arith.constant 0 : index
      %c0_142 = arith.constant 0 : index
      %325 = vector.load %arg21[%324, %c0_141, %c0_142] : memref<8x8x32xf32, #tpu.memory_space<vmem>>, vector<1x8x32xf32>
      %326 = vector.shape_cast %325 : vector<1x8x32xf32> to vector<8x32xf32>
      %327 = vector.shape_cast %323 : vector<8x32xf32> to vector<1x8x32xf32>
      tpu.vector_store %arg21[%324, %c0_141, %c0_142], %327 {strides = array<i32>} : memref<8x8x32xf32, #tpu.memory_space<vmem>>, vector<1x8x32xf32>,
      %c8_i32 = arith.constant 8 : i32
      %c8 = arith.constant 8 : index
      %c0_143 = arith.constant 0 : index
      %328 = vector.load %arg22[%c8, %c0_143] : memref<16x64xf32, #tpu.memory_space<vmem>>, vector<8x64xf32>
      tpu.vector_store %arg22[%c8, %c0_143], %317 {strides = array<i32>} : memref<16x64xf32, #tpu.memory_space<vmem>>, vector<8x64xf32>,
      %c8_144 = arith.constant 8 : index
      %c0_145 = arith.constant 0 : index
      %329 = vector.load %arg23[%c8_144, %c0_145] : memref<16x64xf32, #tpu.memory_space<vmem>>, vector<8x64xf32>
      tpu.vector_store %arg23[%c8_144, %c0_145], %315 {strides = array<i32>} : memref<16x64xf32, #tpu.memory_space<vmem>>, vector<8x64xf32>,
      tpu.yield
    }) : () -> ()
    %c0_11 = arith.constant 0 : index
    %c0_12 = arith.constant 0 : index
    %c0_13 = arith.constant 0 : index
    %7 = vector.load %arg20[%c0_11, %c0_12, %c0_13] : memref<8x8x32xf32, #tpu.memory_space<vmem>>, vector<8x8x32xf32>
    %c0_14 = arith.constant 0 : index
    %c0_15 = arith.constant 0 : index
    %c0_16 = arith.constant 0 : index
    %8 = vector.load %arg21[%c0_14, %c0_15, %c0_16] : memref<8x8x32xf32, #tpu.memory_space<vmem>>, vector<8x8x32xf32>
    %9 = arith.addf %7, %8 : vector<8x8x32xf32>
    %c0_17 = arith.constant 0 : index
    %c0_18 = arith.constant 0 : index
    %c0_19 = arith.constant 0 : index
    %10 = vector.load %arg15[%c0_17, %c0_18, %c0_19] : memref<8x8x32xf32, #tpu.memory_space<vmem>>, vector<8x8x32xf32>
    tpu.vector_store %arg15[%c0_17, %c0_18, %c0_19], %9 {strides = array<i32>} : memref<8x8x32xf32, #tpu.memory_space<vmem>>, vector<8x8x32xf32>,
    %c0_20 = arith.constant 0 : index
    %c0_21 = arith.constant 0 : index
    %11 = vector.load %arg22[%c0_20, %c0_21] : memref<16x64xf32, #tpu.memory_space<vmem>>, vector<16x64xf32>
    %c0_22 = arith.constant 0 : index
    %c0_23 = arith.constant 0 : index
    %12 = vector.load %arg11[%c0_22, %c0_23] : memref<64x32xf32, #tpu.memory_space<vmem>>, vector<64x32xf32>
    %cst = arith.constant dense<0.000000e+00> : vector<16x32xf32>
    %13 = tpu.matmul %11, %12, %cst {dimension_numbers = #tpu.dot_dimension_numbers<[1], [0], [0], [1], [0, 0, 1, 1], [], []>} : vector<16x64xf32>, vector<64x32xf32>, vector<16x32xf32> -> vector<16x32xf32>
    %c0_24 = arith.constant 0 : index
    %c0_25 = arith.constant 0 : index
    %14 = vector.load %arg12[%c0_24, %c0_25] : memref<1x32xf32, #tpu.memory_space<vmem>>, vector<1x32xf32>
    %15 = vector.broadcast %14 : vector<1x32xf32> to vector<16x32xf32>
    %16 = arith.addf %13, %15 : vector<16x32xf32>
    %c0_26 = arith.constant 0 : index
    %c0_27 = arith.constant 0 : index
    %17 = vector.load %arg16[%c0_26, %c0_27] : memref<16x32xf32, #tpu.memory_space<vmem>>, vector<16x32xf32>
    tpu.vector_store %arg16[%c0_26, %c0_27], %16 {strides = array<i32>} : memref<16x32xf32, #tpu.memory_space<vmem>>, vector<16x32xf32>,
    %c0_28 = arith.constant 0 : index
    %c0_29 = arith.constant 0 : index
    %18 = vector.load %arg23[%c0_28, %c0_29] : memref<16x64xf32, #tpu.memory_space<vmem>>, vector<16x64xf32>
    %c0_30 = arith.constant 0 : index
    %c0_31 = arith.constant 0 : index
    %19 = vector.load %arg13[%c0_30, %c0_31] : memref<64x32xf32, #tpu.memory_space<vmem>>, vector<64x32xf32>
    %cst_32 = arith.constant dense<0.000000e+00> : vector<16x32xf32>
    %20 = tpu.matmul %18, %19, %cst_32 {dimension_numbers = #tpu.dot_dimension_numbers<[1], [0], [0], [1], [0, 0, 1, 1], [], []>} : vector<16x64xf32>, vector<64x32xf32>, vector<16x32xf32> -> vector<16x32xf32>
    %c0_33 = arith.constant 0 : index
    %c0_34 = arith.constant 0 : index
    %21 = vector.load %arg14[%c0_33, %c0_34] : memref<1x32xf32, #tpu.memory_space<vmem>>, vector<1x32xf32>
    %22 = vector.broadcast %21 : vector<1x32xf32> to vector<16x32xf32>
    %23 = arith.addf %20, %22 : vector<16x32xf32>
    %c0_35 = arith.constant 0 : index
    %c0_36 = arith.constant 0 : index
    %24 = vector.load %arg17[%c0_35, %c0_36] : memref<16x32xf32, #tpu.memory_space<vmem>>, vector<16x32xf32>
    tpu.vector_store %arg17[%c0_35, %c0_36], %23 {strides = array<i32>} : memref<16x32xf32, #tpu.memory_space<vmem>>, vector<16x32xf32>,
    return
  }
}

</mosaic_0001>

<llo_original>
// kernel: tpu_custom_call.1
$region0: #{tpu_custom_call.1}
  #allocation0 [shape = 'u32[]', space=smem, size = 0x4, offset = 0x4, fixed_abs, tag = 'smem constant byte address 0x4 - core index']
  #allocation1 [shape = 'u32[72,128]{1,0:T(1,128)}', space=vmem, size = 0x9000, scoped, tag = 'internal scratch']
  #allocation2 [shape = 'f32[8,8,32]{2,1,0:T(8,128)}', space=vmem, size = 0x8000, scoped, tag = 'scratch operand']
  #allocation3 [shape = 'f32[8,8,32]{2,1,0:T(8,128)}', space=vmem, size = 0x8000, scoped, tag = 'scratch operand']
  #allocation4 [shape = 'f32[8,8,32]{2,1,0:T(8,128)}', space=vmem, size = 0x8000, scoped, tag = 'scratch operand']
  #allocation5 [shape = 'f32[8,8,32]{2,1,0:T(8,128)}', space=vmem, size = 0x8000, scoped, tag = 'scratch operand']
  #allocation6 [shape = 'f32[16,64]{1,0:T(8,128)}', space=vmem, size = 0x2000, scoped, tag = 'scratch operand']
  #allocation7 [shape = 'f32[16,64]{1,0:T(8,128)}', space=vmem, size = 0x2000, scoped, tag = 'scratch operand']
  %s0 = inlined_call_operand.vmem [shape: f32[64,16], index: 0, kind: input, shape index: {}]
  %s1 = inlined_call_operand.vmem [shape: f32[16,256], index: 1, kind: input, shape index: {}]
  %s2 = inlined_call_operand.vmem [shape: f32[16,256], index: 2, kind: input, shape index: {}]
  %s3 = inlined_call_operand.vmem [shape: f32[64,256], index: 3, kind: input, shape index: {}]
  %s4 = inlined_call_operand.vmem [shape: f32[1,256], index: 4, kind: input, shape index: {}]
  %s5 = inlined_call_operand.vmem [shape: f32[1,256], index: 5, kind: input, shape index: {}]
  %s6 = inlined_call_operand.hbm [shape: f32[64,256], index: 6, kind: input, shape index: {}]
  %s7 = inlined_call_operand.hbm [shape: f32[64,256], index: 7, kind: input, shape index: {}]
  %s8 = inlined_call_operand.hbm [shape: f32[64,256], index: 8, kind: input, shape index: {}]
  %s9 = inlined_call_operand.vmem [shape: f32[1,256], index: 9, kind: input, shape index: {}]
  %s10 = inlined_call_operand.vmem [shape: f32[1,256], index: 10, kind: input, shape index: {}]
  %s11 = inlined_call_operand.vmem [shape: f32[64,32], index: 11, kind: input, shape index: {}]
  %s12 = inlined_call_operand.vmem [shape: f32[1,32], index: 12, kind: input, shape index: {}]
  %s13 = inlined_call_operand.vmem [shape: f32[64,32], index: 13, kind: input, shape index: {}]
  %s14 = inlined_call_operand.vmem [shape: f32[1,32], index: 14, kind: input, shape index: {}]
  %s15 = inlined_call_operand.hbm [shape: f32[8,8,32], index: 15, kind: output, shape index: {0}]
  %s16 = inlined_call_operand.hbm [shape: f32[16,32], index: 16, kind: output, shape index: {1}]
  %s17 = inlined_call_operand.hbm [shape: f32[16,32], index: 17, kind: output, shape index: {2}]
  %18 = xla_tuple %s15, %s16, %s17
  %s19 = sld [smem:[#allocation0]]
  $region100: #{tpu_custom_call.1} parent=0
    _
  %s21 = ssub.s32 1, %s19
  %s22 = scalar_select 0, %s21, %s19
  $region1: #{tpu_custom_call.1} parent=0
    #allocation8 [shape = 'u8[65536]{0}', space=vmem, size = 0x10000, scoped, tag = 'input window, operand 6, single buffered']
    #allocation9 [shape = 's32[1]{0}', space=sflag, size = 0x4, scoped, tag = 'scoped memory for tpu_custom_call.1']
    #allocation10 [shape = 's32[1]{0}', space=sflag, size = 0x4, scoped, tag = 'scoped memory for tpu_custom_call.1']
    #allocation11 [shape = 'u8[65536]{0}', space=vmem, size = 0x10000, scoped, tag = 'input window, operand 7, single buffered']
    #allocation12 [shape = 's32[1]{0}', space=sflag, size = 0x4, scoped, tag = 'scoped memory for tpu_custom_call.1']
    #allocation13 [shape = 'u8[65536]{0}', space=vmem, size = 0x10000, scoped, tag = 'input window, operand 8, single buffered']
    #allocation14 [shape = 'u8[32768]{0}', space=vmem, size = 0x8000, scoped, tag = 'output window, operand 0, single buffered']
    #allocation15 [shape = 'u8[8192]{0}', space=vmem, size = 0x2000, scoped, tag = 'output window, operand 1, single buffered']
    #allocation16 [shape = 's32[1]{0}', space=sflag, size = 0x4, scoped, tag = 'scoped memory for tpu_custom_call.1']
    #allocation17 [shape = 'u8[8192]{0}', space=vmem, size = 0x2000, scoped, tag = 'output window, operand 2, single buffered']
    %23 = vsyncpa [#allocation9], 0
    %24 = vsyncpa [#allocation12], 0
    %25 = vsyncpa [#allocation10], 0
    %26 = vsyncpa [#allocation16], 0
    // Predicated region
    $region2: #{tpu_custom_call.1} parent=1 // pred_check
      _
    $region3: #{tpu_custom_call.1} parent=1 // pred_check_branch
      %28 = sbr.rel (0) target = $region5
    $region4: #{tpu_custom_call.1} parent=1 // pred_region
      _
    $region5: #{tpu_custom_call.1} parent=1 // pred_fallthru
      _
    // Predicated region
    $region6: #{tpu_custom_call.1} parent=1 // pred_check
      _
    $region7: #{tpu_custom_call.1} parent=1 // pred_check_branch
      %30 = sbr.rel (0) target = $region9
    $region8: #{tpu_custom_call.1} parent=1 // pred_region
      _
    $region9: #{tpu_custom_call.1} parent=1 // pred_fallthru
      _
    // Predicated region
    $region10: #{tpu_custom_call.1} parent=1 // pred_check
      _
    $region11: #{tpu_custom_call.1} parent=1 // pred_check_branch
      %32 = sbr.rel (0) target = $region13
    $region12: #{tpu_custom_call.1} parent=1 // pred_region
      _
    $region13: #{tpu_custom_call.1} parent=1 // pred_fallthru
      _
    // Predicated region
    $region14: #{tpu_custom_call.1} parent=1 // pred_check
      _
    $region15: #{tpu_custom_call.1} parent=1 // pred_check_branch
      %34 = sbr.rel (0) target = $region17
    $region16: #{tpu_custom_call.1} parent=1 // pred_region
      _
    $region17: #{tpu_custom_call.1} parent=1 // pred_fallthru
      _
    // Predicated region
    $region18: #{tpu_custom_call.1} parent=1 // pred_check
      _
    $region19: #{tpu_custom_call.1} parent=1 // pred_check_branch
      %36 = sbr.rel (0) target = $region21
    $region20: #{tpu_custom_call.1} parent=1 // pred_region
      _
    $region21: #{tpu_custom_call.1} parent=1 // pred_fallthru
      _
    // Predicated region
    $region22: #{tpu_custom_call.1} parent=1 // pred_check
      _
    $region23: #{tpu_custom_call.1} parent=1 // pred_check_branch
      %38 = sbr.rel (0) target = $region25
    $region24: #{tpu_custom_call.1} parent=1 // pred_region
      _
    $region25: #{tpu_custom_call.1} parent=1 // pred_fallthru
      _
    // Predicated region
    $region26: #{tpu_custom_call.1} parent=1 // pred_check
      _
    $region27: #{tpu_custom_call.1} parent=1 // pred_check_branch
      %40 = sbr.rel (0) target = $region29
    $region28: #{tpu_custom_call.1} parent=1 // pred_region
      %42 = vsyncadd [#allocation9], 0
      %s43 = sshll.u32 %s6, 4
      %s44 = int_to_ptr.hbm [resolvable:$true] %s43
      %s45 = sshll.u32 [#allocation8], 4
      %s46 = int_to_ptr.vmem [resolvable:$true] %s45
      %51 = dma.hbm_to_vmem [thread:$0]  %s44, 2048, %s46, [#allocation9], 256, 256, 16
    $region29: #{tpu_custom_call.1} parent=1 // pred_fallthru
      _
    // Predicated region
    $region30: #{tpu_custom_call.1} parent=1 // pred_check
      _
    $region31: #{tpu_custom_call.1} parent=1 // pred_check_branch
      %53 = sbr.rel (0) target = $region33
    $region32: #{tpu_custom_call.1} parent=1 // pred_region
      %55 = vsyncadd [#allocation12], 0
      %s56 = sshll.u32 %s7, 4
      %s57 = int_to_ptr.hbm [resolvable:$true] %s56
      %s58 = sshll.u32 [#allocation11], 4
      %s59 = int_to_ptr.vmem [resolvable:$true] %s58
      %64 = dma.hbm_to_vmem [thread:$0]  %s57, 2048, %s59, [#allocation12], 256, 256, 16
    $region33: #{tpu_custom_call.1} parent=1 // pred_fallthru
      _
    // Predicated region
    $region34: #{tpu_custom_call.1} parent=1 // pred_check
      _
    $region35: #{tpu_custom_call.1} parent=1 // pred_check_branch
      %66 = sbr.rel (0) target = $region37
    $region36: #{tpu_custom_call.1} parent=1 // pred_region
      %68 = vsyncadd [#allocation12], 0
      %s69 = sshll.u32 %s8, 4
      %s70 = int_to_ptr.hbm [resolvable:$true] %s69
      %s71 = sshll.u32 [#allocation13], 4
      %s72 = int_to_ptr.vmem [resolvable:$true] %s71
      %77 = dma.hbm_to_vmem [thread:$0]  %s70, 2048, %s72, [#allocation12], 256, 256, 16
    $region37: #{tpu_custom_call.1} parent=1 // pred_fallthru
      _
    // Predicated region
    $region38: #{tpu_custom_call.1} parent=1 // pred_check
      _
    $region39: #{tpu_custom_call.1} parent=1 // pred_check_branch
      %79 = sbr.rel (0) target = $region41
    $region40: #{tpu_custom_call.1} parent=1 // pred_region
      _
    $region41: #{tpu_custom_call.1} parent=1 // pred_fallthru
      _
    // Predicated region
    $region42: #{tpu_custom_call.1} parent=1 // pred_check
      _
    $region43: #{tpu_custom_call.1} parent=1 // pred_check_branch
      %81 = sbr.rel (0) target = $region45
    $region44: #{tpu_custom_call.1} parent=1 // pred_region
      _
    $region45: #{tpu_custom_call.1} parent=1 // pred_fallthru
      _
    // Predicated region
    $region46: #{tpu_custom_call.1} parent=1 // pred_check
      _
    $region47: #{tpu_custom_call.1} parent=1 // pred_check_branch
      %83 = sbr.rel (0) target = $region49
    $region48: #{tpu_custom_call.1} parent=1 // pred_region
      _
    $region49: #{tpu_custom_call.1} parent=1 // pred_fallthru
      _
    // Predicated region
    $region50: #{tpu_custom_call.1} parent=1 // pred_check
      _
    $region51: #{tpu_custom_call.1} parent=1 // pred_check_branch
      %85 = sbr.rel (0) target = $region53
    $region52: #{tpu_custom_call.1} parent=1 // pred_region
      _
    $region53: #{tpu_custom_call.1} parent=1 // pred_fallthru
      _
    // Predicated region
    $region54: #{tpu_custom_call.1} parent=1 // pred_check
      _
    $region55: #{tpu_custom_call.1} parent=1 // pred_check_branch
      %87 = sbr.rel (0) target = $region57
    $region56: #{tpu_custom_call.1} parent=1 // pred_region
      _
    $region57: #{tpu_custom_call.1} parent=1 // pred_fallthru
      _
    // Predicated region
    $region58: #{tpu_custom_call.1} parent=1 // pred_check
      _
    $region59: #{tpu_custom_call.1} parent=1 // pred_check_branch
      %89 = sbr.rel (0) target = $region61
    $region60: #{tpu_custom_call.1} parent=1 // pred_region
      _
    $region61: #{tpu_custom_call.1} parent=1 // pred_fallthru
      _
    // Predicated region
    $region62: #{tpu_custom_call.1} parent=1 // pred_check
      _
    $region63: #{tpu_custom_call.1} parent=1 // pred_check_branch
      %91 = sbr.rel (0) target = $region65
    $region64: #{tpu_custom_call.1} parent=1 // pred_region
      %93 = dma.done [#allocation9], 2048
    $region65: #{tpu_custom_call.1} parent=1 // pred_fallthru
      _
    // Predicated region
    $region66: #{tpu_custom_call.1} parent=1 // pred_check
      _
    $region67: #{tpu_custom_call.1} parent=1 // pred_check_branch
      %95 = sbr.rel (0) target = $region69
    $region68: #{tpu_custom_call.1} parent=1 // pred_region
      %97 = dma.done [#allocation12], 2048
    $region69: #{tpu_custom_call.1} parent=1 // pred_fallthru
      _
    // Predicated region
    $region70: #{tpu_custom_call.1} parent=1 // pred_check
      _
    $region71: #{tpu_custom_call.1} parent=1 // pred_check_branch
      %99 = sbr.rel (0) target = $region73
    $region72: #{tpu_custom_call.1} parent=1 // pred_region
      %101 = dma.done [#allocation12], 2048
    $region73: #{tpu_custom_call.1} parent=1 // pred_fallthru
      _
    %v102 = vld [vmem:[%s0] sm:$0xff]
    %v103 = vld [vmem:[%s0 + $0x8] sm:$0xff]
    %v104 = vld [vmem:[%s0 + $0x10] sm:$0xff]
    %v105 = vld [vmem:[%s0 + $0x18] sm:$0xff]
    %v106 = vld [vmem:[%s0 + $0x20] sm:$0xff]
    %v107 = vld [vmem:[%s0 + $0x28] sm:$0xff]
    %v108 = vld [vmem:[%s0 + $0x30] sm:$0xff]
    %v109 = vld [vmem:[%s0 + $0x38] sm:$0xff]
    %v110 = vld [vmem:[%s3] sm:$0xff]
    %v111 = vld [vmem:[%s3 + $0x8] sm:$0xff]
    %v112 = vld [vmem:[%s3 + $0x10] sm:$0xff]
    %v113 = vld [vmem:[%s3 + $0x18] sm:$0xff]
    %v114 = vld [vmem:[%s3 + $0x20] sm:$0xff]
    %v115 = vld [vmem:[%s3 + $0x28] sm:$0xff]
    %v116 = vld [vmem:[%s3 + $0x30] sm:$0xff]
    %v117 = vld [vmem:[%s3 + $0x38] sm:$0xff]
    %v118 = vld [vmem:[%s3 + $0x40] sm:$0xff]
    %v119 = vld [vmem:[%s3 + $0x48] sm:$0xff]
    %v120 = vld [vmem:[%s3 + $0x50] sm:$0xff]
    %v121 = vld [vmem:[%s3 + $0x58] sm:$0xff]
    %v122 = vld [vmem:[%s3 + $0x60] sm:$0xff]
    %v123 = vld [vmem:[%s3 + $0x68] sm:$0xff]
    %v124 = vld [vmem:[%s3 + $0x70] sm:$0xff]
    %v125 = vld [vmem:[%s3 + $0x78] sm:$0xff]
    $region74: #{tpu_custom_call.1} parent=1
      #allocation18 [shape = 'u8[65536]{0}', space=vmem, size = 0x10000, scoped, tag = 'scoped memory for tpu_custom_call.1']
      #allocation19 [shape = 'u8[65536]{0}', space=vmem, size = 0x10000, scoped, tag = 'scoped memory for tpu_custom_call.1']
      %v126 = vld [vmem:[%s1] sm:$0xff]
      %v127 = vld [vmem:[%s1 + $0x8] sm:$0xff]
      %v128 = vld [vmem:[%s1 + $0x10] sm:$0xff]
      %v129 = vld [vmem:[%s1 + $0x18] sm:$0xff]
      %v130 = vld [vmem:[%s4] sm:$0x3]
      %v132 = vperm.slane %v130, 0
      %v133 = vperm.slane %v130, 1
      %vm136 = vcmask 130048
      %v138 = vsel %vm136, %v102, 0
      %v141 = vsel %vm136, %v103, 0
      %v144 = vsel %vm136, %v104, 0
      %v147 = vsel %vm136, %v105, 0
      %v150 = vsel %vm136, %v106, 0
      %v153 = vsel %vm136, %v107, 0
      %v156 = vsel %vm136, %v108, 0
      %v159 = vsel %vm136, %v109, 0
      %161 = vmatpush.msra.mxu0 0.0
      %162 = vmatpush.msra.mxu0 0.0
      %163 = vmatpush.msra.mxu0 0.0
      %164 = vmatpush.msra.mxu0 0.0
      %165 = vmatpush.msra.mxu0 0.0
      %166 = vmatpush.msra.mxu0 0.0
      %167 = vmatpush.msra.mxu0 0.0
      %168 = vmatpush.msra.mxu0 0.0
      %169 = vmatpush.msra.mxu0 0.0
      %170 = vmatpush.msra.mxu0 0.0
      %171 = vmatpush.msra.mxu0 0.0
      %172 = vmatpush.msra.mxu0 0.0
      %173 = vmatpush.msra.mxu0 0.0
      %174 = vmatpush.msra.mxu0 0.0
      %175 = vmatpush.msra.mxu0 %v128
      %176 = vmatpush.msra.mxu0 %v126
      %177 = vmatmul.f32.gmra.mxu0 %v138
      %v178 = vpop.f32.mrf.mxu0
      %v179 = vadd.f32 %v132, %v178
      %180 = vmatmul.f32.gmra.mxu0 %v141
      %v181 = vpop.f32.mrf.mxu0
      %v182 = vadd.f32 %v132, %v181
      %183 = vmatmul.f32.gmra.mxu0 %v144
      %v184 = vpop.f32.mrf.mxu0
      %v185 = vadd.f32 %v132, %v184
      %186 = vmatmul.f32.gmra.mxu0 %v147
      %v187 = vpop.f32.mrf.mxu0
      %v188 = vadd.f32 %v132, %v187
      %189 = vmatmul.f32.gmra.mxu0 %v150
      %v190 = vpop.f32.mrf.mxu0
      %v191 = vadd.f32 %v132, %v190
      %192 = vmatmul.f32.gmra.mxu0 %v153
      %v193 = vpop.f32.mrf.mxu0
      %v194 = vadd.f32 %v132, %v193
      %195 = vmatmul.f32.gmra.mxu0 %v156
      %v196 = vpop.f32.mrf.mxu0
      %v197 = vadd.f32 %v132, %v196
      %198 = vmatmul.f32.gmra.mxu0 %v159
      %v199 = vpop.f32.mrf.mxu0
      %v200 = vadd.f32 %v132, %v199
      %201 = vdwg.mxu0
      %202 = vmatpush.msra.mxu0 0.0
      %203 = vmatpush.msra.mxu0 0.0
      %204 = vmatpush.msra.mxu0 0.0
      %205 = vmatpush.msra.mxu0 0.0
      %206 = vmatpush.msra.mxu0 0.0
      %207 = vmatpush.msra.mxu0 0.0
      %208 = vmatpush.msra.mxu0 0.0
      %209 = vmatpush.msra.mxu0 0.0
      %210 = vmatpush.msra.mxu0 0.0
      %211 = vmatpush.msra.mxu0 0.0
      %212 = vmatpush.msra.mxu0 0.0
      %213 = vmatpush.msra.mxu0 0.0
      %214 = vmatpush.msra.mxu0 0.0
      %215 = vmatpush.msra.mxu0 0.0
      %216 = vmatpush.msra.mxu0 %v129
      %217 = vmatpush.msra.mxu0 %v127
      %218 = vmatmul.f32.gmra.mxu0 %v138
      %v219 = vpop.f32.mrf.mxu0
      %v220 = vadd.f32 %v133, %v219
      %221 = vmatmul.f32.gmra.mxu0 %v141
      %v222 = vpop.f32.mrf.mxu0
      %v223 = vadd.f32 %v133, %v222
      %224 = vmatmul.f32.gmra.mxu0 %v144
      %v225 = vpop.f32.mrf.mxu0
      %v226 = vadd.f32 %v133, %v225
      %227 = vmatmul.f32.gmra.mxu0 %v147
      %v228 = vpop.f32.mrf.mxu0
      %v229 = vadd.f32 %v133, %v228
      %230 = vmatmul.f32.gmra.mxu0 %v150
      %v231 = vpop.f32.mrf.mxu0
      %v232 = vadd.f32 %v133, %v231
      %233 = vmatmul.f32.gmra.mxu0 %v153
      %v234 = vpop.f32.mrf.mxu0
      %v235 = vadd.f32 %v133, %v234
      %236 = vmatmul.f32.gmra.mxu0 %v156
      %v237 = vpop.f32.mrf.mxu0
      %v238 = vadd.f32 %v133, %v237
      %239 = vmatmul.f32.gmra.mxu0 %v159
      %v240 = vpop.f32.mrf.mxu0
      %v241 = vadd.f32 %v133, %v240
      %242 = vdwg.mxu0
      %243 = vst [vmem:[#allocation18] sm:$0xff] %v179
      %244 = vst [vmem:[#allocation18 + $0x8] sm:$0xff] %v220
      %245 = vst [vmem:[#allocation18 + $0x10] sm:$0xff] %v182
      %246 = vst [vmem:[#allocation18 + $0x18] sm:$0xff] %v223
      %247 = vst [vmem:[#allocation18 + $0x20] sm:$0xff] %v185
      %248 = vst [vmem:[#allocation18 + $0x28] sm:$0xff] %v226
      %249 = vst [vmem:[#allocation18 + $0x30] sm:$0xff] %v188
      %250 = vst [vmem:[#allocation18 + $0x38] sm:$0xff] %v229
      %251 = vst [vmem:[#allocation18 + $0x40] sm:$0xff] %v191
      %252 = vst [vmem:[#allocation18 + $0x48] sm:$0xff] %v232
      %253 = vst [vmem:[#allocation18 + $0x50] sm:$0xff] %v194
      %254 = vst [vmem:[#allocation18 + $0x58] sm:$0xff] %v235
      %255 = vst [vmem:[#allocation18 + $0x60] sm:$0xff] %v197
      %256 = vst [vmem:[#allocation18 + $0x68] sm:$0xff] %v238
      %257 = vst [vmem:[#allocation18 + $0x70] sm:$0xff] %v200
      %258 = vst [vmem:[#allocation18 + $0x78] sm:$0xff] %v241
      %v259 = vld [vmem:[%s2] sm:$0xff]
      %v260 = vld [vmem:[%s2 + $0x8] sm:$0xff]
      %v261 = vld [vmem:[%s2 + $0x10] sm:$0xff]
      %v262 = vld [vmem:[%s2 + $0x18] sm:$0xff]
      %v263 = vld [vmem:[%s5] sm:$0x3]
      %v265 = vperm.slane %v263, 0
      %v266 = vperm.slane %v263, 1
      %269 = vmatpush.msra.mxu0 0.0
      %270 = vmatpush.msra.mxu0 0.0
      %271 = vmatpush.msra.mxu0 0.0
      %272 = vmatpush.msra.mxu0 0.0
      %273 = vmatpush.msra.mxu0 0.0
      %274 = vmatpush.msra.mxu0 0.0
      %275 = vmatpush.msra.mxu0 0.0
      %276 = vmatpush.msra.mxu0 0.0
      %277 = vmatpush.msra.mxu0 0.0
      %278 = vmatpush.msra.mxu0 0.0
      %279 = vmatpush.msra.mxu0 0.0
      %280 = vmatpush.msra.mxu0 0.0
      %281 = vmatpush.msra.mxu0 0.0
      %282 = vmatpush.msra.mxu0 0.0
      %283 = vmatpush.msra.mxu0 %v261
      %284 = vmatpush.msra.mxu0 %v259
      %285 = vmatmul.f32.gmra.mxu0 %v138
      %v286 = vpop.f32.mrf.mxu0
      %v287 = vadd.f32 %v265, %v286
      %288 = vmatmul.f32.gmra.mxu0 %v141
      %v289 = vpop.f32.mrf.mxu0
      %v290 = vadd.f32 %v265, %v289
      %291 = vmatmul.f32.gmra.mxu0 %v144
      %v292 = vpop.f32.mrf.mxu0
      %v293 = vadd.f32 %v265, %v292
      %294 = vmatmul.f32.gmra.mxu0 %v147
      %v295 = vpop.f32.mrf.mxu0
      %v296 = vadd.f32 %v265, %v295
      %297 = vmatmul.f32.gmra.mxu0 %v150
      %v298 = vpop.f32.mrf.mxu0
      %v299 = vadd.f32 %v265, %v298
      %300 = vmatmul.f32.gmra.mxu0 %v153
      %v301 = vpop.f32.mrf.mxu0
      %v302 = vadd.f32 %v265, %v301
      %303 = vmatmul.f32.gmra.mxu0 %v156
      %v304 = vpop.f32.mrf.mxu0
      %v305 = vadd.f32 %v265, %v304
      %306 = vmatmul.f32.gmra.mxu0 %v159
      %v307 = vpop.f32.mrf.mxu0
      %v308 = vadd.f32 %v265, %v307
      %309 = vdwg.mxu0
      %310 = vmatpush.msra.mxu0 0.0
      %311 = vmatpush.msra.mxu0 0.0
      %312 = vmatpush.msra.mxu0 0.0
      %313 = vmatpush.msra.mxu0 0.0
      %314 = vmatpush.msra.mxu0 0.0
      %315 = vmatpush.msra.mxu0 0.0
      %316 = vmatpush.msra.mxu0 0.0
      %317 = vmatpush.msra.mxu0 0.0
      %318 = vmatpush.msra.mxu0 0.0
      %319 = vmatpush.msra.mxu0 0.0
      %320 = vmatpush.msra.mxu0 0.0
      %321 = vmatpush.msra.mxu0 0.0
      %322 = vmatpush.msra.mxu0 0.0
      %323 = vmatpush.msra.mxu0 0.0
      %324 = vmatpush.msra.mxu0 %v262
      %325 = vmatpush.msra.mxu0 %v260
      %326 = vmatmul.f32.gmra.mxu0 %v138
      %v327 = vpop.f32.mrf.mxu0
      %v328 = vadd.f32 %v266, %v327
      %329 = vmatmul.f32.gmra.mxu0 %v141
      %v330 = vpop.f32.mrf.mxu0
      %v331 = vadd.f32 %v266, %v330
      %332 = vmatmul.f32.gmra.mxu0 %v144
      %v333 = vpop.f32.mrf.mxu0
      %v334 = vadd.f32 %v266, %v333
      %335 = vmatmul.f32.gmra.mxu0 %v147
      %v336 = vpop.f32.mrf.mxu0
      %v337 = vadd.f32 %v266, %v336
      %338 = vmatmul.f32.gmra.mxu0 %v150
      %v339 = vpop.f32.mrf.mxu0
      %v340 = vadd.f32 %v266, %v339
      %341 = vmatmul.f32.gmra.mxu0 %v153
      %v342 = vpop.f32.mrf.mxu0
      %v343 = vadd.f32 %v266, %v342
      %344 = vmatmul.f32.gmra.mxu0 %v156
      %v345 = vpop.f32.mrf.mxu0
      %v346 = vadd.f32 %v266, %v345
      %347 = vmatmul.f32.gmra.mxu0 %v159
      %v348 = vpop.f32.mrf.mxu0
      %v349 = vadd.f32 %v266, %v348
      %350 = vdwg.mxu0
      %351 = vst [vmem:[#allocation19] sm:$0xff] %v287
      %352 = vst [vmem:[#allocation19 + $0x8] sm:$0xff] %v328
      %353 = vst [vmem:[#allocation19 + $0x10] sm:$0xff] %v290
      %354 = vst [vmem:[#allocation19 + $0x18] sm:$0xff] %v331
      %355 = vst [vmem:[#allocation19 + $0x20] sm:$0xff] %v293
      %356 = vst [vmem:[#allocation19 + $0x28] sm:$0xff] %v334
      %357 = vst [vmem:[#allocation19 + $0x30] sm:$0xff] %v296
      %358 = vst [vmem:[#allocation19 + $0x38] sm:$0xff] %v337
      %359 = vst [vmem:[#allocation19 + $0x40] sm:$0xff] %v299
      %360 = vst [vmem:[#allocation19 + $0x48] sm:$0xff] %v340
      %361 = vst [vmem:[#allocation19 + $0x50] sm:$0xff] %v302
      %362 = vst [vmem:[#allocation19 + $0x58] sm:$0xff] %v343
      %363 = vst [vmem:[#allocation19 + $0x60] sm:$0xff] %v305
      %364 = vst [vmem:[#allocation19 + $0x68] sm:$0xff] %v346
      %365 = vst [vmem:[#allocation19 + $0x70] sm:$0xff] %v308
      %366 = vst [vmem:[#allocation19 + $0x78] sm:$0xff] %v349
      %v367 = vld [vmem:[#allocation18] sm:$0xff]
      %v368 = vld [vmem:[#allocation18 + $0x8] sm:$0xff]
      %vm369 = vcmask 523264
      %v371 = vsel %vm369, 0.0, 0
      %373 = vmatpush.msra.mxu0 0.0
      %374 = vmatpush.msra.mxu0 0.0
      %375 = vmatpush.msra.mxu0 0.0
      %376 = vmatpush.msra.mxu0 0.0
      %377 = vmatpush.msra.mxu0 0.0
      %378 = vmatpush.msra.mxu0 0.0
      %379 = vmatpush.msra.mxu0 0.0
      %380 = vmatpush.msra.mxu0 0.0
      %381 = vmatpush.msra.mxu0 %v124
      %382 = vmatpush.msra.mxu0 %v122
      %383 = vmatpush.msra.mxu0 %v120
      %384 = vmatpush.msra.mxu0 %v118
      %385 = vmatpush.msra.mxu0 %v116
      %386 = vmatpush.msra.mxu0 %v114
      %387 = vmatpush.msra.mxu0 %v112
      %388 = vmatpush.msra.mxu0 %v110
      %389 = vmatmul.f32.gmra.mxu0 %v371
      %v390 = vpop.f32.mrf.mxu0
      %v391 = vadd.f32 %v367, %v390
      %392 = vdwg.mxu0
      %393 = vmatpush.msra.mxu0 0.0
      %394 = vmatpush.msra.mxu0 0.0
      %395 = vmatpush.msra.mxu0 0.0
      %396 = vmatpush.msra.mxu0 0.0
      %397 = vmatpush.msra.mxu0 0.0
      %398 = vmatpush.msra.mxu0 0.0
      %399 = vmatpush.msra.mxu0 0.0
      %400 = vmatpush.msra.mxu0 0.0
      %401 = vmatpush.msra.mxu0 %v125
      %402 = vmatpush.msra.mxu0 %v123
      %403 = vmatpush.msra.mxu0 %v121
      %404 = vmatpush.msra.mxu0 %v119
      %405 = vmatpush.msra.mxu0 %v117
      %406 = vmatpush.msra.mxu0 %v115
      %407 = vmatpush.msra.mxu0 %v113
      %408 = vmatpush.msra.mxu0 %v111
      %409 = vmatmul.f32.gmra.mxu0 %v371
      %v410 = vpop.f32.mrf.mxu0
      %v411 = vadd.f32 %v368, %v410
      %412 = vdwg.mxu0
      %s413 = scalar_lea.vmem [#allocation19], 112
      %v414 = vld [vmem:[%s413] sm:$0xff]
      %v415 = vld [vmem:[%s413 + $0x8] sm:$0xff]
      %v416 = vadd.f32 %v391, %v414
      %v417 = vadd.f32 %v411, %v415
      %v418 = vxor.u32 %v416, 2147483648
      %v419 = vxor.u32 %v417, 2147483648
      %v420 = vmul.f32 %v418, 1.442695
      %v421 = vpow.pop %v420
      %v422 = vmul.f32 %v419, 1.442695
      %v423 = vpow.pop %v422
      %v424 = vadd.f32 %v421, 1.0
      %v425 = vadd.f32 %v423, 1.0
      %v426 = vrcp.pop %v424
      %v427 = vmul.f32 %v424, %v426
      %v428 = vsub.f32 1.0, %v427
      %v429 = vmul.f32 %v426, %v428
      %v430 = vadd.f32 %v426, %v429
      %vm431 = vweird.f32 %v424
      %vm432 = vweird.f32 %v426
      %vm433 = vmor %vm431, %vm432
      %v434 = vsel %vm433, %v426, %v430
      %v435 = vand.u32 2147483647, %v424
      %vm436 = vcmp.eq.f32.partialorder %v435, 8.507059e+37
      %v437 = vand.u32 %v424, 2147483648
      %v438 = vor.u32 1.1754944e-38, %v437
      %v439 = vsel %vm436, %v438, %v434
      %v440 = vmul.f32 1.0, %v439
      %v441 = vrcp.pop %v425
      %v442 = vmul.f32 %v425, %v441
      %v443 = vsub.f32 1.0, %v442
      %v444 = vmul.f32 %v441, %v443
      %v445 = vadd.f32 %v441, %v444
      %vm446 = vweird.f32 %v425
      %vm447 = vweird.f32 %v441
      %vm448 = vmor %vm446, %vm447
      %v449 = vsel %vm448, %v441, %v445
      %v450 = vand.u32 2147483647, %v425
      %vm451 = vcmp.eq.f32.partialorder %v450, 8.507059e+37
      %v452 = vand.u32 %v425, 2147483648
      %v453 = vor.u32 1.1754944e-38, %v452
      %v454 = vsel %vm451, %v453, %v449
      %v455 = vmul.f32 1.0, %v454
      %v456 = vtanh.pop %v417
      %v457 = vmul.f32 %v440, 0.0
      %459 = vrot.lane.b32.xlu0 %v456, 64
      %v460 = vpop.permute.xlu0 %459
      %v462 = vmul.f32 %v440, %v460
      %464 = vrot.lane.b32.xlu0 %v462, 64
      %v465 = vpop.permute.xlu0 %464
      %v467 = vadd.f32 %v457, %v465
      %v468 = vtanh.pop %v467
      %470 = vrot.lane.b32.xlu0 %v468, 64
      %v471 = vpop.permute.xlu0 %470
      %v473 = vmul.f32 %v455, %v471
      %vm474 = vcmask 261120
      %475 = vst.msk [vmem:[#allocation2] sm:$0xff] %vm474, %v473
      %477 = vrot.lane.b32.xlu0 %v473, 96
      %v478 = vpop.permute.xlu0 %477
      %s480 = scalar_lea.vmem [#allocation3], 56
      %481 = vst.msk [vmem:[%s480] sm:$0xff] %vm474, %v478
      %s482 = scalar_lea.vmem [#allocation18], 16
      %v483 = vld [vmem:[%s482] sm:$0xff]
      %v484 = vld [vmem:[%s482 + $0x8] sm:$0xff]
      %v485 = vsel %vm369, %v473, 0
      %487 = vmatpush.msra.mxu0 0.0
      %488 = vmatpush.msra.mxu0 0.0
      %489 = vmatpush.msra.mxu0 0.0
      %490 = vmatpush.msra.mxu0 0.0
      %491 = vmatpush.msra.mxu0 0.0
      %492 = vmatpush.msra.mxu0 0.0
      %493 = vmatpush.msra.mxu0 0.0
      %494 = vmatpush.msra.mxu0 0.0
      %495 = vmatpush.msra.mxu0 %v124
      %496 = vmatpush.msra.mxu0 %v122
      %497 = vmatpush.msra.mxu0 %v120
      %498 = vmatpush.msra.mxu0 %v118
      %499 = vmatpush.msra.mxu0 %v116
      %500 = vmatpush.msra.mxu0 %v114
      %501 = vmatpush.msra.mxu0 %v112
      %502 = vmatpush.msra.mxu0 %v110
      %503 = vmatmul.f32.gmra.mxu0 %v485
      %v504 = vpop.f32.mrf.mxu0
      %v505 = vadd.f32 %v483, %v504
      %506 = vdwg.mxu0
      %507 = vmatpush.msra.mxu0 0.0
      %508 = vmatpush.msra.mxu0 0.0
      %509 = vmatpush.msra.mxu0 0.0
      %510 = vmatpush.msra.mxu0 0.0
      %511 = vmatpush.msra.mxu0 0.0
      %512 = vmatpush.msra.mxu0 0.0
      %513 = vmatpush.msra.mxu0 0.0
      %514 = vmatpush.msra.mxu0 0.0
      %515 = vmatpush.msra.mxu0 %v125
      %516 = vmatpush.msra.mxu0 %v123
      %517 = vmatpush.msra.mxu0 %v121
      %518 = vmatpush.msra.mxu0 %v119
      %519 = vmatpush.msra.mxu0 %v117
      %520 = vmatpush.msra.mxu0 %v115
      %521 = vmatpush.msra.mxu0 %v113
      %522 = vmatpush.msra.mxu0 %v111
      %523 = vmatmul.f32.gmra.mxu0 %v485
      %v524 = vpop.f32.mrf.mxu0
      %v525 = vadd.f32 %v484, %v524
      %526 = vdwg.mxu0
      %s527 = scalar_lea.vmem [#allocation19], 96
      %v528 = vld [vmem:[%s527] sm:$0xff]
      %v529 = vld [vmem:[%s527 + $0x8] sm:$0xff]
      %v530 = vadd.f32 %v505, %v528
      %v531 = vadd.f32 %v525, %v529
      %v532 = vxor.u32 %v530, 2147483648
      %v533 = vxor.u32 %v531, 2147483648
      %v534 = vmul.f32 %v532, 1.442695
      %v535 = vpow.pop %v534
      %v536 = vmul.f32 %v533, 1.442695
      %v537 = vpow.pop %v536
      %v538 = vadd.f32 %v535, 1.0
      %v539 = vadd.f32 %v537, 1.0
      %v540 = vrcp.pop %v538
      %v541 = vmul.f32 %v538, %v540
      %v542 = vsub.f32 1.0, %v541
      %v543 = vmul.f32 %v540, %v542
      %v544 = vadd.f32 %v540, %v543
      %vm545 = vweird.f32 %v538
      %vm546 = vweird.f32 %v540
      %vm547 = vmor %vm545, %vm546
      %v548 = vsel %vm547, %v540, %v544
      %v549 = vand.u32 2147483647, %v538
      %vm550 = vcmp.eq.f32.partialorder %v549, 8.507059e+37
      %v551 = vand.u32 %v538, 2147483648
      %v552 = vor.u32 1.1754944e-38, %v551
      %v553 = vsel %vm550, %v552, %v548
      %v554 = vmul.f32 1.0, %v553
      %v555 = vrcp.pop %v539
      %v556 = vmul.f32 %v539, %v555
      %v557 = vsub.f32 1.0, %v556
      %v558 = vmul.f32 %v555, %v557
      %v559 = vadd.f32 %v555, %v558
      %vm560 = vweird.f32 %v539
      %vm561 = vweird.f32 %v555
      %vm562 = vmor %vm560, %vm561
      %v563 = vsel %vm562, %v555, %v559
      %v564 = vand.u32 2147483647, %v539
      %vm565 = vcmp.eq.f32.partialorder %v564, 8.507059e+37
      %v566 = vand.u32 %v539, 2147483648
      %v567 = vor.u32 1.1754944e-38, %v566
      %v568 = vsel %vm565, %v567, %v563
      %v569 = vmul.f32 1.0, %v568
      %v570 = vtanh.pop %v531
      %v571 = vmul.f32 %v554, %v467
      %573 = vrot.lane.b32.xlu0 %v570, 64
      %v574 = vpop.permute.xlu0 %573
      %v576 = vmul.f32 %v554, %v574
      %578 = vrot.lane.b32.xlu0 %v576, 64
      %v579 = vpop.permute.xlu0 %578
      %v581 = vadd.f32 %v571, %v579
      %v582 = vtanh.pop %v581
      %584 = vrot.lane.b32.xlu0 %v582, 64
      %v585 = vpop.permute.xlu0 %584
      %v587 = vmul.f32 %v569, %v585
      %s588 = scalar_lea.vmem [#allocation2], 8
      %589 = vst.msk [vmem:[%s588] sm:$0xff] %vm474, %v587
      %591 = vrot.lane.b32.xlu0 %v587, 96
      %v592 = vpop.permute.xlu0 %591
      %s594 = scalar_lea.vmem [#allocation3], 48
      %595 = vst.msk [vmem:[%s594] sm:$0xff] %vm474, %v592
      %s596 = scalar_lea.vmem [#allocation18], 32
      %v597 = vld [vmem:[%s596] sm:$0xff]
      %v598 = vld [vmem:[%s596 + $0x8] sm:$0xff]
      %v599 = vsel %vm369, %v587, 0
      %601 = vmatpush.msra.mxu0 0.0
      %602 = vmatpush.msra.mxu0 0.0
      %603 = vmatpush.msra.mxu0 0.0
      %604 = vmatpush.msra.mxu0 0.0
      %605 = vmatpush.msra.mxu0 0.0
      %606 = vmatpush.msra.mxu0 0.0
      %607 = vmatpush.msra.mxu0 0.0
      %608 = vmatpush.msra.mxu0 0.0
      %609 = vmatpush.msra.mxu0 %v124
      %610 = vmatpush.msra.mxu0 %v122
      %611 = vmatpush.msra.mxu0 %v120
      %612 = vmatpush.msra.mxu0 %v118
      %613 = vmatpush.msra.mxu0 %v116
      %614 = vmatpush.msra.mxu0 %v114
      %615 = vmatpush.msra.mxu0 %v112
      %616 = vmatpush.msra.mxu0 %v110
      %617 = vmatmul.f32.gmra.mxu0 %v599
      %v618 = vpop.f32.mrf.mxu0
      %v619 = vadd.f32 %v597, %v618
      %620 = vdwg.mxu0
      %621 = vmatpush.msra.mxu0 0.0
      %622 = vmatpush.msra.mxu0 0.0
      %623 = vmatpush.msra.mxu0 0.0
      %624 = vmatpush.msra.mxu0 0.0
      %625 = vmatpush.msra.mxu0 0.0
      %626 = vmatpush.msra.mxu0 0.0
      %627 = vmatpush.msra.mxu0 0.0
      %628 = vmatpush.msra.mxu0 0.0
      %629 = vmatpush.msra.mxu0 %v125
      %630 = vmatpush.msra.mxu0 %v123
      %631 = vmatpush.msra.mxu0 %v121
      %632 = vmatpush.msra.mxu0 %v119
      %633 = vmatpush.msra.mxu0 %v117
      %634 = vmatpush.msra.mxu0 %v115
      %635 = vmatpush.msra.mxu0 %v113
      %636 = vmatpush.msra.mxu0 %v111
      %637 = vmatmul.f32.gmra.mxu0 %v599
      %v638 = vpop.f32.mrf.mxu0
      %v639 = vadd.f32 %v598, %v638
      %640 = vdwg.mxu0
      %s641 = scalar_lea.vmem [#allocation19], 80
      %v642 = vld [vmem:[%s641] sm:$0xff]
      %v643 = vld [vmem:[%s641 + $0x8] sm:$0xff]
      %v644 = vadd.f32 %v619, %v642
      %v645 = vadd.f32 %v639, %v643
      %v646 = vxor.u32 %v644, 2147483648
      %v647 = vxor.u32 %v645, 2147483648
      %v648 = vmul.f32 %v646, 1.442695
      %v649 = vpow.pop %v648
      %v650 = vmul.f32 %v647, 1.442695
      %v651 = vpow.pop %v650
      %v652 = vadd.f32 %v649, 1.0
      %v653 = vadd.f32 %v651, 1.0
      %v654 = vrcp.pop %v652
      %v655 = vmul.f32 %v652, %v654
      %v656 = vsub.f32 1.0, %v655
      %v657 = vmul.f32 %v654, %v656
      %v658 = vadd.f32 %v654, %v657
      %vm659 = vweird.f32 %v652
      %vm660 = vweird.f32 %v654
      %vm661 = vmor %vm659, %vm660
      %v662 = vsel %vm661, %v654, %v658
      %v663 = vand.u32 2147483647, %v652
      %vm664 = vcmp.eq.f32.partialorder %v663, 8.507059e+37
      %v665 = vand.u32 %v652, 2147483648
      %v666 = vor.u32 1.1754944e-38, %v665
      %v667 = vsel %vm664, %v666, %v662
      %v668 = vmul.f32 1.0, %v667
      %v669 = vrcp.pop %v653
      %v670 = vmul.f32 %v653, %v669
      %v671 = vsub.f32 1.0, %v670
      %v672 = vmul.f32 %v669, %v671
      %v673 = vadd.f32 %v669, %v672
      %vm674 = vweird.f32 %v653
      %vm675 = vweird.f32 %v669
      %vm676 = vmor %vm674, %vm675
      %v677 = vsel %vm676, %v669, %v673
      %v678 = vand.u32 2147483647, %v653
      %vm679 = vcmp.eq.f32.partialorder %v678, 8.507059e+37
      %v680 = vand.u32 %v653, 2147483648
      %v681 = vor.u32 1.1754944e-38, %v680
      %v682 = vsel %vm679, %v681, %v677
      %v683 = vmul.f32 1.0, %v682
      %v684 = vtanh.pop %v645
      %v685 = vmul.f32 %v668, %v581
      %687 = vrot.lane.b32.xlu0 %v684, 64
      %v688 = vpop.permute.xlu0 %687
      %v690 = vmul.f32 %v668, %v688
      %692 = vrot.lane.b32.xlu0 %v690, 64
      %v693 = vpop.permute.xlu0 %692
      %v695 = vadd.f32 %v685, %v693
      %v696 = vtanh.pop %v695
      %698 = vrot.lane.b32.xlu0 %v696, 64
      %v699 = vpop.permute.xlu0 %698
      %v701 = vmul.f32 %v683, %v699
      %s702 = scalar_lea.vmem [#allocation2], 16
      %703 = vst.msk [vmem:[%s702] sm:$0xff] %vm474, %v701
      %705 = vrot.lane.b32.xlu0 %v701, 96
      %v706 = vpop.permute.xlu0 %705
      %s708 = scalar_lea.vmem [#allocation3], 40
      %709 = vst.msk [vmem:[%s708] sm:$0xff] %vm474, %v706
      %s710 = scalar_lea.vmem [#allocation18], 48
      %v711 = vld [vmem:[%s710] sm:$0xff]
      %v712 = vld [vmem:[%s710 + $0x8] sm:$0xff]
      %v713 = vsel %vm369, %v701, 0
      %715 = vmatpush.msra.mxu0 0.0
      %716 = vmatpush.msra.mxu0 0.0
      %717 = vmatpush.msra.mxu0 0.0
      %718 = vmatpush.msra.mxu0 0.0
      %719 = vmatpush.msra.mxu0 0.0
      %720 = vmatpush.msra.mxu0 0.0
      %721 = vmatpush.msra.mxu0 0.0
      %722 = vmatpush.msra.mxu0 0.0
      %723 = vmatpush.msra.mxu0 %v124
      %724 = vmatpush.msra.mxu0 %v122
      %725 = vmatpush.msra.mxu0 %v120
      %726 = vmatpush.msra.mxu0 %v118
      %727 = vmatpush.msra.mxu0 %v116
      %728 = vmatpush.msra.mxu0 %v114
      %729 = vmatpush.msra.mxu0 %v112
      %730 = vmatpush.msra.mxu0 %v110
      %731 = vmatmul.f32.gmra.mxu0 %v713
      %v732 = vpop.f32.mrf.mxu0
      %v733 = vadd.f32 %v711, %v732
      %734 = vdwg.mxu0
      %735 = vmatpush.msra.mxu0 0.0
      %736 = vmatpush.msra.mxu0 0.0
      %737 = vmatpush.msra.mxu0 0.0
      %738 = vmatpush.msra.mxu0 0.0
      %739 = vmatpush.msra.mxu0 0.0
      %740 = vmatpush.msra.mxu0 0.0
      %741 = vmatpush.msra.mxu0 0.0
      %742 = vmatpush.msra.mxu0 0.0
      %743 = vmatpush.msra.mxu0 %v125
      %744 = vmatpush.msra.mxu0 %v123
      %745 = vmatpush.msra.mxu0 %v121
      %746 = vmatpush.msra.mxu0 %v119
      %747 = vmatpush.msra.mxu0 %v117
      %748 = vmatpush.msra.mxu0 %v115
      %749 = vmatpush.msra.mxu0 %v113
      %750 = vmatpush.msra.mxu0 %v111
      %751 = vmatmul.f32.gmra.mxu0 %v713
      %v752 = vpop.f32.mrf.mxu0
      %v753 = vadd.f32 %v712, %v752
      %754 = vdwg.mxu0
      %s755 = scalar_lea.vmem [#allocation19], 64
      %v756 = vld [vmem:[%s755] sm:$0xff]
      %v757 = vld [vmem:[%s755 + $0x8] sm:$0xff]
      %v758 = vadd.f32 %v733, %v756
      %v759 = vadd.f32 %v753, %v757
      %v760 = vxor.u32 %v758, 2147483648
      %v761 = vxor.u32 %v759, 2147483648
      %v762 = vmul.f32 %v760, 1.442695
      %v763 = vpow.pop %v762
      %v764 = vmul.f32 %v761, 1.442695
      %v765 = vpow.pop %v764
      %v766 = vadd.f32 %v763, 1.0
      %v767 = vadd.f32 %v765, 1.0
      %v768 = vrcp.pop %v766
      %v769 = vmul.f32 %v766, %v768
      %v770 = vsub.f32 1.0, %v769
      %v771 = vmul.f32 %v768, %v770
      %v772 = vadd.f32 %v768, %v771
      %vm773 = vweird.f32 %v766
      %vm774 = vweird.f32 %v768
      %vm775 = vmor %vm773, %vm774
      %v776 = vsel %vm775, %v768, %v772
      %v777 = vand.u32 2147483647, %v766
      %vm778 = vcmp.eq.f32.partialorder %v777, 8.507059e+37
      %v779 = vand.u32 %v766, 2147483648
      %v780 = vor.u32 1.1754944e-38, %v779
      %v781 = vsel %vm778, %v780, %v776
      %v782 = vmul.f32 1.0, %v781
      %v783 = vrcp.pop %v767
      %v784 = vmul.f32 %v767, %v783
      %v785 = vsub.f32 1.0, %v784
      %v786 = vmul.f32 %v783, %v785
      %v787 = vadd.f32 %v783, %v786
      %vm788 = vweird.f32 %v767
      %vm789 = vweird.f32 %v783
      %vm790 = vmor %vm788, %vm789
      %v791 = vsel %vm790, %v783, %v787
      %v792 = vand.u32 2147483647, %v767
      %vm793 = vcmp.eq.f32.partialorder %v792, 8.507059e+37
      %v794 = vand.u32 %v767, 2147483648
      %v795 = vor.u32 1.1754944e-38, %v794
      %v796 = vsel %vm793, %v795, %v791
      %v797 = vmul.f32 1.0, %v796
      %v798 = vtanh.pop %v759
      %v799 = vmul.f32 %v782, %v695
      %801 = vrot.lane.b32.xlu0 %v798, 64
      %v802 = vpop.permute.xlu0 %801
      %v804 = vmul.f32 %v782, %v802
      %806 = vrot.lane.b32.xlu0 %v804, 64
      %v807 = vpop.permute.xlu0 %806
      %v809 = vadd.f32 %v799, %v807
      %v810 = vtanh.pop %v809
      %812 = vrot.lane.b32.xlu0 %v810, 64
      %v813 = vpop.permute.xlu0 %812
      %v815 = vmul.f32 %v797, %v813
      %s816 = scalar_lea.vmem [#allocation2], 24
      %817 = vst.msk [vmem:[%s816] sm:$0xff] %vm474, %v815
      %819 = vrot.lane.b32.xlu0 %v815, 96
      %v820 = vpop.permute.xlu0 %819
      %s822 = scalar_lea.vmem [#allocation3], 32
      %823 = vst.msk [vmem:[%s822] sm:$0xff] %vm474, %v820
      %s824 = scalar_lea.vmem [#allocation18], 64
      %v825 = vld [vmem:[%s824] sm:$0xff]
      %v826 = vld [vmem:[%s824 + $0x8] sm:$0xff]
      %v827 = vsel %vm369, %v815, 0
      %829 = vmatpush.msra.mxu0 0.0
      %830 = vmatpush.msra.mxu0 0.0
      %831 = vmatpush.msra.mxu0 0.0
      %832 = vmatpush.msra.mxu0 0.0
      %833 = vmatpush.msra.mxu0 0.0
      %834 = vmatpush.msra.mxu0 0.0
      %835 = vmatpush.msra.mxu0 0.0
      %836 = vmatpush.msra.mxu0 0.0
      %837 = vmatpush.msra.mxu0 %v124
      %838 = vmatpush.msra.mxu0 %v122
      %839 = vmatpush.msra.mxu0 %v120
      %840 = vmatpush.msra.mxu0 %v118
      %841 = vmatpush.msra.mxu0 %v116
      %842 = vmatpush.msra.mxu0 %v114
      %843 = vmatpush.msra.mxu0 %v112
      %844 = vmatpush.msra.mxu0 %v110
      %845 = vmatmul.f32.gmra.mxu0 %v827
      %v846 = vpop.f32.mrf.mxu0
      %v847 = vadd.f32 %v825, %v846
      %848 = vdwg.mxu0
      %849 = vmatpush.msra.mxu0 0.0
      %850 = vmatpush.msra.mxu0 0.0
      %851 = vmatpush.msra.mxu0 0.0
      %852 = vmatpush.msra.mxu0 0.0
      %853 = vmatpush.msra.mxu0 0.0
      %854 = vmatpush.msra.mxu0 0.0
      %855 = vmatpush.msra.mxu0 0.0
      %856 = vmatpush.msra.mxu0 0.0
      %857 = vmatpush.msra.mxu0 %v125
      %858 = vmatpush.msra.mxu0 %v123
      %859 = vmatpush.msra.mxu0 %v121
      %860 = vmatpush.msra.mxu0 %v119
      %861 = vmatpush.msra.mxu0 %v117
      %862 = vmatpush.msra.mxu0 %v115
      %863 = vmatpush.msra.mxu0 %v113
      %864 = vmatpush.msra.mxu0 %v111
      %865 = vmatmul.f32.gmra.mxu0 %v827
      %v866 = vpop.f32.mrf.mxu0
      %v867 = vadd.f32 %v826, %v866
      %868 = vdwg.mxu0
      %s869 = scalar_lea.vmem [#allocation19], 48
      %v870 = vld [vmem:[%s869] sm:$0xff]
      %v871 = vld [vmem:[%s869 + $0x8] sm:$0xff]
      %v872 = vadd.f32 %v847, %v870
      %v873 = vadd.f32 %v867, %v871
      %v874 = vxor.u32 %v872, 2147483648
      %v875 = vxor.u32 %v873, 2147483648
      %v876 = vmul.f32 %v874, 1.442695
      %v877 = vpow.pop %v876
      %v878 = vmul.f32 %v875, 1.442695
      %v879 = vpow.pop %v878
      %v880 = vadd.f32 %v877, 1.0
      %v881 = vadd.f32 %v879, 1.0
      %v882 = vrcp.pop %v880
      %v883 = vmul.f32 %v880, %v882
      %v884 = vsub.f32 1.0, %v883
      %v885 = vmul.f32 %v882, %v884
      %v886 = vadd.f32 %v882, %v885
      %vm887 = vweird.f32 %v880
      %vm888 = vweird.f32 %v882
      %vm889 = vmor %vm887, %vm888
      %v890 = vsel %vm889, %v882, %v886
      %v891 = vand.u32 2147483647, %v880
      %vm892 = vcmp.eq.f32.partialorder %v891, 8.507059e+37
      %v893 = vand.u32 %v880, 2147483648
      %v894 = vor.u32 1.1754944e-38, %v893
      %v895 = vsel %vm892, %v894, %v890
      %v896 = vmul.f32 1.0, %v895
      %v897 = vrcp.pop %v881
      %v898 = vmul.f32 %v881, %v897
      %v899 = vsub.f32 1.0, %v898
      %v900 = vmul.f32 %v897, %v899
      %v901 = vadd.f32 %v897, %v900
      %vm902 = vweird.f32 %v881
      %vm903 = vweird.f32 %v897
      %vm904 = vmor %vm902, %vm903
      %v905 = vsel %vm904, %v897, %v901
      %v906 = vand.u32 2147483647, %v881
      %vm907 = vcmp.eq.f32.partialorder %v906, 8.507059e+37
      %v908 = vand.u32 %v881, 2147483648
      %v909 = vor.u32 1.1754944e-38, %v908
      %v910 = vsel %vm907, %v909, %v905
      %v911 = vmul.f32 1.0, %v910
      %v912 = vtanh.pop %v873
      %v913 = vmul.f32 %v896, %v809
      %915 = vrot.lane.b32.xlu0 %v912, 64
      %v916 = vpop.permute.xlu0 %915
      %v918 = vmul.f32 %v896, %v916
      %920 = vrot.lane.b32.xlu0 %v918, 64
      %v921 = vpop.permute.xlu0 %920
      %v923 = vadd.f32 %v913, %v921
      %v924 = vtanh.pop %v923
      %926 = vrot.lane.b32.xlu0 %v924, 64
      %v927 = vpop.permute.xlu0 %926
      %v929 = vmul.f32 %v911, %v927
      %s930 = scalar_lea.vmem [#allocation2], 32
      %931 = vst.msk [vmem:[%s930] sm:$0xff] %vm474, %v929
      %933 = vrot.lane.b32.xlu0 %v929, 96
      %v934 = vpop.permute.xlu0 %933
      %s936 = scalar_lea.vmem [#allocation3], 24
      %937 = vst.msk [vmem:[%s936] sm:$0xff] %vm474, %v934
      %s938 = scalar_lea.vmem [#allocation18], 80
      %v939 = vld [vmem:[%s938] sm:$0xff]
      %v940 = vld [vmem:[%s938 + $0x8] sm:$0xff]
      %v941 = vsel %vm369, %v929, 0
      %943 = vmatpush.msra.mxu0 0.0
      %944 = vmatpush.msra.mxu0 0.0
      %945 = vmatpush.msra.mxu0 0.0
      %946 = vmatpush.msra.mxu0 0.0
      %947 = vmatpush.msra.mxu0 0.0
      %948 = vmatpush.msra.mxu0 0.0
      %949 = vmatpush.msra.mxu0 0.0
      %950 = vmatpush.msra.mxu0 0.0
      %951 = vmatpush.msra.mxu0 %v124
      %952 = vmatpush.msra.mxu0 %v122
      %953 = vmatpush.msra.mxu0 %v120
      %954 = vmatpush.msra.mxu0 %v118
      %955 = vmatpush.msra.mxu0 %v116
      %956 = vmatpush.msra.mxu0 %v114
      %957 = vmatpush.msra.mxu0 %v112
      %958 = vmatpush.msra.mxu0 %v110
      %959 = vmatmul.f32.gmra.mxu0 %v941
      %v960 = vpop.f32.mrf.mxu0
      %v961 = vadd.f32 %v939, %v960
      %962 = vdwg.mxu0
      %963 = vmatpush.msra.mxu0 0.0
      %964 = vmatpush.msra.mxu0 0.0
      %965 = vmatpush.msra.mxu0 0.0
      %966 = vmatpush.msra.mxu0 0.0
      %967 = vmatpush.msra.mxu0 0.0
      %968 = vmatpush.msra.mxu0 0.0
      %969 = vmatpush.msra.mxu0 0.0
      %970 = vmatpush.msra.mxu0 0.0
      %971 = vmatpush.msra.mxu0 %v125
      %972 = vmatpush.msra.mxu0 %v123
      %973 = vmatpush.msra.mxu0 %v121
      %974 = vmatpush.msra.mxu0 %v119
      %975 = vmatpush.msra.mxu0 %v117
      %976 = vmatpush.msra.mxu0 %v115
      %977 = vmatpush.msra.mxu0 %v113
      %978 = vmatpush.msra.mxu0 %v111
      %979 = vmatmul.f32.gmra.mxu0 %v941
      %v980 = vpop.f32.mrf.mxu0
      %v981 = vadd.f32 %v940, %v980
      %982 = vdwg.mxu0
      %s983 = scalar_lea.vmem [#allocation19], 32
      %v984 = vld [vmem:[%s983] sm:$0xff]
      %v985 = vld [vmem:[%s983 + $0x8] sm:$0xff]
      %v986 = vadd.f32 %v961, %v984
      %v987 = vadd.f32 %v981, %v985
      %v988 = vxor.u32 %v986, 2147483648
      %v989 = vxor.u32 %v987, 2147483648
      %v990 = vmul.f32 %v988, 1.442695
      %v991 = vpow.pop %v990
      %v992 = vmul.f32 %v989, 1.442695
      %v993 = vpow.pop %v992
      %v994 = vadd.f32 %v991, 1.0
      %v995 = vadd.f32 %v993, 1.0
      %v996 = vrcp.pop %v994
      %v997 = vmul.f32 %v994, %v996
      %v998 = vsub.f32 1.0, %v997
      %v999 = vmul.f32 %v996, %v998
      %v1000 = vadd.f32 %v996, %v999
      %vm1001 = vweird.f32 %v994
      %vm1002 = vweird.f32 %v996
      %vm1003 = vmor %vm1001, %vm1002
      %v1004 = vsel %vm1003, %v996, %v1000
      %v1005 = vand.u32 2147483647, %v994
      %vm1006 = vcmp.eq.f32.partialorder %v1005, 8.507059e+37
      %v1007 = vand.u32 %v994, 2147483648
      %v1008 = vor.u32 1.1754944e-38, %v1007
      %v1009 = vsel %vm1006, %v1008, %v1004
      %v1010 = vmul.f32 1.0, %v1009
      %v1011 = vrcp.pop %v995
      %v1012 = vmul.f32 %v995, %v1011
      %v1013 = vsub.f32 1.0, %v1012
      %v1014 = vmul.f32 %v1011, %v1013
      %v1015 = vadd.f32 %v1011, %v1014
      %vm1016 = vweird.f32 %v995
      %vm1017 = vweird.f32 %v1011
      %vm1018 = vmor %vm1016, %vm1017
      %v1019 = vsel %vm1018, %v1011, %v1015
      %v1020 = vand.u32 2147483647, %v995
      %vm1021 = vcmp.eq.f32.partialorder %v1020, 8.507059e+37
      %v1022 = vand.u32 %v995, 2147483648
      %v1023 = vor.u32 1.1754944e-38, %v1022
      %v1024 = vsel %vm1021, %v1023, %v1019
      %v1025 = vmul.f32 1.0, %v1024
      %v1026 = vtanh.pop %v987
      %v1027 = vmul.f32 %v1010, %v923
      %1029 = vrot.lane.b32.xlu0 %v1026, 64
      %v1030 = vpop.permute.xlu0 %1029
      %v1032 = vmul.f32 %v1010, %v1030
      %1034 = vrot.lane.b32.xlu0 %v1032, 64
      %v1035 = vpop.permute.xlu0 %1034
      %v1037 = vadd.f32 %v1027, %v1035
      %v1038 = vtanh.pop %v1037
      %1040 = vrot.lane.b32.xlu0 %v1038, 64
      %v1041 = vpop.permute.xlu0 %1040
      %v1043 = vmul.f32 %v1025, %v1041
      %s1044 = scalar_lea.vmem [#allocation2], 40
      %1045 = vst.msk [vmem:[%s1044] sm:$0xff] %vm474, %v1043
      %1047 = vrot.lane.b32.xlu0 %v1043, 96
      %v1048 = vpop.permute.xlu0 %1047
      %s1050 = scalar_lea.vmem [#allocation3], 16
      %1051 = vst.msk [vmem:[%s1050] sm:$0xff] %vm474, %v1048
      %s1052 = scalar_lea.vmem [#allocation18], 96
      %v1053 = vld [vmem:[%s1052] sm:$0xff]
      %v1054 = vld [vmem:[%s1052 + $0x8] sm:$0xff]
      %v1055 = vsel %vm369, %v1043, 0
      %1057 = vmatpush.msra.mxu0 0.0
      %1058 = vmatpush.msra.mxu0 0.0
      %1059 = vmatpush.msra.mxu0 0.0
      %1060 = vmatpush.msra.mxu0 0.0
      %1061 = vmatpush.msra.mxu0 0.0
      %1062 = vmatpush.msra.mxu0 0.0
      %1063 = vmatpush.msra.mxu0 0.0
      %1064 = vmatpush.msra.mxu0 0.0
      %1065 = vmatpush.msra.mxu0 %v124
      %1066 = vmatpush.msra.mxu0 %v122
      %1067 = vmatpush.msra.mxu0 %v120
      %1068 = vmatpush.msra.mxu0 %v118
      %1069 = vmatpush.msra.mxu0 %v116
      %1070 = vmatpush.msra.mxu0 %v114
      %1071 = vmatpush.msra.mxu0 %v112
      %1072 = vmatpush.msra.mxu0 %v110
      %1073 = vmatmul.f32.gmra.mxu0 %v1055
      %v1074 = vpop.f32.mrf.mxu0
      %v1075 = vadd.f32 %v1053, %v1074
      %1076 = vdwg.mxu0
      %1077 = vmatpush.msra.mxu0 0.0
      %1078 = vmatpush.msra.mxu0 0.0
      %1079 = vmatpush.msra.mxu0 0.0
      %1080 = vmatpush.msra.mxu0 0.0
      %1081 = vmatpush.msra.mxu0 0.0
      %1082 = vmatpush.msra.mxu0 0.0
      %1083 = vmatpush.msra.mxu0 0.0
      %1084 = vmatpush.msra.mxu0 0.0
      %1085 = vmatpush.msra.mxu0 %v125
      %1086 = vmatpush.msra.mxu0 %v123
      %1087 = vmatpush.msra.mxu0 %v121
      %1088 = vmatpush.msra.mxu0 %v119
      %1089 = vmatpush.msra.mxu0 %v117
      %1090 = vmatpush.msra.mxu0 %v115
      %1091 = vmatpush.msra.mxu0 %v113
      %1092 = vmatpush.msra.mxu0 %v111
      %1093 = vmatmul.f32.gmra.mxu0 %v1055
      %v1094 = vpop.f32.mrf.mxu0
      %v1095 = vadd.f32 %v1054, %v1094
      %1096 = vdwg.mxu0
      %s1097 = scalar_lea.vmem [#allocation19], 16
      %v1098 = vld [vmem:[%s1097] sm:$0xff]
      %v1099 = vld [vmem:[%s1097 + $0x8] sm:$0xff]
      %v1100 = vadd.f32 %v1075, %v1098
      %v1101 = vadd.f32 %v1095, %v1099
      %v1102 = vxor.u32 %v1100, 2147483648
      %v1103 = vxor.u32 %v1101, 2147483648
      %v1104 = vmul.f32 %v1102, 1.442695
      %v1105 = vpow.pop %v1104
      %v1106 = vmul.f32 %v1103, 1.442695
      %v1107 = vpow.pop %v1106
      %v1108 = vadd.f32 %v1105, 1.0
      %v1109 = vadd.f32 %v1107, 1.0
      %v1110 = vrcp.pop %v1108
      %v1111 = vmul.f32 %v1108, %v1110
      %v1112 = vsub.f32 1.0, %v1111
      %v1113 = vmul.f32 %v1110, %v1112
      %v1114 = vadd.f32 %v1110, %v1113
      %vm1115 = vweird.f32 %v1108
      %vm1116 = vweird.f32 %v1110
      %vm1117 = vmor %vm1115, %vm1116
      %v1118 = vsel %vm1117, %v1110, %v1114
      %v1119 = vand.u32 2147483647, %v1108
      %vm1120 = vcmp.eq.f32.partialorder %v1119, 8.507059e+37
      %v1121 = vand.u32 %v1108, 2147483648
      %v1122 = vor.u32 1.1754944e-38, %v1121
      %v1123 = vsel %vm1120, %v1122, %v1118
      %v1124 = vmul.f32 1.0, %v1123
      %v1125 = vrcp.pop %v1109
      %v1126 = vmul.f32 %v1109, %v1125
      %v1127 = vsub.f32 1.0, %v1126
      %v1128 = vmul.f32 %v1125, %v1127
      %v1129 = vadd.f32 %v1125, %v1128
      %vm1130 = vweird.f32 %v1109
      %vm1131 = vweird.f32 %v1125
      %vm1132 = vmor %vm1130, %vm1131
      %v1133 = vsel %vm1132, %v1125, %v1129
      %v1134 = vand.u32 2147483647, %v1109
      %vm1135 = vcmp.eq.f32.partialorder %v1134, 8.507059e+37
      %v1136 = vand.u32 %v1109, 2147483648
      %v1137 = vor.u32 1.1754944e-38, %v1136
      %v1138 = vsel %vm1135, %v1137, %v1133
      %v1139 = vmul.f32 1.0, %v1138
      %v1140 = vtanh.pop %v1101
      %v1141 = vmul.f32 %v1124, %v1037
      %1143 = vrot.lane.b32.xlu0 %v1140, 64
      %v1144 = vpop.permute.xlu0 %1143
      %v1146 = vmul.f32 %v1124, %v1144
      %1148 = vrot.lane.b32.xlu0 %v1146, 64
      %v1149 = vpop.permute.xlu0 %1148
      %v1151 = vadd.f32 %v1141, %v1149
      %v1152 = vtanh.pop %v1151
      %1154 = vrot.lane.b32.xlu0 %v1152, 64
      %v1155 = vpop.permute.xlu0 %1154
      %v1157 = vmul.f32 %v1139, %v1155
      %s1158 = scalar_lea.vmem [#allocation2], 48
      %1159 = vst.msk [vmem:[%s1158] sm:$0xff] %vm474, %v1157
      %1161 = vrot.lane.b32.xlu0 %v1157, 96
      %v1162 = vpop.permute.xlu0 %1161
      %s1164 = scalar_lea.vmem [#allocation3], 8
      %1165 = vst.msk [vmem:[%s1164] sm:$0xff] %vm474, %v1162
      %s1166 = scalar_lea.vmem [#allocation18], 112
      %v1167 = vld [vmem:[%s1166] sm:$0xff]
      %v1168 = vld [vmem:[%s1166 + $0x8] sm:$0xff]
      %v1169 = vsel %vm369, %v1157, 0
      %1171 = vmatpush.msra.mxu0 0.0
      %1172 = vmatpush.msra.mxu0 0.0
      %1173 = vmatpush.msra.mxu0 0.0
      %1174 = vmatpush.msra.mxu0 0.0
      %1175 = vmatpush.msra.mxu0 0.0
      %1176 = vmatpush.msra.mxu0 0.0
      %1177 = vmatpush.msra.mxu0 0.0
      %1178 = vmatpush.msra.mxu0 0.0
      %1179 = vmatpush.msra.mxu0 %v124
      %1180 = vmatpush.msra.mxu0 %v122
      %1181 = vmatpush.msra.mxu0 %v120
      %1182 = vmatpush.msra.mxu0 %v118
      %1183 = vmatpush.msra.mxu0 %v116
      %1184 = vmatpush.msra.mxu0 %v114
      %1185 = vmatpush.msra.mxu0 %v112
      %1186 = vmatpush.msra.mxu0 %v110
      %1187 = vmatmul.f32.gmra.mxu0 %v1169
      %v1188 = vpop.f32.mrf.mxu0
      %v1189 = vadd.f32 %v1167, %v1188
      %1190 = vdwg.mxu0
      %1191 = vmatpush.msra.mxu0 0.0
      %1192 = vmatpush.msra.mxu0 0.0
      %1193 = vmatpush.msra.mxu0 0.0
      %1194 = vmatpush.msra.mxu0 0.0
      %1195 = vmatpush.msra.mxu0 0.0
      %1196 = vmatpush.msra.mxu0 0.0
      %1197 = vmatpush.msra.mxu0 0.0
      %1198 = vmatpush.msra.mxu0 0.0
      %1199 = vmatpush.msra.mxu0 %v125
      %1200 = vmatpush.msra.mxu0 %v123
      %1201 = vmatpush.msra.mxu0 %v121
      %1202 = vmatpush.msra.mxu0 %v119
      %1203 = vmatpush.msra.mxu0 %v117
      %1204 = vmatpush.msra.mxu0 %v115
      %1205 = vmatpush.msra.mxu0 %v113
      %1206 = vmatpush.msra.mxu0 %v111
      %1207 = vmatmul.f32.gmra.mxu0 %v1169
      %v1208 = vpop.f32.mrf.mxu0
      %v1209 = vadd.f32 %v1168, %v1208
      %1210 = vdwg.mxu0
      %v1211 = vld [vmem:[#allocation19] sm:$0xff]
      %v1212 = vld [vmem:[#allocation19 + $0x8] sm:$0xff]
      %v1213 = vadd.f32 %v1189, %v1211
      %v1214 = vadd.f32 %v1209, %v1212
      %v1215 = vxor.u32 %v1213, 2147483648
      %v1216 = vxor.u32 %v1214, 2147483648
      %v1217 = vmul.f32 %v1215, 1.442695
      %v1218 = vpow.pop %v1217
      %v1219 = vmul.f32 %v1216, 1.442695
      %v1220 = vpow.pop %v1219
      %v1221 = vadd.f32 %v1218, 1.0
      %v1222 = vadd.f32 %v1220, 1.0
      %v1223 = vrcp.pop %v1221
      %v1224 = vmul.f32 %v1221, %v1223
      %v1225 = vsub.f32 1.0, %v1224
      %v1226 = vmul.f32 %v1223, %v1225
      %v1227 = vadd.f32 %v1223, %v1226
      %vm1228 = vweird.f32 %v1221
      %vm1229 = vweird.f32 %v1223
      %vm1230 = vmor %vm1228, %vm1229
      %v1231 = vsel %vm1230, %v1223, %v1227
      %v1232 = vand.u32 2147483647, %v1221
      %vm1233 = vcmp.eq.f32.partialorder %v1232, 8.507059e+37
      %v1234 = vand.u32 %v1221, 2147483648
      %v1235 = vor.u32 1.1754944e-38, %v1234
      %v1236 = vsel %vm1233, %v1235, %v1231
      %v1237 = vmul.f32 1.0, %v1236
      %v1238 = vrcp.pop %v1222
      %v1239 = vmul.f32 %v1222, %v1238
      %v1240 = vsub.f32 1.0, %v1239
      %v1241 = vmul.f32 %v1238, %v1240
      %v1242 = vadd.f32 %v1238, %v1241
      %vm1243 = vweird.f32 %v1222
      %vm1244 = vweird.f32 %v1238
      %vm1245 = vmor %vm1243, %vm1244
      %v1246 = vsel %vm1245, %v1238, %v1242
      %v1247 = vand.u32 2147483647, %v1222
      %vm1248 = vcmp.eq.f32.partialorder %v1247, 8.507059e+37
      %v1249 = vand.u32 %v1222, 2147483648
      %v1250 = vor.u32 1.1754944e-38, %v1249
      %v1251 = vsel %vm1248, %v1250, %v1246
      %v1252 = vmul.f32 1.0, %v1251
      %v1253 = vtanh.pop %v1214
      %v1254 = vmul.f32 %v1237, %v1151
      %1256 = vrot.lane.b32.xlu0 %v1253, 64
      %v1257 = vpop.permute.xlu0 %1256
      %v1259 = vmul.f32 %v1237, %v1257
      %1261 = vrot.lane.b32.xlu0 %v1259, 64
      %v1262 = vpop.permute.xlu0 %1261
      %v1264 = vadd.f32 %v1254, %v1262
      %v1265 = vtanh.pop %v1264
      %1267 = vrot.lane.b32.xlu0 %v1265, 64
      %v1268 = vpop.permute.xlu0 %1267
      %v1270 = vmul.f32 %v1252, %v1268
      %s1271 = scalar_lea.vmem [#allocation2], 56
      %1272 = vst.msk [vmem:[%s1271] sm:$0xff] %vm474, %v1270
      %1274 = vrot.lane.b32.xlu0 %v1270, 96
      %v1275 = vpop.permute.xlu0 %1274
      %1277 = vst.msk [vmem:[#allocation3] sm:$0xff] %vm474, %v1275
      %1278 = vst.msk [vmem:[#allocation6] sm:$0xff] %vm369, %v1270
      %1280 = vrot.lane.b32.xlu0 %v1264, 64
      %v1281 = vpop.permute.xlu0 %1280
      %1283 = vst.msk [vmem:[#allocation7] sm:$0xff] %vm369, %v1281
    %v1284 = vld [vmem:[#allocation2] sm:$0xff]
    %v1285 = vld [vmem:[#allocation2 + $0x8] sm:$0xff]
    %v1286 = vld [vmem:[#allocation2 + $0x10] sm:$0xff]
    %v1287 = vld [vmem:[#allocation2 + $0x18] sm:$0xff]
    %v1288 = vld [vmem:[#allocation2 + $0x20] sm:$0xff]
    %v1289 = vld [vmem:[#allocation2 + $0x28] sm:$0xff]
    %v1290 = vld [vmem:[#allocation2 + $0x30] sm:$0xff]
    %v1291 = vld [vmem:[#allocation2 + $0x38] sm:$0xff]
    %v1292 = vld [vmem:[#allocation3] sm:$0xff]
    %v1293 = vld [vmem:[#allocation3 + $0x8] sm:$0xff]
    %v1294 = vld [vmem:[#allocation3 + $0x10] sm:$0xff]
    %v1295 = vld [vmem:[#allocation3 + $0x18] sm:$0xff]
    %v1296 = vld [vmem:[#allocation3 + $0x20] sm:$0xff]
    %v1297 = vld [vmem:[#allocation3 + $0x28] sm:$0xff]
    %v1298 = vld [vmem:[#allocation3 + $0x30] sm:$0xff]
    %v1299 = vld [vmem:[#allocation3 + $0x38] sm:$0xff]
    %1308 = vrot.lane.b32.xlu0 %v1292, 32
    %v1309 = vpop.permute.xlu0 %1308
    %1310 = vrot.lane.b32.xlu0 %v1293, 32
    %v1311 = vpop.permute.xlu0 %1310
    %1312 = vrot.lane.b32.xlu0 %v1294, 32
    %v1313 = vpop.permute.xlu0 %1312
    %1314 = vrot.lane.b32.xlu0 %v1295, 32
    %v1315 = vpop.permute.xlu0 %1314
    %1316 = vrot.lane.b32.xlu0 %v1296, 32
    %v1317 = vpop.permute.xlu0 %1316
    %1318 = vrot.lane.b32.xlu0 %v1297, 32
    %v1319 = vpop.permute.xlu0 %1318
    %1320 = vrot.lane.b32.xlu0 %v1298, 32
    %v1321 = vpop.permute.xlu0 %1320
    %1322 = vrot.lane.b32.xlu0 %v1299, 32
    %v1323 = vpop.permute.xlu0 %1322
    %vm1332 = vcmask 261120
    %v1333 = vsel %vm1332, %v1284, %v1309
    %v1334 = vsel %vm1332, %v1285, %v1311
    %v1335 = vsel %vm1332, %v1286, %v1313
    %v1336 = vsel %vm1332, %v1287, %v1315
    %v1337 = vsel %vm1332, %v1288, %v1317
    %v1338 = vsel %vm1332, %v1289, %v1319
    %v1339 = vsel %vm1332, %v1290, %v1321
    %v1340 = vsel %vm1332, %v1291, %v1323
    %v1341 = vld [vmem:[#allocation13] sm:$0xff]
    %v1342 = vld [vmem:[#allocation13 + $0x8] sm:$0xff]
    %v1343 = vld [vmem:[#allocation13 + $0x10] sm:$0xff]
    %v1344 = vld [vmem:[#allocation13 + $0x18] sm:$0xff]
    %v1345 = vld [vmem:[#allocation13 + $0x20] sm:$0xff]
    %v1346 = vld [vmem:[#allocation13 + $0x28] sm:$0xff]
    %v1347 = vld [vmem:[#allocation13 + $0x30] sm:$0xff]
    %v1348 = vld [vmem:[#allocation13 + $0x38] sm:$0xff]
    %v1349 = vld [vmem:[#allocation13 + $0x40] sm:$0xff]
    %v1350 = vld [vmem:[#allocation13 + $0x48] sm:$0xff]
    %v1351 = vld [vmem:[#allocation13 + $0x50] sm:$0xff]
    %v1352 = vld [vmem:[#allocation13 + $0x58] sm:$0xff]
    %v1353 = vld [vmem:[#allocation13 + $0x60] sm:$0xff]
    %v1354 = vld [vmem:[#allocation13 + $0x68] sm:$0xff]
    %v1355 = vld [vmem:[#allocation13 + $0x70] sm:$0xff]
    %v1356 = vld [vmem:[#allocation13 + $0x78] sm:$0xff]
    $region75: #{tpu_custom_call.1} parent=1
      #allocation20 [shape = 'u8[65536]{0}', space=vmem, size = 0x10000, scoped, tag = 'scoped memory for tpu_custom_call.1']
      #allocation21 [shape = 'u8[65536]{0}', space=vmem, size = 0x10000, scoped, tag = 'scoped memory for tpu_custom_call.1']
      %v1357 = vld [vmem:[#allocation8] sm:$0xff]
      %v1358 = vld [vmem:[#allocation8 + $0x8] sm:$0xff]
      %v1359 = vld [vmem:[#allocation8 + $0x10] sm:$0xff]
      %v1360 = vld [vmem:[#allocation8 + $0x18] sm:$0xff]
      %v1361 = vld [vmem:[#allocation8 + $0x20] sm:$0xff]
      %v1362 = vld [vmem:[#allocation8 + $0x28] sm:$0xff]
      %v1363 = vld [vmem:[#allocation8 + $0x30] sm:$0xff]
      %v1364 = vld [vmem:[#allocation8 + $0x38] sm:$0xff]
      %v1365 = vld [vmem:[#allocation8 + $0x40] sm:$0xff]
      %v1366 = vld [vmem:[#allocation8 + $0x48] sm:$0xff]
      %v1367 = vld [vmem:[#allocation8 + $0x50] sm:$0xff]
      %v1368 = vld [vmem:[#allocation8 + $0x58] sm:$0xff]
      %v1369 = vld [vmem:[#allocation8 + $0x60] sm:$0xff]
      %v1370 = vld [vmem:[#allocation8 + $0x68] sm:$0xff]
      %v1371 = vld [vmem:[#allocation8 + $0x70] sm:$0xff]
      %v1372 = vld [vmem:[#allocation8 + $0x78] sm:$0xff]
      %v1373 = vld [vmem:[%s9] sm:$0x3]
      %v1375 = vperm.slane %v1373, 0
      %v1376 = vperm.slane %v1373, 1
      %vm1379 = vcmask 523264
      %v1381 = vsel %vm1379, %v1333, 0
      %v1384 = vsel %vm1379, %v1334, 0
      %v1387 = vsel %vm1379, %v1335, 0
      %v1390 = vsel %vm1379, %v1336, 0
      %v1393 = vsel %vm1379, %v1337, 0
      %v1396 = vsel %vm1379, %v1338, 0
      %v1399 = vsel %vm1379, %v1339, 0
      %v1402 = vsel %vm1379, %v1340, 0
      %1404 = vmatpush.msra.mxu0 0.0
      %1405 = vmatpush.msra.mxu0 0.0
      %1406 = vmatpush.msra.mxu0 0.0
      %1407 = vmatpush.msra.mxu0 0.0
      %1408 = vmatpush.msra.mxu0 0.0
      %1409 = vmatpush.msra.mxu0 0.0
      %1410 = vmatpush.msra.mxu0 0.0
      %1411 = vmatpush.msra.mxu0 0.0
      %1412 = vmatpush.msra.mxu0 %v1371
      %1413 = vmatpush.msra.mxu0 %v1369
      %1414 = vmatpush.msra.mxu0 %v1367
      %1415 = vmatpush.msra.mxu0 %v1365
      %1416 = vmatpush.msra.mxu0 %v1363
      %1417 = vmatpush.msra.mxu0 %v1361
      %1418 = vmatpush.msra.mxu0 %v1359
      %1419 = vmatpush.msra.mxu0 %v1357
      %1420 = vmatmul.f32.gmra.mxu0 %v1381
      %v1421 = vpop.f32.mrf.mxu0
      %v1422 = vadd.f32 %v1375, %v1421
      %1423 = vmatmul.f32.gmra.mxu0 %v1384
      %v1424 = vpop.f32.mrf.mxu0
      %v1425 = vadd.f32 %v1375, %v1424
      %1426 = vmatmul.f32.gmra.mxu0 %v1387
      %v1427 = vpop.f32.mrf.mxu0
      %v1428 = vadd.f32 %v1375, %v1427
      %1429 = vmatmul.f32.gmra.mxu0 %v1390
      %v1430 = vpop.f32.mrf.mxu0
      %v1431 = vadd.f32 %v1375, %v1430
      %1432 = vmatmul.f32.gmra.mxu0 %v1393
      %v1433 = vpop.f32.mrf.mxu0
      %v1434 = vadd.f32 %v1375, %v1433
      %1435 = vmatmul.f32.gmra.mxu0 %v1396
      %v1436 = vpop.f32.mrf.mxu0
      %v1437 = vadd.f32 %v1375, %v1436
      %1438 = vmatmul.f32.gmra.mxu0 %v1399
      %v1439 = vpop.f32.mrf.mxu0
      %v1440 = vadd.f32 %v1375, %v1439
      %1441 = vmatmul.f32.gmra.mxu0 %v1402
      %v1442 = vpop.f32.mrf.mxu0
      %v1443 = vadd.f32 %v1375, %v1442
      %1444 = vdwg.mxu0
      %1445 = vmatpush.msra.mxu0 0.0
      %1446 = vmatpush.msra.mxu0 0.0
      %1447 = vmatpush.msra.mxu0 0.0
      %1448 = vmatpush.msra.mxu0 0.0
      %1449 = vmatpush.msra.mxu0 0.0
      %1450 = vmatpush.msra.mxu0 0.0
      %1451 = vmatpush.msra.mxu0 0.0
      %1452 = vmatpush.msra.mxu0 0.0
      %1453 = vmatpush.msra.mxu0 %v1372
      %1454 = vmatpush.msra.mxu0 %v1370
      %1455 = vmatpush.msra.mxu0 %v1368
      %1456 = vmatpush.msra.mxu0 %v1366
      %1457 = vmatpush.msra.mxu0 %v1364
      %1458 = vmatpush.msra.mxu0 %v1362
      %1459 = vmatpush.msra.mxu0 %v1360
      %1460 = vmatpush.msra.mxu0 %v1358
      %1461 = vmatmul.f32.gmra.mxu0 %v1381
      %v1462 = vpop.f32.mrf.mxu0
      %v1463 = vadd.f32 %v1376, %v1462
      %1464 = vmatmul.f32.gmra.mxu0 %v1384
      %v1465 = vpop.f32.mrf.mxu0
      %v1466 = vadd.f32 %v1376, %v1465
      %1467 = vmatmul.f32.gmra.mxu0 %v1387
      %v1468 = vpop.f32.mrf.mxu0
      %v1469 = vadd.f32 %v1376, %v1468
      %1470 = vmatmul.f32.gmra.mxu0 %v1390
      %v1471 = vpop.f32.mrf.mxu0
      %v1472 = vadd.f32 %v1376, %v1471
      %1473 = vmatmul.f32.gmra.mxu0 %v1393
      %v1474 = vpop.f32.mrf.mxu0
      %v1475 = vadd.f32 %v1376, %v1474
      %1476 = vmatmul.f32.gmra.mxu0 %v1396
      %v1477 = vpop.f32.mrf.mxu0
      %v1478 = vadd.f32 %v1376, %v1477
      %1479 = vmatmul.f32.gmra.mxu0 %v1399
      %v1480 = vpop.f32.mrf.mxu0
      %v1481 = vadd.f32 %v1376, %v1480
      %1482 = vmatmul.f32.gmra.mxu0 %v1402
      %v1483 = vpop.f32.mrf.mxu0
      %v1484 = vadd.f32 %v1376, %v1483
      %1485 = vdwg.mxu0
      %1486 = vst [vmem:[#allocation20] sm:$0xff] %v1422
      %1487 = vst [vmem:[#allocation20 + $0x8] sm:$0xff] %v1463
      %1488 = vst [vmem:[#allocation20 + $0x10] sm:$0xff] %v1425
      %1489 = vst [vmem:[#allocation20 + $0x18] sm:$0xff] %v1466
      %1490 = vst [vmem:[#allocation20 + $0x20] sm:$0xff] %v1428
      %1491 = vst [vmem:[#allocation20 + $0x28] sm:$0xff] %v1469
      %1492 = vst [vmem:[#allocation20 + $0x30] sm:$0xff] %v1431
      %1493 = vst [vmem:[#allocation20 + $0x38] sm:$0xff] %v1472
      %1494 = vst [vmem:[#allocation20 + $0x40] sm:$0xff] %v1434
      %1495 = vst [vmem:[#allocation20 + $0x48] sm:$0xff] %v1475
      %1496 = vst [vmem:[#allocation20 + $0x50] sm:$0xff] %v1437
      %1497 = vst [vmem:[#allocation20 + $0x58] sm:$0xff] %v1478
      %1498 = vst [vmem:[#allocation20 + $0x60] sm:$0xff] %v1440
      %1499 = vst [vmem:[#allocation20 + $0x68] sm:$0xff] %v1481
      %1500 = vst [vmem:[#allocation20 + $0x70] sm:$0xff] %v1443
      %1501 = vst [vmem:[#allocation20 + $0x78] sm:$0xff] %v1484
      %v1502 = vld [vmem:[#allocation11] sm:$0xff]
      %v1503 = vld [vmem:[#allocation11 + $0x8] sm:$0xff]
      %v1504 = vld [vmem:[#allocation11 + $0x10] sm:$0xff]
      %v1505 = vld [vmem:[#allocation11 + $0x18] sm:$0xff]
      %v1506 = vld [vmem:[#allocation11 + $0x20] sm:$0xff]
      %v1507 = vld [vmem:[#allocation11 + $0x28] sm:$0xff]
      %v1508 = vld [vmem:[#allocation11 + $0x30] sm:$0xff]
      %v1509 = vld [vmem:[#allocation11 + $0x38] sm:$0xff]
      %v1510 = vld [vmem:[#allocation11 + $0x40] sm:$0xff]
      %v1511 = vld [vmem:[#allocation11 + $0x48] sm:$0xff]
      %v1512 = vld [vmem:[#allocation11 + $0x50] sm:$0xff]
      %v1513 = vld [vmem:[#allocation11 + $0x58] sm:$0xff]
      %v1514 = vld [vmem:[#allocation11 + $0x60] sm:$0xff]
      %v1515 = vld [vmem:[#allocation11 + $0x68] sm:$0xff]
      %v1516 = vld [vmem:[#allocation11 + $0x70] sm:$0xff]
      %v1517 = vld [vmem:[#allocation11 + $0x78] sm:$0xff]
      %v1518 = vld [vmem:[%s10] sm:$0x3]
      %v1520 = vperm.slane %v1518, 0
      %v1521 = vperm.slane %v1518, 1
      %1524 = vmatpush.msra.mxu0 0.0
      %1525 = vmatpush.msra.mxu0 0.0
      %1526 = vmatpush.msra.mxu0 0.0
      %1527 = vmatpush.msra.mxu0 0.0
      %1528 = vmatpush.msra.mxu0 0.0
      %1529 = vmatpush.msra.mxu0 0.0
      %1530 = vmatpush.msra.mxu0 0.0
      %1531 = vmatpush.msra.mxu0 0.0
      %1532 = vmatpush.msra.mxu0 %v1516
      %1533 = vmatpush.msra.mxu0 %v1514
      %1534 = vmatpush.msra.mxu0 %v1512
      %1535 = vmatpush.msra.mxu0 %v1510
      %1536 = vmatpush.msra.mxu0 %v1508
      %1537 = vmatpush.msra.mxu0 %v1506
      %1538 = vmatpush.msra.mxu0 %v1504
      %1539 = vmatpush.msra.mxu0 %v1502
      %1540 = vmatmul.f32.gmra.mxu0 %v1381
      %v1541 = vpop.f32.mrf.mxu0
      %v1542 = vadd.f32 %v1520, %v1541
      %1543 = vmatmul.f32.gmra.mxu0 %v1384
      %v1544 = vpop.f32.mrf.mxu0
      %v1545 = vadd.f32 %v1520, %v1544
      %1546 = vmatmul.f32.gmra.mxu0 %v1387
      %v1547 = vpop.f32.mrf.mxu0
      %v1548 = vadd.f32 %v1520, %v1547
      %1549 = vmatmul.f32.gmra.mxu0 %v1390
      %v1550 = vpop.f32.mrf.mxu0
      %v1551 = vadd.f32 %v1520, %v1550
      %1552 = vmatmul.f32.gmra.mxu0 %v1393
      %v1553 = vpop.f32.mrf.mxu0
      %v1554 = vadd.f32 %v1520, %v1553
      %1555 = vmatmul.f32.gmra.mxu0 %v1396
      %v1556 = vpop.f32.mrf.mxu0
      %v1557 = vadd.f32 %v1520, %v1556
      %1558 = vmatmul.f32.gmra.mxu0 %v1399
      %v1559 = vpop.f32.mrf.mxu0
      %v1560 = vadd.f32 %v1520, %v1559
      %1561 = vmatmul.f32.gmra.mxu0 %v1402
      %v1562 = vpop.f32.mrf.mxu0
      %v1563 = vadd.f32 %v1520, %v1562
      %1564 = vdwg.mxu0
      %1565 = vmatpush.msra.mxu0 0.0
      %1566 = vmatpush.msra.mxu0 0.0
      %1567 = vmatpush.msra.mxu0 0.0
      %1568 = vmatpush.msra.mxu0 0.0
      %1569 = vmatpush.msra.mxu0 0.0
      %1570 = vmatpush.msra.mxu0 0.0
      %1571 = vmatpush.msra.mxu0 0.0
      %1572 = vmatpush.msra.mxu0 0.0
      %1573 = vmatpush.msra.mxu0 %v1517
      %1574 = vmatpush.msra.mxu0 %v1515
      %1575 = vmatpush.msra.mxu0 %v1513
      %1576 = vmatpush.msra.mxu0 %v1511
      %1577 = vmatpush.msra.mxu0 %v1509
      %1578 = vmatpush.msra.mxu0 %v1507
      %1579 = vmatpush.msra.mxu0 %v1505
      %1580 = vmatpush.msra.mxu0 %v1503
      %1581 = vmatmul.f32.gmra.mxu0 %v1381
      %v1582 = vpop.f32.mrf.mxu0
      %v1583 = vadd.f32 %v1521, %v1582
      %1584 = vmatmul.f32.gmra.mxu0 %v1384
      %v1585 = vpop.f32.mrf.mxu0
      %v1586 = vadd.f32 %v1521, %v1585
      %1587 = vmatmul.f32.gmra.mxu0 %v1387
      %v1588 = vpop.f32.mrf.mxu0
      %v1589 = vadd.f32 %v1521, %v1588
      %1590 = vmatmul.f32.gmra.mxu0 %v1390
      %v1591 = vpop.f32.mrf.mxu0
      %v1592 = vadd.f32 %v1521, %v1591
      %1593 = vmatmul.f32.gmra.mxu0 %v1393
      %v1594 = vpop.f32.mrf.mxu0
      %v1595 = vadd.f32 %v1521, %v1594
      %1596 = vmatmul.f32.gmra.mxu0 %v1396
      %v1597 = vpop.f32.mrf.mxu0
      %v1598 = vadd.f32 %v1521, %v1597
      %1599 = vmatmul.f32.gmra.mxu0 %v1399
      %v1600 = vpop.f32.mrf.mxu0
      %v1601 = vadd.f32 %v1521, %v1600
      %1602 = vmatmul.f32.gmra.mxu0 %v1402
      %v1603 = vpop.f32.mrf.mxu0
      %v1604 = vadd.f32 %v1521, %v1603
      %1605 = vdwg.mxu0
      %1606 = vst [vmem:[#allocation21] sm:$0xff] %v1542
      %1607 = vst [vmem:[#allocation21 + $0x8] sm:$0xff] %v1583
      %1608 = vst [vmem:[#allocation21 + $0x10] sm:$0xff] %v1545
      %1609 = vst [vmem:[#allocation21 + $0x18] sm:$0xff] %v1586
      %1610 = vst [vmem:[#allocation21 + $0x20] sm:$0xff] %v1548
      %1611 = vst [vmem:[#allocation21 + $0x28] sm:$0xff] %v1589
      %1612 = vst [vmem:[#allocation21 + $0x30] sm:$0xff] %v1551
      %1613 = vst [vmem:[#allocation21 + $0x38] sm:$0xff] %v1592
      %1614 = vst [vmem:[#allocation21 + $0x40] sm:$0xff] %v1554
      %1615 = vst [vmem:[#allocation21 + $0x48] sm:$0xff] %v1595
      %1616 = vst [vmem:[#allocation21 + $0x50] sm:$0xff] %v1557
      %1617 = vst [vmem:[#allocation21 + $0x58] sm:$0xff] %v1598
      %1618 = vst [vmem:[#allocation21 + $0x60] sm:$0xff] %v1560
      %1619 = vst [vmem:[#allocation21 + $0x68] sm:$0xff] %v1601
      %1620 = vst [vmem:[#allocation21 + $0x70] sm:$0xff] %v1563
      %1621 = vst [vmem:[#allocation21 + $0x78] sm:$0xff] %v1604
      %v1622 = vld [vmem:[#allocation20] sm:$0xff]
      %v1623 = vld [vmem:[#allocation20 + $0x8] sm:$0xff]
      %v1625 = vsel %vm1379, 0.0, 0
      %1627 = vmatpush.msra.mxu0 0.0
      %1628 = vmatpush.msra.mxu0 0.0
      %1629 = vmatpush.msra.mxu0 0.0
      %1630 = vmatpush.msra.mxu0 0.0
      %1631 = vmatpush.msra.mxu0 0.0
      %1632 = vmatpush.msra.mxu0 0.0
      %1633 = vmatpush.msra.mxu0 0.0
      %1634 = vmatpush.msra.mxu0 0.0
      %1635 = vmatpush.msra.mxu0 %v1355
      %1636 = vmatpush.msra.mxu0 %v1353
      %1637 = vmatpush.msra.mxu0 %v1351
      %1638 = vmatpush.msra.mxu0 %v1349
      %1639 = vmatpush.msra.mxu0 %v1347
      %1640 = vmatpush.msra.mxu0 %v1345
      %1641 = vmatpush.msra.mxu0 %v1343
      %1642 = vmatpush.msra.mxu0 %v1341
      %1643 = vmatmul.f32.gmra.mxu0 %v1625
      %v1644 = vpop.f32.mrf.mxu0
      %v1645 = vadd.f32 %v1622, %v1644
      %1646 = vdwg.mxu0
      %1647 = vmatpush.msra.mxu0 0.0
      %1648 = vmatpush.msra.mxu0 0.0
      %1649 = vmatpush.msra.mxu0 0.0
      %1650 = vmatpush.msra.mxu0 0.0
      %1651 = vmatpush.msra.mxu0 0.0
      %1652 = vmatpush.msra.mxu0 0.0
      %1653 = vmatpush.msra.mxu0 0.0
      %1654 = vmatpush.msra.mxu0 0.0
      %1655 = vmatpush.msra.mxu0 %v1356
      %1656 = vmatpush.msra.mxu0 %v1354
      %1657 = vmatpush.msra.mxu0 %v1352
      %1658 = vmatpush.msra.mxu0 %v1350
      %1659 = vmatpush.msra.mxu0 %v1348
      %1660 = vmatpush.msra.mxu0 %v1346
      %1661 = vmatpush.msra.mxu0 %v1344
      %1662 = vmatpush.msra.mxu0 %v1342
      %1663 = vmatmul.f32.gmra.mxu0 %v1625
      %v1664 = vpop.f32.mrf.mxu0
      %v1665 = vadd.f32 %v1623, %v1664
      %1666 = vdwg.mxu0
      %s1667 = scalar_lea.vmem [#allocation21], 112
      %v1668 = vld [vmem:[%s1667] sm:$0xff]
      %v1669 = vld [vmem:[%s1667 + $0x8] sm:$0xff]
      %v1670 = vadd.f32 %v1645, %v1668
      %v1671 = vadd.f32 %v1665, %v1669
      %v1672 = vxor.u32 %v1670, 2147483648
      %v1673 = vxor.u32 %v1671, 2147483648
      %v1674 = vmul.f32 %v1672, 1.442695
      %v1675 = vpow.pop %v1674
      %v1676 = vmul.f32 %v1673, 1.442695
      %v1677 = vpow.pop %v1676
      %v1678 = vadd.f32 %v1675, 1.0
      %v1679 = vadd.f32 %v1677, 1.0
      %v1680 = vrcp.pop %v1678
      %v1681 = vmul.f32 %v1678, %v1680
      %v1682 = vsub.f32 1.0, %v1681
      %v1683 = vmul.f32 %v1680, %v1682
      %v1684 = vadd.f32 %v1680, %v1683
      %vm1685 = vweird.f32 %v1678
      %vm1686 = vweird.f32 %v1680
      %vm1687 = vmor %vm1685, %vm1686
      %v1688 = vsel %vm1687, %v1680, %v1684
      %v1689 = vand.u32 2147483647, %v1678
      %vm1690 = vcmp.eq.f32.partialorder %v1689, 8.507059e+37
      %v1691 = vand.u32 %v1678, 2147483648
      %v1692 = vor.u32 1.1754944e-38, %v1691
      %v1693 = vsel %vm1690, %v1692, %v1688
      %v1694 = vmul.f32 1.0, %v1693
      %v1695 = vrcp.pop %v1679
      %v1696 = vmul.f32 %v1679, %v1695
      %v1697 = vsub.f32 1.0, %v1696
      %v1698 = vmul.f32 %v1695, %v1697
      %v1699 = vadd.f32 %v1695, %v1698
      %vm1700 = vweird.f32 %v1679
      %vm1701 = vweird.f32 %v1695
      %vm1702 = vmor %vm1700, %vm1701
      %v1703 = vsel %vm1702, %v1695, %v1699
      %v1704 = vand.u32 2147483647, %v1679
      %vm1705 = vcmp.eq.f32.partialorder %v1704, 8.507059e+37
      %v1706 = vand.u32 %v1679, 2147483648
      %v1707 = vor.u32 1.1754944e-38, %v1706
      %v1708 = vsel %vm1705, %v1707, %v1703
      %v1709 = vmul.f32 1.0, %v1708
      %v1710 = vtanh.pop %v1671
      %v1711 = vmul.f32 %v1694, 0.0
      %1713 = vrot.lane.b32.xlu0 %v1710, 64
      %v1714 = vpop.permute.xlu0 %1713
      %v1716 = vmul.f32 %v1694, %v1714
      %1718 = vrot.lane.b32.xlu0 %v1716, 64
      %v1719 = vpop.permute.xlu0 %1718
      %v1721 = vadd.f32 %v1711, %v1719
      %v1722 = vtanh.pop %v1721
      %1724 = vrot.lane.b32.xlu0 %v1722, 64
      %v1725 = vpop.permute.xlu0 %1724
      %v1727 = vmul.f32 %v1709, %v1725
      %1728 = vst.msk [vmem:[#allocation4] sm:$0xff] %vm1332, %v1727
      %1730 = vrot.lane.b32.xlu0 %v1727, 96
      %v1731 = vpop.permute.xlu0 %1730
      %s1733 = scalar_lea.vmem [#allocation5], 56
      %1734 = vst.msk [vmem:[%s1733] sm:$0xff] %vm1332, %v1731
      %s1735 = scalar_lea.vmem [#allocation20], 16
      %v1736 = vld [vmem:[%s1735] sm:$0xff]
      %v1737 = vld [vmem:[%s1735 + $0x8] sm:$0xff]
      %v1738 = vsel %vm1379, %v1727, 0
      %1740 = vmatpush.msra.mxu0 0.0
      %1741 = vmatpush.msra.mxu0 0.0
      %1742 = vmatpush.msra.mxu0 0.0
      %1743 = vmatpush.msra.mxu0 0.0
      %1744 = vmatpush.msra.mxu0 0.0
      %1745 = vmatpush.msra.mxu0 0.0
      %1746 = vmatpush.msra.mxu0 0.0
      %1747 = vmatpush.msra.mxu0 0.0
      %1748 = vmatpush.msra.mxu0 %v1355
      %1749 = vmatpush.msra.mxu0 %v1353
      %1750 = vmatpush.msra.mxu0 %v1351
      %1751 = vmatpush.msra.mxu0 %v1349
      %1752 = vmatpush.msra.mxu0 %v1347
      %1753 = vmatpush.msra.mxu0 %v1345
      %1754 = vmatpush.msra.mxu0 %v1343
      %1755 = vmatpush.msra.mxu0 %v1341
      %1756 = vmatmul.f32.gmra.mxu0 %v1738
      %v1757 = vpop.f32.mrf.mxu0
      %v1758 = vadd.f32 %v1736, %v1757
      %1759 = vdwg.mxu0
      %1760 = vmatpush.msra.mxu0 0.0
      %1761 = vmatpush.msra.mxu0 0.0
      %1762 = vmatpush.msra.mxu0 0.0
      %1763 = vmatpush.msra.mxu0 0.0
      %1764 = vmatpush.msra.mxu0 0.0
      %1765 = vmatpush.msra.mxu0 0.0
      %1766 = vmatpush.msra.mxu0 0.0
      %1767 = vmatpush.msra.mxu0 0.0
      %1768 = vmatpush.msra.mxu0 %v1356
      %1769 = vmatpush.msra.mxu0 %v1354
      %1770 = vmatpush.msra.mxu0 %v1352
      %1771 = vmatpush.msra.mxu0 %v1350
      %1772 = vmatpush.msra.mxu0 %v1348
      %1773 = vmatpush.msra.mxu0 %v1346
      %1774 = vmatpush.msra.mxu0 %v1344
      %1775 = vmatpush.msra.mxu0 %v1342
      %1776 = vmatmul.f32.gmra.mxu0 %v1738
      %v1777 = vpop.f32.mrf.mxu0
      %v1778 = vadd.f32 %v1737, %v1777
      %1779 = vdwg.mxu0
      %s1780 = scalar_lea.vmem [#allocation21], 96
      %v1781 = vld [vmem:[%s1780] sm:$0xff]
      %v1782 = vld [vmem:[%s1780 + $0x8] sm:$0xff]
      %v1783 = vadd.f32 %v1758, %v1781
      %v1784 = vadd.f32 %v1778, %v1782
      %v1785 = vxor.u32 %v1783, 2147483648
      %v1786 = vxor.u32 %v1784, 2147483648
      %v1787 = vmul.f32 %v1785, 1.442695
      %v1788 = vpow.pop %v1787
      %v1789 = vmul.f32 %v1786, 1.442695
      %v1790 = vpow.pop %v1789
      %v1791 = vadd.f32 %v1788, 1.0
      %v1792 = vadd.f32 %v1790, 1.0
      %v1793 = vrcp.pop %v1791
      %v1794 = vmul.f32 %v1791, %v1793
      %v1795 = vsub.f32 1.0, %v1794
      %v1796 = vmul.f32 %v1793, %v1795
      %v1797 = vadd.f32 %v1793, %v1796
      %vm1798 = vweird.f32 %v1791
      %vm1799 = vweird.f32 %v1793
      %vm1800 = vmor %vm1798, %vm1799
      %v1801 = vsel %vm1800, %v1793, %v1797
      %v1802 = vand.u32 2147483647, %v1791
      %vm1803 = vcmp.eq.f32.partialorder %v1802, 8.507059e+37
      %v1804 = vand.u32 %v1791, 2147483648
      %v1805 = vor.u32 1.1754944e-38, %v1804
      %v1806 = vsel %vm1803, %v1805, %v1801
      %v1807 = vmul.f32 1.0, %v1806
      %v1808 = vrcp.pop %v1792
      %v1809 = vmul.f32 %v1792, %v1808
      %v1810 = vsub.f32 1.0, %v1809
      %v1811 = vmul.f32 %v1808, %v1810
      %v1812 = vadd.f32 %v1808, %v1811
      %vm1813 = vweird.f32 %v1792
      %vm1814 = vweird.f32 %v1808
      %vm1815 = vmor %vm1813, %vm1814
      %v1816 = vsel %vm1815, %v1808, %v1812
      %v1817 = vand.u32 2147483647, %v1792
      %vm1818 = vcmp.eq.f32.partialorder %v1817, 8.507059e+37
      %v1819 = vand.u32 %v1792, 2147483648
      %v1820 = vor.u32 1.1754944e-38, %v1819
      %v1821 = vsel %vm1818, %v1820, %v1816
      %v1822 = vmul.f32 1.0, %v1821
      %v1823 = vtanh.pop %v1784
      %v1824 = vmul.f32 %v1807, %v1721
      %1826 = vrot.lane.b32.xlu0 %v1823, 64
      %v1827 = vpop.permute.xlu0 %1826
      %v1829 = vmul.f32 %v1807, %v1827
      %1831 = vrot.lane.b32.xlu0 %v1829, 64
      %v1832 = vpop.permute.xlu0 %1831
      %v1834 = vadd.f32 %v1824, %v1832
      %v1835 = vtanh.pop %v1834
      %1837 = vrot.lane.b32.xlu0 %v1835, 64
      %v1838 = vpop.permute.xlu0 %1837
      %v1840 = vmul.f32 %v1822, %v1838
      %s1841 = scalar_lea.vmem [#allocation4], 8
      %1842 = vst.msk [vmem:[%s1841] sm:$0xff] %vm1332, %v1840
      %1844 = vrot.lane.b32.xlu0 %v1840, 96
      %v1845 = vpop.permute.xlu0 %1844
      %s1847 = scalar_lea.vmem [#allocation5], 48
      %1848 = vst.msk [vmem:[%s1847] sm:$0xff] %vm1332, %v1845
      %s1849 = scalar_lea.vmem [#allocation20], 32
      %v1850 = vld [vmem:[%s1849] sm:$0xff]
      %v1851 = vld [vmem:[%s1849 + $0x8] sm:$0xff]
      %v1852 = vsel %vm1379, %v1840, 0
      %1854 = vmatpush.msra.mxu0 0.0
      %1855 = vmatpush.msra.mxu0 0.0
      %1856 = vmatpush.msra.mxu0 0.0
      %1857 = vmatpush.msra.mxu0 0.0
      %1858 = vmatpush.msra.mxu0 0.0
      %1859 = vmatpush.msra.mxu0 0.0
      %1860 = vmatpush.msra.mxu0 0.0
      %1861 = vmatpush.msra.mxu0 0.0
      %1862 = vmatpush.msra.mxu0 %v1355
      %1863 = vmatpush.msra.mxu0 %v1353
      %1864 = vmatpush.msra.mxu0 %v1351
      %1865 = vmatpush.msra.mxu0 %v1349
      %1866 = vmatpush.msra.mxu0 %v1347
      %1867 = vmatpush.msra.mxu0 %v1345
      %1868 = vmatpush.msra.mxu0 %v1343
      %1869 = vmatpush.msra.mxu0 %v1341
      %1870 = vmatmul.f32.gmra.mxu0 %v1852
      %v1871 = vpop.f32.mrf.mxu0
      %v1872 = vadd.f32 %v1850, %v1871
      %1873 = vdwg.mxu0
      %1874 = vmatpush.msra.mxu0 0.0
      %1875 = vmatpush.msra.mxu0 0.0
      %1876 = vmatpush.msra.mxu0 0.0
      %1877 = vmatpush.msra.mxu0 0.0
      %1878 = vmatpush.msra.mxu0 0.0
      %1879 = vmatpush.msra.mxu0 0.0
      %1880 = vmatpush.msra.mxu0 0.0
      %1881 = vmatpush.msra.mxu0 0.0
      %1882 = vmatpush.msra.mxu0 %v1356
      %1883 = vmatpush.msra.mxu0 %v1354
      %1884 = vmatpush.msra.mxu0 %v1352
      %1885 = vmatpush.msra.mxu0 %v1350
      %1886 = vmatpush.msra.mxu0 %v1348
      %1887 = vmatpush.msra.mxu0 %v1346
      %1888 = vmatpush.msra.mxu0 %v1344
      %1889 = vmatpush.msra.mxu0 %v1342
      %1890 = vmatmul.f32.gmra.mxu0 %v1852
      %v1891 = vpop.f32.mrf.mxu0
      %v1892 = vadd.f32 %v1851, %v1891
      %1893 = vdwg.mxu0
      %s1894 = scalar_lea.vmem [#allocation21], 80
      %v1895 = vld [vmem:[%s1894] sm:$0xff]
      %v1896 = vld [vmem:[%s1894 + $0x8] sm:$0xff]
      %v1897 = vadd.f32 %v1872, %v1895
      %v1898 = vadd.f32 %v1892, %v1896
      %v1899 = vxor.u32 %v1897, 2147483648
      %v1900 = vxor.u32 %v1898, 2147483648
      %v1901 = vmul.f32 %v1899, 1.442695
      %v1902 = vpow.pop %v1901
      %v1903 = vmul.f32 %v1900, 1.442695
      %v1904 = vpow.pop %v1903
      %v1905 = vadd.f32 %v1902, 1.0
      %v1906 = vadd.f32 %v1904, 1.0
      %v1907 = vrcp.pop %v1905
      %v1908 = vmul.f32 %v1905, %v1907
      %v1909 = vsub.f32 1.0, %v1908
      %v1910 = vmul.f32 %v1907, %v1909
      %v1911 = vadd.f32 %v1907, %v1910
      %vm1912 = vweird.f32 %v1905
      %vm1913 = vweird.f32 %v1907
      %vm1914 = vmor %vm1912, %vm1913
      %v1915 = vsel %vm1914, %v1907, %v1911
      %v1916 = vand.u32 2147483647, %v1905
      %vm1917 = vcmp.eq.f32.partialorder %v1916, 8.507059e+37
      %v1918 = vand.u32 %v1905, 2147483648
      %v1919 = vor.u32 1.1754944e-38, %v1918
      %v1920 = vsel %vm1917, %v1919, %v1915
      %v1921 = vmul.f32 1.0, %v1920
      %v1922 = vrcp.pop %v1906
      %v1923 = vmul.f32 %v1906, %v1922
      %v1924 = vsub.f32 1.0, %v1923
      %v1925 = vmul.f32 %v1922, %v1924
      %v1926 = vadd.f32 %v1922, %v1925
      %vm1927 = vweird.f32 %v1906
      %vm1928 = vweird.f32 %v1922
      %vm1929 = vmor %vm1927, %vm1928
      %v1930 = vsel %vm1929, %v1922, %v1926
      %v1931 = vand.u32 2147483647, %v1906
      %vm1932 = vcmp.eq.f32.partialorder %v1931, 8.507059e+37
      %v1933 = vand.u32 %v1906, 2147483648
      %v1934 = vor.u32 1.1754944e-38, %v1933
      %v1935 = vsel %vm1932, %v1934, %v1930
      %v1936 = vmul.f32 1.0, %v1935
      %v1937 = vtanh.pop %v1898
      %v1938 = vmul.f32 %v1921, %v1834
      %1940 = vrot.lane.b32.xlu0 %v1937, 64
      %v1941 = vpop.permute.xlu0 %1940
      %v1943 = vmul.f32 %v1921, %v1941
      %1945 = vrot.lane.b32.xlu0 %v1943, 64
      %v1946 = vpop.permute.xlu0 %1945
      %v1948 = vadd.f32 %v1938, %v1946
      %v1949 = vtanh.pop %v1948
      %1951 = vrot.lane.b32.xlu0 %v1949, 64
      %v1952 = vpop.permute.xlu0 %1951
      %v1954 = vmul.f32 %v1936, %v1952
      %s1955 = scalar_lea.vmem [#allocation4], 16
      %1956 = vst.msk [vmem:[%s1955] sm:$0xff] %vm1332, %v1954
      %1958 = vrot.lane.b32.xlu0 %v1954, 96
      %v1959 = vpop.permute.xlu0 %1958
      %s1961 = scalar_lea.vmem [#allocation5], 40
      %1962 = vst.msk [vmem:[%s1961] sm:$0xff] %vm1332, %v1959
      %s1963 = scalar_lea.vmem [#allocation20], 48
      %v1964 = vld [vmem:[%s1963] sm:$0xff]
      %v1965 = vld [vmem:[%s1963 + $0x8] sm:$0xff]
      %v1966 = vsel %vm1379, %v1954, 0
      %1968 = vmatpush.msra.mxu0 0.0
      %1969 = vmatpush.msra.mxu0 0.0
      %1970 = vmatpush.msra.mxu0 0.0
      %1971 = vmatpush.msra.mxu0 0.0
      %1972 = vmatpush.msra.mxu0 0.0
      %1973 = vmatpush.msra.mxu0 0.0
      %1974 = vmatpush.msra.mxu0 0.0
      %1975 = vmatpush.msra.mxu0 0.0
      %1976 = vmatpush.msra.mxu0 %v1355
      %1977 = vmatpush.msra.mxu0 %v1353
      %1978 = vmatpush.msra.mxu0 %v1351
      %1979 = vmatpush.msra.mxu0 %v1349
      %1980 = vmatpush.msra.mxu0 %v1347
      %1981 = vmatpush.msra.mxu0 %v1345
      %1982 = vmatpush.msra.mxu0 %v1343
      %1983 = vmatpush.msra.mxu0 %v1341
      %1984 = vmatmul.f32.gmra.mxu0 %v1966
      %v1985 = vpop.f32.mrf.mxu0
      %v1986 = vadd.f32 %v1964, %v1985
      %1987 = vdwg.mxu0
      %1988 = vmatpush.msra.mxu0 0.0
      %1989 = vmatpush.msra.mxu0 0.0
      %1990 = vmatpush.msra.mxu0 0.0
      %1991 = vmatpush.msra.mxu0 0.0
      %1992 = vmatpush.msra.mxu0 0.0
      %1993 = vmatpush.msra.mxu0 0.0
      %1994 = vmatpush.msra.mxu0 0.0
      %1995 = vmatpush.msra.mxu0 0.0
      %1996 = vmatpush.msra.mxu0 %v1356
      %1997 = vmatpush.msra.mxu0 %v1354
      %1998 = vmatpush.msra.mxu0 %v1352
      %1999 = vmatpush.msra.mxu0 %v1350
      %2000 = vmatpush.msra.mxu0 %v1348
      %2001 = vmatpush.msra.mxu0 %v1346
      %2002 = vmatpush.msra.mxu0 %v1344
      %2003 = vmatpush.msra.mxu0 %v1342
      %2004 = vmatmul.f32.gmra.mxu0 %v1966
      %v2005 = vpop.f32.mrf.mxu0
      %v2006 = vadd.f32 %v1965, %v2005
      %2007 = vdwg.mxu0
      %s2008 = scalar_lea.vmem [#allocation21], 64
      %v2009 = vld [vmem:[%s2008] sm:$0xff]
      %v2010 = vld [vmem:[%s2008 + $0x8] sm:$0xff]
      %v2011 = vadd.f32 %v1986, %v2009
      %v2012 = vadd.f32 %v2006, %v2010
      %v2013 = vxor.u32 %v2011, 2147483648
      %v2014 = vxor.u32 %v2012, 2147483648
      %v2015 = vmul.f32 %v2013, 1.442695
      %v2016 = vpow.pop %v2015
      %v2017 = vmul.f32 %v2014, 1.442695
      %v2018 = vpow.pop %v2017
      %v2019 = vadd.f32 %v2016, 1.0
      %v2020 = vadd.f32 %v2018, 1.0
      %v2021 = vrcp.pop %v2019
      %v2022 = vmul.f32 %v2019, %v2021
      %v2023 = vsub.f32 1.0, %v2022
      %v2024 = vmul.f32 %v2021, %v2023
      %v2025 = vadd.f32 %v2021, %v2024
      %vm2026 = vweird.f32 %v2019
      %vm2027 = vweird.f32 %v2021
      %vm2028 = vmor %vm2026, %vm2027
      %v2029 = vsel %vm2028, %v2021, %v2025
      %v2030 = vand.u32 2147483647, %v2019
      %vm2031 = vcmp.eq.f32.partialorder %v2030, 8.507059e+37
      %v2032 = vand.u32 %v2019, 2147483648
      %v2033 = vor.u32 1.1754944e-38, %v2032
      %v2034 = vsel %vm2031, %v2033, %v2029
      %v2035 = vmul.f32 1.0, %v2034
      %v2036 = vrcp.pop %v2020
      %v2037 = vmul.f32 %v2020, %v2036
      %v2038 = vsub.f32 1.0, %v2037
      %v2039 = vmul.f32 %v2036, %v2038
      %v2040 = vadd.f32 %v2036, %v2039
      %vm2041 = vweird.f32 %v2020
      %vm2042 = vweird.f32 %v2036
      %vm2043 = vmor %vm2041, %vm2042
      %v2044 = vsel %vm2043, %v2036, %v2040
      %v2045 = vand.u32 2147483647, %v2020
      %vm2046 = vcmp.eq.f32.partialorder %v2045, 8.507059e+37
      %v2047 = vand.u32 %v2020, 2147483648
      %v2048 = vor.u32 1.1754944e-38, %v2047
      %v2049 = vsel %vm2046, %v2048, %v2044
      %v2050 = vmul.f32 1.0, %v2049
      %v2051 = vtanh.pop %v2012
      %v2052 = vmul.f32 %v2035, %v1948
      %2054 = vrot.lane.b32.xlu0 %v2051, 64
      %v2055 = vpop.permute.xlu0 %2054
      %v2057 = vmul.f32 %v2035, %v2055
      %2059 = vrot.lane.b32.xlu0 %v2057, 64
      %v2060 = vpop.permute.xlu0 %2059
      %v2062 = vadd.f32 %v2052, %v2060
      %v2063 = vtanh.pop %v2062
      %2065 = vrot.lane.b32.xlu0 %v2063, 64
      %v2066 = vpop.permute.xlu0 %2065
      %v2068 = vmul.f32 %v2050, %v2066
      %s2069 = scalar_lea.vmem [#allocation4], 24
      %2070 = vst.msk [vmem:[%s2069] sm:$0xff] %vm1332, %v2068
      %2072 = vrot.lane.b32.xlu0 %v2068, 96
      %v2073 = vpop.permute.xlu0 %2072
      %s2075 = scalar_lea.vmem [#allocation5], 32
      %2076 = vst.msk [vmem:[%s2075] sm:$0xff] %vm1332, %v2073
      %s2077 = scalar_lea.vmem [#allocation20], 64
      %v2078 = vld [vmem:[%s2077] sm:$0xff]
      %v2079 = vld [vmem:[%s2077 + $0x8] sm:$0xff]
      %v2080 = vsel %vm1379, %v2068, 0
      %2082 = vmatpush.msra.mxu0 0.0
      %2083 = vmatpush.msra.mxu0 0.0
      %2084 = vmatpush.msra.mxu0 0.0
      %2085 = vmatpush.msra.mxu0 0.0
      %2086 = vmatpush.msra.mxu0 0.0
      %2087 = vmatpush.msra.mxu0 0.0
      %2088 = vmatpush.msra.mxu0 0.0
      %2089 = vmatpush.msra.mxu0 0.0
      %2090 = vmatpush.msra.mxu0 %v1355
      %2091 = vmatpush.msra.mxu0 %v1353
      %2092 = vmatpush.msra.mxu0 %v1351
      %2093 = vmatpush.msra.mxu0 %v1349
      %2094 = vmatpush.msra.mxu0 %v1347
      %2095 = vmatpush.msra.mxu0 %v1345
      %2096 = vmatpush.msra.mxu0 %v1343
      %2097 = vmatpush.msra.mxu0 %v1341
      %2098 = vmatmul.f32.gmra.mxu0 %v2080
      %v2099 = vpop.f32.mrf.mxu0
      %v2100 = vadd.f32 %v2078, %v2099
      %2101 = vdwg.mxu0
      %2102 = vmatpush.msra.mxu0 0.0
      %2103 = vmatpush.msra.mxu0 0.0
      %2104 = vmatpush.msra.mxu0 0.0
      %2105 = vmatpush.msra.mxu0 0.0
      %2106 = vmatpush.msra.mxu0 0.0
      %2107 = vmatpush.msra.mxu0 0.0
      %2108 = vmatpush.msra.mxu0 0.0
      %2109 = vmatpush.msra.mxu0 0.0
      %2110 = vmatpush.msra.mxu0 %v1356
      %2111 = vmatpush.msra.mxu0 %v1354
      %2112 = vmatpush.msra.mxu0 %v1352
      %2113 = vmatpush.msra.mxu0 %v1350
      %2114 = vmatpush.msra.mxu0 %v1348
      %2115 = vmatpush.msra.mxu0 %v1346
      %2116 = vmatpush.msra.mxu0 %v1344
      %2117 = vmatpush.msra.mxu0 %v1342
      %2118 = vmatmul.f32.gmra.mxu0 %v2080
      %v2119 = vpop.f32.mrf.mxu0
      %v2120 = vadd.f32 %v2079, %v2119
      %2121 = vdwg.mxu0
      %s2122 = scalar_lea.vmem [#allocation21], 48
      %v2123 = vld [vmem:[%s2122] sm:$0xff]
      %v2124 = vld [vmem:[%s2122 + $0x8] sm:$0xff]
      %v2125 = vadd.f32 %v2100, %v2123
      %v2126 = vadd.f32 %v2120, %v2124
      %v2127 = vxor.u32 %v2125, 2147483648
      %v2128 = vxor.u32 %v2126, 2147483648
      %v2129 = vmul.f32 %v2127, 1.442695
      %v2130 = vpow.pop %v2129
      %v2131 = vmul.f32 %v2128, 1.442695
      %v2132 = vpow.pop %v2131
      %v2133 = vadd.f32 %v2130, 1.0
      %v2134 = vadd.f32 %v2132, 1.0
      %v2135 = vrcp.pop %v2133
      %v2136 = vmul.f32 %v2133, %v2135
      %v2137 = vsub.f32 1.0, %v2136
      %v2138 = vmul.f32 %v2135, %v2137
      %v2139 = vadd.f32 %v2135, %v2138
      %vm2140 = vweird.f32 %v2133
      %vm2141 = vweird.f32 %v2135
      %vm2142 = vmor %vm2140, %vm2141
      %v2143 = vsel %vm2142, %v2135, %v2139
      %v2144 = vand.u32 2147483647, %v2133
      %vm2145 = vcmp.eq.f32.partialorder %v2144, 8.507059e+37
      %v2146 = vand.u32 %v2133, 2147483648
      %v2147 = vor.u32 1.1754944e-38, %v2146
      %v2148 = vsel %vm2145, %v2147, %v2143
      %v2149 = vmul.f32 1.0, %v2148
      %v2150 = vrcp.pop %v2134
      %v2151 = vmul.f32 %v2134, %v2150
      %v2152 = vsub.f32 1.0, %v2151
      %v2153 = vmul.f32 %v2150, %v2152
      %v2154 = vadd.f32 %v2150, %v2153
      %vm2155 = vweird.f32 %v2134
      %vm2156 = vweird.f32 %v2150
      %vm2157 = vmor %vm2155, %vm2156
      %v2158 = vsel %vm2157, %v2150, %v2154
      %v2159 = vand.u32 2147483647, %v2134
      %vm2160 = vcmp.eq.f32.partialorder %v2159, 8.507059e+37
      %v2161 = vand.u32 %v2134, 2147483648
      %v2162 = vor.u32 1.1754944e-38, %v2161
      %v2163 = vsel %vm2160, %v2162, %v2158
      %v2164 = vmul.f32 1.0, %v2163
      %v2165 = vtanh.pop %v2126
      %v2166 = vmul.f32 %v2149, %v2062
      %2168 = vrot.lane.b32.xlu0 %v2165, 64
      %v2169 = vpop.permute.xlu0 %2168
      %v2171 = vmul.f32 %v2149, %v2169
      %2173 = vrot.lane.b32.xlu0 %v2171, 64
      %v2174 = vpop.permute.xlu0 %2173
      %v2176 = vadd.f32 %v2166, %v2174
      %v2177 = vtanh.pop %v2176
      %2179 = vrot.lane.b32.xlu0 %v2177, 64
      %v2180 = vpop.permute.xlu0 %2179
      %v2182 = vmul.f32 %v2164, %v2180
      %s2183 = scalar_lea.vmem [#allocation4], 32
      %2184 = vst.msk [vmem:[%s2183] sm:$0xff] %vm1332, %v2182
      %2186 = vrot.lane.b32.xlu0 %v2182, 96
      %v2187 = vpop.permute.xlu0 %2186
      %s2189 = scalar_lea.vmem [#allocation5], 24
      %2190 = vst.msk [vmem:[%s2189] sm:$0xff] %vm1332, %v2187
      %s2191 = scalar_lea.vmem [#allocation20], 80
      %v2192 = vld [vmem:[%s2191] sm:$0xff]
      %v2193 = vld [vmem:[%s2191 + $0x8] sm:$0xff]
      %v2194 = vsel %vm1379, %v2182, 0
      %2196 = vmatpush.msra.mxu0 0.0
      %2197 = vmatpush.msra.mxu0 0.0
      %2198 = vmatpush.msra.mxu0 0.0
      %2199 = vmatpush.msra.mxu0 0.0
      %2200 = vmatpush.msra.mxu0 0.0
      %2201 = vmatpush.msra.mxu0 0.0
      %2202 = vmatpush.msra.mxu0 0.0
      %2203 = vmatpush.msra.mxu0 0.0
      %2204 = vmatpush.msra.mxu0 %v1355
      %2205 = vmatpush.msra.mxu0 %v1353
      %2206 = vmatpush.msra.mxu0 %v1351
      %2207 = vmatpush.msra.mxu0 %v1349
      %2208 = vmatpush.msra.mxu0 %v1347
      %2209 = vmatpush.msra.mxu0 %v1345
      %2210 = vmatpush.msra.mxu0 %v1343
      %2211 = vmatpush.msra.mxu0 %v1341
      %2212 = vmatmul.f32.gmra.mxu0 %v2194
      %v2213 = vpop.f32.mrf.mxu0
      %v2214 = vadd.f32 %v2192, %v2213
      %2215 = vdwg.mxu0
      %2216 = vmatpush.msra.mxu0 0.0
      %2217 = vmatpush.msra.mxu0 0.0
      %2218 = vmatpush.msra.mxu0 0.0
      %2219 = vmatpush.msra.mxu0 0.0
      %2220 = vmatpush.msra.mxu0 0.0
      %2221 = vmatpush.msra.mxu0 0.0
      %2222 = vmatpush.msra.mxu0 0.0
      %2223 = vmatpush.msra.mxu0 0.0
      %2224 = vmatpush.msra.mxu0 %v1356
      %2225 = vmatpush.msra.mxu0 %v1354
      %2226 = vmatpush.msra.mxu0 %v1352
      %2227 = vmatpush.msra.mxu0 %v1350
      %2228 = vmatpush.msra.mxu0 %v1348
      %2229 = vmatpush.msra.mxu0 %v1346
      %2230 = vmatpush.msra.mxu0 %v1344
      %2231 = vmatpush.msra.mxu0 %v1342
      %2232 = vmatmul.f32.gmra.mxu0 %v2194
      %v2233 = vpop.f32.mrf.mxu0
      %v2234 = vadd.f32 %v2193, %v2233
      %2235 = vdwg.mxu0
      %s2236 = scalar_lea.vmem [#allocation21], 32
      %v2237 = vld [vmem:[%s2236] sm:$0xff]
      %v2238 = vld [vmem:[%s2236 + $0x8] sm:$0xff]
      %v2239 = vadd.f32 %v2214, %v2237
      %v2240 = vadd.f32 %v2234, %v2238
      %v2241 = vxor.u32 %v2239, 2147483648
      %v2242 = vxor.u32 %v2240, 2147483648
      %v2243 = vmul.f32 %v2241, 1.442695
      %v2244 = vpow.pop %v2243
      %v2245 = vmul.f32 %v2242, 1.442695
      %v2246 = vpow.pop %v2245
      %v2247 = vadd.f32 %v2244, 1.0
      %v2248 = vadd.f32 %v2246, 1.0
      %v2249 = vrcp.pop %v2247
      %v2250 = vmul.f32 %v2247, %v2249
      %v2251 = vsub.f32 1.0, %v2250
      %v2252 = vmul.f32 %v2249, %v2251
      %v2253 = vadd.f32 %v2249, %v2252
      %vm2254 = vweird.f32 %v2247
      %vm2255 = vweird.f32 %v2249
      %vm2256 = vmor %vm2254, %vm2255
      %v2257 = vsel %vm2256, %v2249, %v2253
      %v2258 = vand.u32 2147483647, %v2247
      %vm2259 = vcmp.eq.f32.partialorder %v2258, 8.507059e+37
      %v2260 = vand.u32 %v2247, 2147483648
      %v2261 = vor.u32 1.1754944e-38, %v2260
      %v2262 = vsel %vm2259, %v2261, %v2257
      %v2263 = vmul.f32 1.0, %v2262
      %v2264 = vrcp.pop %v2248
      %v2265 = vmul.f32 %v2248, %v2264
      %v2266 = vsub.f32 1.0, %v2265
      %v2267 = vmul.f32 %v2264, %v2266
      %v2268 = vadd.f32 %v2264, %v2267
      %vm2269 = vweird.f32 %v2248
      %vm2270 = vweird.f32 %v2264
      %vm2271 = vmor %vm2269, %vm2270
      %v2272 = vsel %vm2271, %v2264, %v2268
      %v2273 = vand.u32 2147483647, %v2248
      %vm2274 = vcmp.eq.f32.partialorder %v2273, 8.507059e+37
      %v2275 = vand.u32 %v2248, 2147483648
      %v2276 = vor.u32 1.1754944e-38, %v2275
      %v2277 = vsel %vm2274, %v2276, %v2272
      %v2278 = vmul.f32 1.0, %v2277
      %v2279 = vtanh.pop %v2240
      %v2280 = vmul.f32 %v2263, %v2176
      %2282 = vrot.lane.b32.xlu0 %v2279, 64
      %v2283 = vpop.permute.xlu0 %2282
      %v2285 = vmul.f32 %v2263, %v2283
      %2287 = vrot.lane.b32.xlu0 %v2285, 64
      %v2288 = vpop.permute.xlu0 %2287
      %v2290 = vadd.f32 %v2280, %v2288
      %v2291 = vtanh.pop %v2290
      %2293 = vrot.lane.b32.xlu0 %v2291, 64
      %v2294 = vpop.permute.xlu0 %2293
      %v2296 = vmul.f32 %v2278, %v2294
      %s2297 = scalar_lea.vmem [#allocation4], 40
      %2298 = vst.msk [vmem:[%s2297] sm:$0xff] %vm1332, %v2296
      %2300 = vrot.lane.b32.xlu0 %v2296, 96
      %v2301 = vpop.permute.xlu0 %2300
      %s2303 = scalar_lea.vmem [#allocation5], 16
      %2304 = vst.msk [vmem:[%s2303] sm:$0xff] %vm1332, %v2301
      %s2305 = scalar_lea.vmem [#allocation20], 96
      %v2306 = vld [vmem:[%s2305] sm:$0xff]
      %v2307 = vld [vmem:[%s2305 + $0x8] sm:$0xff]
      %v2308 = vsel %vm1379, %v2296, 0
      %2310 = vmatpush.msra.mxu0 0.0
      %2311 = vmatpush.msra.mxu0 0.0
      %2312 = vmatpush.msra.mxu0 0.0
      %2313 = vmatpush.msra.mxu0 0.0
      %2314 = vmatpush.msra.mxu0 0.0
      %2315 = vmatpush.msra.mxu0 0.0
      %2316 = vmatpush.msra.mxu0 0.0
      %2317 = vmatpush.msra.mxu0 0.0
      %2318 = vmatpush.msra.mxu0 %v1355
      %2319 = vmatpush.msra.mxu0 %v1353
      %2320 = vmatpush.msra.mxu0 %v1351
      %2321 = vmatpush.msra.mxu0 %v1349
      %2322 = vmatpush.msra.mxu0 %v1347
      %2323 = vmatpush.msra.mxu0 %v1345
      %2324 = vmatpush.msra.mxu0 %v1343
      %2325 = vmatpush.msra.mxu0 %v1341
      %2326 = vmatmul.f32.gmra.mxu0 %v2308
      %v2327 = vpop.f32.mrf.mxu0
      %v2328 = vadd.f32 %v2306, %v2327
      %2329 = vdwg.mxu0
      %2330 = vmatpush.msra.mxu0 0.0
      %2331 = vmatpush.msra.mxu0 0.0
      %2332 = vmatpush.msra.mxu0 0.0
      %2333 = vmatpush.msra.mxu0 0.0
      %2334 = vmatpush.msra.mxu0 0.0
      %2335 = vmatpush.msra.mxu0 0.0
      %2336 = vmatpush.msra.mxu0 0.0
      %2337 = vmatpush.msra.mxu0 0.0
      %2338 = vmatpush.msra.mxu0 %v1356
      %2339 = vmatpush.msra.mxu0 %v1354
      %2340 = vmatpush.msra.mxu0 %v1352
      %2341 = vmatpush.msra.mxu0 %v1350
      %2342 = vmatpush.msra.mxu0 %v1348
      %2343 = vmatpush.msra.mxu0 %v1346
      %2344 = vmatpush.msra.mxu0 %v1344
      %2345 = vmatpush.msra.mxu0 %v1342
      %2346 = vmatmul.f32.gmra.mxu0 %v2308
      %v2347 = vpop.f32.mrf.mxu0
      %v2348 = vadd.f32 %v2307, %v2347
      %2349 = vdwg.mxu0
      %s2350 = scalar_lea.vmem [#allocation21], 16
      %v2351 = vld [vmem:[%s2350] sm:$0xff]
      %v2352 = vld [vmem:[%s2350 + $0x8] sm:$0xff]
      %v2353 = vadd.f32 %v2328, %v2351
      %v2354 = vadd.f32 %v2348, %v2352
      %v2355 = vxor.u32 %v2353, 2147483648
      %v2356 = vxor.u32 %v2354, 2147483648
      %v2357 = vmul.f32 %v2355, 1.442695
      %v2358 = vpow.pop %v2357
      %v2359 = vmul.f32 %v2356, 1.442695
      %v2360 = vpow.pop %v2359
      %v2361 = vadd.f32 %v2358, 1.0
      %v2362 = vadd.f32 %v2360, 1.0
      %v2363 = vrcp.pop %v2361
      %v2364 = vmul.f32 %v2361, %v2363
      %v2365 = vsub.f32 1.0, %v2364
      %v2366 = vmul.f32 %v2363, %v2365
      %v2367 = vadd.f32 %v2363, %v2366
      %vm2368 = vweird.f32 %v2361
      %vm2369 = vweird.f32 %v2363
      %vm2370 = vmor %vm2368, %vm2369
      %v2371 = vsel %vm2370, %v2363, %v2367
      %v2372 = vand.u32 2147483647, %v2361
      %vm2373 = vcmp.eq.f32.partialorder %v2372, 8.507059e+37
      %v2374 = vand.u32 %v2361, 2147483648
      %v2375 = vor.u32 1.1754944e-38, %v2374
      %v2376 = vsel %vm2373, %v2375, %v2371
      %v2377 = vmul.f32 1.0, %v2376
      %v2378 = vrcp.pop %v2362
      %v2379 = vmul.f32 %v2362, %v2378
      %v2380 = vsub.f32 1.0, %v2379
      %v2381 = vmul.f32 %v2378, %v2380
      %v2382 = vadd.f32 %v2378, %v2381
      %vm2383 = vweird.f32 %v2362
      %vm2384 = vweird.f32 %v2378
      %vm2385 = vmor %vm2383, %vm2384
      %v2386 = vsel %vm2385, %v2378, %v2382
      %v2387 = vand.u32 2147483647, %v2362
      %vm2388 = vcmp.eq.f32.partialorder %v2387, 8.507059e+37
      %v2389 = vand.u32 %v2362, 2147483648
      %v2390 = vor.u32 1.1754944e-38, %v2389
      %v2391 = vsel %vm2388, %v2390, %v2386
      %v2392 = vmul.f32 1.0, %v2391
      %v2393 = vtanh.pop %v2354
      %v2394 = vmul.f32 %v2377, %v2290
      %2396 = vrot.lane.b32.xlu0 %v2393, 64
      %v2397 = vpop.permute.xlu0 %2396
      %v2399 = vmul.f32 %v2377, %v2397
      %2401 = vrot.lane.b32.xlu0 %v2399, 64
      %v2402 = vpop.permute.xlu0 %2401
      %v2404 = vadd.f32 %v2394, %v2402
      %v2405 = vtanh.pop %v2404
      %2407 = vrot.lane.b32.xlu0 %v2405, 64
      %v2408 = vpop.permute.xlu0 %2407
      %v2410 = vmul.f32 %v2392, %v2408
      %s2411 = scalar_lea.vmem [#allocation4], 48
      %2412 = vst.msk [vmem:[%s2411] sm:$0xff] %vm1332, %v2410
      %2414 = vrot.lane.b32.xlu0 %v2410, 96
      %v2415 = vpop.permute.xlu0 %2414
      %s2417 = scalar_lea.vmem [#allocation5], 8
      %2418 = vst.msk [vmem:[%s2417] sm:$0xff] %vm1332, %v2415
      %s2419 = scalar_lea.vmem [#allocation20], 112
      %v2420 = vld [vmem:[%s2419] sm:$0xff]
      %v2421 = vld [vmem:[%s2419 + $0x8] sm:$0xff]
      %v2422 = vsel %vm1379, %v2410, 0
      %2424 = vmatpush.msra.mxu0 0.0
      %2425 = vmatpush.msra.mxu0 0.0
      %2426 = vmatpush.msra.mxu0 0.0
      %2427 = vmatpush.msra.mxu0 0.0
      %2428 = vmatpush.msra.mxu0 0.0
      %2429 = vmatpush.msra.mxu0 0.0
      %2430 = vmatpush.msra.mxu0 0.0
      %2431 = vmatpush.msra.mxu0 0.0
      %2432 = vmatpush.msra.mxu0 %v1355
      %2433 = vmatpush.msra.mxu0 %v1353
      %2434 = vmatpush.msra.mxu0 %v1351
      %2435 = vmatpush.msra.mxu0 %v1349
      %2436 = vmatpush.msra.mxu0 %v1347
      %2437 = vmatpush.msra.mxu0 %v1345
      %2438 = vmatpush.msra.mxu0 %v1343
      %2439 = vmatpush.msra.mxu0 %v1341
      %2440 = vmatmul.f32.gmra.mxu0 %v2422
      %v2441 = vpop.f32.mrf.mxu0
      %v2442 = vadd.f32 %v2420, %v2441
      %2443 = vdwg.mxu0
      %2444 = vmatpush.msra.mxu0 0.0
      %2445 = vmatpush.msra.mxu0 0.0
      %2446 = vmatpush.msra.mxu0 0.0
      %2447 = vmatpush.msra.mxu0 0.0
      %2448 = vmatpush.msra.mxu0 0.0
      %2449 = vmatpush.msra.mxu0 0.0
      %2450 = vmatpush.msra.mxu0 0.0
      %2451 = vmatpush.msra.mxu0 0.0
      %2452 = vmatpush.msra.mxu0 %v1356
      %2453 = vmatpush.msra.mxu0 %v1354
      %2454 = vmatpush.msra.mxu0 %v1352
      %2455 = vmatpush.msra.mxu0 %v1350
      %2456 = vmatpush.msra.mxu0 %v1348
      %2457 = vmatpush.msra.mxu0 %v1346
      %2458 = vmatpush.msra.mxu0 %v1344
      %2459 = vmatpush.msra.mxu0 %v1342
      %2460 = vmatmul.f32.gmra.mxu0 %v2422
      %v2461 = vpop.f32.mrf.mxu0
      %v2462 = vadd.f32 %v2421, %v2461
      %2463 = vdwg.mxu0
      %v2464 = vld [vmem:[#allocation21] sm:$0xff]
      %v2465 = vld [vmem:[#allocation21 + $0x8] sm:$0xff]
      %v2466 = vadd.f32 %v2442, %v2464
      %v2467 = vadd.f32 %v2462, %v2465
      %v2468 = vxor.u32 %v2466, 2147483648
      %v2469 = vxor.u32 %v2467, 2147483648
      %v2470 = vmul.f32 %v2468, 1.442695
      %v2471 = vpow.pop %v2470
      %v2472 = vmul.f32 %v2469, 1.442695
      %v2473 = vpow.pop %v2472
      %v2474 = vadd.f32 %v2471, 1.0
      %v2475 = vadd.f32 %v2473, 1.0
      %v2476 = vrcp.pop %v2474
      %v2477 = vmul.f32 %v2474, %v2476
      %v2478 = vsub.f32 1.0, %v2477
      %v2479 = vmul.f32 %v2476, %v2478
      %v2480 = vadd.f32 %v2476, %v2479
      %vm2481 = vweird.f32 %v2474
      %vm2482 = vweird.f32 %v2476
      %vm2483 = vmor %vm2481, %vm2482
      %v2484 = vsel %vm2483, %v2476, %v2480
      %v2485 = vand.u32 2147483647, %v2474
      %vm2486 = vcmp.eq.f32.partialorder %v2485, 8.507059e+37
      %v2487 = vand.u32 %v2474, 2147483648
      %v2488 = vor.u32 1.1754944e-38, %v2487
      %v2489 = vsel %vm2486, %v2488, %v2484
      %v2490 = vmul.f32 1.0, %v2489
      %v2491 = vrcp.pop %v2475
      %v2492 = vmul.f32 %v2475, %v2491
      %v2493 = vsub.f32 1.0, %v2492
      %v2494 = vmul.f32 %v2491, %v2493
      %v2495 = vadd.f32 %v2491, %v2494
      %vm2496 = vweird.f32 %v2475
      %vm2497 = vweird.f32 %v2491
      %vm2498 = vmor %vm2496, %vm2497
      %v2499 = vsel %vm2498, %v2491, %v2495
      %v2500 = vand.u32 2147483647, %v2475
      %vm2501 = vcmp.eq.f32.partialorder %v2500, 8.507059e+37
      %v2502 = vand.u32 %v2475, 2147483648
      %v2503 = vor.u32 1.1754944e-38, %v2502
      %v2504 = vsel %vm2501, %v2503, %v2499
      %v2505 = vmul.f32 1.0, %v2504
      %v2506 = vtanh.pop %v2467
      %v2507 = vmul.f32 %v2490, %v2404
      %2509 = vrot.lane.b32.xlu0 %v2506, 64
      %v2510 = vpop.permute.xlu0 %2509
      %v2512 = vmul.f32 %v2490, %v2510
      %2514 = vrot.lane.b32.xlu0 %v2512, 64
      %v2515 = vpop.permute.xlu0 %2514
      %v2517 = vadd.f32 %v2507, %v2515
      %v2518 = vtanh.pop %v2517
      %2520 = vrot.lane.b32.xlu0 %v2518, 64
      %v2521 = vpop.permute.xlu0 %2520
      %v2523 = vmul.f32 %v2505, %v2521
      %s2524 = scalar_lea.vmem [#allocation4], 56
      %2525 = vst.msk [vmem:[%s2524] sm:$0xff] %vm1332, %v2523
      %2527 = vrot.lane.b32.xlu0 %v2523, 96
      %v2528 = vpop.permute.xlu0 %2527
      %2530 = vst.msk [vmem:[#allocation5] sm:$0xff] %vm1332, %v2528
      %2531 = vst.msk [vmem:[#allocation6 + $0x8] sm:$0xff] %vm1379, %v2523
      %2533 = vrot.lane.b32.xlu0 %v2517, 64
      %v2534 = vpop.permute.xlu0 %2533
      %2536 = vst.msk [vmem:[#allocation7 + $0x8] sm:$0xff] %vm1379, %v2534
    %v2537 = vld [vmem:[#allocation4] sm:$0xff]
    %v2538 = vld [vmem:[#allocation4 + $0x8] sm:$0xff]
    %v2539 = vld [vmem:[#allocation4 + $0x10] sm:$0xff]
    %v2540 = vld [vmem:[#allocation4 + $0x18] sm:$0xff]
    %v2541 = vld [vmem:[#allocation4 + $0x20] sm:$0xff]
    %v2542 = vld [vmem:[#allocation4 + $0x28] sm:$0xff]
    %v2543 = vld [vmem:[#allocation4 + $0x30] sm:$0xff]
    %v2544 = vld [vmem:[#allocation4 + $0x38] sm:$0xff]
    %v2545 = vld [vmem:[#allocation5] sm:$0xff]
    %v2546 = vld [vmem:[#allocation5 + $0x8] sm:$0xff]
    %v2547 = vld [vmem:[#allocation5 + $0x10] sm:$0xff]
    %v2548 = vld [vmem:[#allocation5 + $0x18] sm:$0xff]
    %v2549 = vld [vmem:[#allocation5 + $0x20] sm:$0xff]
    %v2550 = vld [vmem:[#allocation5 + $0x28] sm:$0xff]
    %v2551 = vld [vmem:[#allocation5 + $0x30] sm:$0xff]
    %v2552 = vld [vmem:[#allocation5 + $0x38] sm:$0xff]
    %v2553 = vadd.f32 %v2537, %v2545
    %v2554 = vadd.f32 %v2538, %v2546
    %v2555 = vadd.f32 %v2539, %v2547
    %v2556 = vadd.f32 %v2540, %v2548
    %v2557 = vadd.f32 %v2541, %v2549
    %v2558 = vadd.f32 %v2542, %v2550
    %v2559 = vadd.f32 %v2543, %v2551
    %v2560 = vadd.f32 %v2544, %v2552
    %2561 = vst.msk [vmem:[#allocation14] sm:$0xff] %vm1332, %v2553
    %2562 = vst.msk [vmem:[#allocation14 + $0x8] sm:$0xff] %vm1332, %v2554
    %2563 = vst.msk [vmem:[#allocation14 + $0x10] sm:$0xff] %vm1332, %v2555
    %2564 = vst.msk [vmem:[#allocation14 + $0x18] sm:$0xff] %vm1332, %v2556
    %2565 = vst.msk [vmem:[#allocation14 + $0x20] sm:$0xff] %vm1332, %v2557
    %2566 = vst.msk [vmem:[#allocation14 + $0x28] sm:$0xff] %vm1332, %v2558
    %2567 = vst.msk [vmem:[#allocation14 + $0x30] sm:$0xff] %vm1332, %v2559
    %2568 = vst.msk [vmem:[#allocation14 + $0x38] sm:$0xff] %vm1332, %v2560
    %v2569 = vld [vmem:[#allocation6] sm:$0xff]
    %v2570 = vld [vmem:[#allocation6 + $0x8] sm:$0xff]
    %v2571 = vld [vmem:[%s11] sm:$0xff]
    %v2572 = vld [vmem:[%s11 + $0x8] sm:$0xff]
    %v2573 = vld [vmem:[%s11 + $0x10] sm:$0xff]
    %v2574 = vld [vmem:[%s11 + $0x18] sm:$0xff]
    %v2575 = vld [vmem:[%s11 + $0x20] sm:$0xff]
    %v2576 = vld [vmem:[%s11 + $0x28] sm:$0xff]
    %v2577 = vld [vmem:[%s11 + $0x30] sm:$0xff]
    %v2578 = vld [vmem:[%s11 + $0x38] sm:$0xff]
    %v2579 = vld [vmem:[%s12] sm:$0x1]
    %v2581 = vperm.slane %v2579, 0
    %vm2583 = vcmask 523264
    %v2585 = vsel %vm2583, %v2569, 0
    %v2588 = vsel %vm2583, %v2570, 0
    %2590 = vmatpush.msra.mxu0 0.0
    %2591 = vmatpush.msra.mxu0 0.0
    %2592 = vmatpush.msra.mxu0 0.0
    %2593 = vmatpush.msra.mxu0 0.0
    %2594 = vmatpush.msra.mxu0 0.0
    %2595 = vmatpush.msra.mxu0 0.0
    %2596 = vmatpush.msra.mxu0 0.0
    %2597 = vmatpush.msra.mxu0 0.0
    %2598 = vmatpush.msra.mxu0 %v2578
    %2599 = vmatpush.msra.mxu0 %v2577
    %2600 = vmatpush.msra.mxu0 %v2576
    %2601 = vmatpush.msra.mxu0 %v2575
    %2602 = vmatpush.msra.mxu0 %v2574
    %2603 = vmatpush.msra.mxu0 %v2573
    %2604 = vmatpush.msra.mxu0 %v2572
    %2605 = vmatpush.msra.mxu0 %v2571
    %2606 = vmatmul.f32.gmra.mxu0 %v2585
    %v2607 = vpop.f32.mrf.mxu0
    %v2608 = vadd.f32 %v2581, %v2607
    %2609 = vmatmul.f32.gmra.mxu0 %v2588
    %v2610 = vpop.f32.mrf.mxu0
    %v2611 = vadd.f32 %v2581, %v2610
    %2612 = vdwg.mxu0
    %2613 = vst.msk [vmem:[#allocation15] sm:$0xff] %vm1332, %v2608
    %2614 = vst.msk [vmem:[#allocation15 + $0x8] sm:$0xff] %vm1332, %v2611
    %v2615 = vld [vmem:[#allocation7] sm:$0xff]
    %v2616 = vld [vmem:[#allocation7 + $0x8] sm:$0xff]
    %v2617 = vld [vmem:[%s13] sm:$0xff]
    %v2618 = vld [vmem:[%s13 + $0x8] sm:$0xff]
    %v2619 = vld [vmem:[%s13 + $0x10] sm:$0xff]
    %v2620 = vld [vmem:[%s13 + $0x18] sm:$0xff]
    %v2621 = vld [vmem:[%s13 + $0x20] sm:$0xff]
    %v2622 = vld [vmem:[%s13 + $0x28] sm:$0xff]
    %v2623 = vld [vmem:[%s13 + $0x30] sm:$0xff]
    %v2624 = vld [vmem:[%s13 + $0x38] sm:$0xff]
    %v2625 = vld [vmem:[%s14] sm:$0x1]
    %v2627 = vperm.slane %v2625, 0
    %v2630 = vsel %vm2583, %v2615, 0
    %v2633 = vsel %vm2583, %v2616, 0
    %2635 = vmatpush.msra.mxu0 0.0
    %2636 = vmatpush.msra.mxu0 0.0
    %2637 = vmatpush.msra.mxu0 0.0
    %2638 = vmatpush.msra.mxu0 0.0
    %2639 = vmatpush.msra.mxu0 0.0
    %2640 = vmatpush.msra.mxu0 0.0
    %2641 = vmatpush.msra.mxu0 0.0
    %2642 = vmatpush.msra.mxu0 0.0
    %2643 = vmatpush.msra.mxu0 %v2624
    %2644 = vmatpush.msra.mxu0 %v2623
    %2645 = vmatpush.msra.mxu0 %v2622
    %2646 = vmatpush.msra.mxu0 %v2621
    %2647 = vmatpush.msra.mxu0 %v2620
    %2648 = vmatpush.msra.mxu0 %v2619
    %2649 = vmatpush.msra.mxu0 %v2618
    %2650 = vmatpush.msra.mxu0 %v2617
    %2651 = vmatmul.f32.gmra.mxu0 %v2630
    %v2652 = vpop.f32.mrf.mxu0
    %v2653 = vadd.f32 %v2627, %v2652
    %2654 = vmatmul.f32.gmra.mxu0 %v2633
    %v2655 = vpop.f32.mrf.mxu0
    %v2656 = vadd.f32 %v2627, %v2655
    %2657 = vdwg.mxu0
    %2658 = vst.msk [vmem:[#allocation17] sm:$0xff] %vm1332, %v2653
    %2659 = vst.msk [vmem:[#allocation17 + $0x8] sm:$0xff] %vm1332, %v2656
    // Predicated region
    $region76: #{tpu_custom_call.1} parent=1 // pred_check
      _
    $region77: #{tpu_custom_call.1} parent=1 // pred_check_branch
      %2661 = sbr.rel (0) target = $region79
    $region78: #{tpu_custom_call.1} parent=1 // pred_region
      %2663 = vsyncadd [#allocation10], 0
      %s2664 = sshll.u32 [#allocation14], 4
      %s2665 = int_to_ptr.vmem [resolvable:$true] %s2664
      %s2666 = sshll.u32 %s15, 4
      %s2667 = int_to_ptr.hbm [resolvable:$true] %s2666
      %2672 = dma.vmem_to_hbm [thread:$0]  %s2665, 1024, %s2667, [#allocation10], 128, 128, 8
    $region79: #{tpu_custom_call.1} parent=1 // pred_fallthru
      _
    // Predicated region
    $region80: #{tpu_custom_call.1} parent=1 // pred_check
      _
    $region81: #{tpu_custom_call.1} parent=1 // pred_check_branch
      %2674 = sbr.rel (0) target = $region83
    $region82: #{tpu_custom_call.1} parent=1 // pred_region
      %2676 = vsyncadd [#allocation16], 0
      %s2677 = sshll.u32 [#allocation15], 4
      %s2678 = int_to_ptr.vmem [resolvable:$true] %s2677
      %s2679 = sshll.u32 %s16, 4
      %s2680 = int_to_ptr.hbm [resolvable:$true] %s2679
      %2685 = dma.vmem_to_hbm [thread:$0]  %s2678, 256, %s2680, [#allocation16], 128, 128, 8
    $region83: #{tpu_custom_call.1} parent=1 // pred_fallthru
      _
    // Predicated region
    $region84: #{tpu_custom_call.1} parent=1 // pred_check
      _
    $region85: #{tpu_custom_call.1} parent=1 // pred_check_branch
      %2687 = sbr.rel (0) target = $region87
    $region86: #{tpu_custom_call.1} parent=1 // pred_region
      %2689 = vsyncadd [#allocation16], 0
      %s2690 = sshll.u32 [#allocation17], 4
      %s2691 = int_to_ptr.vmem [resolvable:$true] %s2690
      %s2692 = sshll.u32 %s17, 4
      %s2693 = int_to_ptr.hbm [resolvable:$true] %s2692
      %2698 = dma.vmem_to_hbm [thread:$0]  %s2691, 256, %s2693, [#allocation16], 128, 128, 8
    $region87: #{tpu_custom_call.1} parent=1 // pred_fallthru
      _
    // Predicated region
    $region88: #{tpu_custom_call.1} parent=1 // pred_check
      _
    $region89: #{tpu_custom_call.1} parent=1 // pred_check_branch
      %2700 = sbr.rel (0) target = $region91
    $region90: #{tpu_custom_call.1} parent=1 // pred_region
      %2702 = dma.done [#allocation10], 1024
    $region91: #{tpu_custom_call.1} parent=1 // pred_fallthru
      _
    // Predicated region
    $region92: #{tpu_custom_call.1} parent=1 // pred_check
      _
    $region93: #{tpu_custom_call.1} parent=1 // pred_check_branch
      %2704 = sbr.rel (0) target = $region95
    $region94: #{tpu_custom_call.1} parent=1 // pred_region
      %2706 = dma.done [#allocation16], 256
    $region95: #{tpu_custom_call.1} parent=1 // pred_fallthru
      _
    // Predicated region
    $region96: #{tpu_custom_call.1} parent=1 // pred_check
      _
    $region97: #{tpu_custom_call.1} parent=1 // pred_check_branch
      %2708 = sbr.rel (0) target = $region99
    $region98: #{tpu_custom_call.1} parent=1 // pred_region
      %2710 = dma.done [#allocation16], 256
    $region99: #{tpu_custom_call.1} parent=1 // pred_fallthru
      _
    %2711 = vsyncpa [#allocation9], 1
    %2712 = vsyncpa [#allocation12], 1
    %2713 = vsyncpa [#allocation10], 1
    %2714 = vsyncpa [#allocation16], 1

</llo_original>
